<compile_context>
chip_gen: v5e
topology: v5e:2x2
jax: 0.10.0
libtpu: 0.0.40
codegen_flags: <defaults>
</compile_context>

<pallas_src>
import jax
import jax.numpy as jnp
from jax import lax
from jax.experimental import pallas as pl
from jax.experimental.pallas import tpu as pltpu


def _dpe_gru_kernel(gi_ref, h0_ref, wh_ref, bhn_ref, fcw_ref, fcb_ref,
                    y_ref, hout_ref):
    """All G groups' GRU recurrences + fused per-group Linear in ONE invocation.

    gi_ref  : (G, T*N, 3H) f32   hoisted input projection (+ folded r/z input biases + b_in)
    h0_ref  : (G, N, H)    f32
    wh_ref  : (G, H, 3H)   compute dtype (bf16 on v6e/v7x; f32 also supported)
    bhn_ref : (G, 1, H)    f32   hidden bias of the n gate (kept separate: scaled by r)
    fcw_ref : (G, H, H)    compute dtype   per-group nn.Linear weight (transposed)
    fcb_ref : (G, 1, H)    f32
    y_ref   : (G, T, N*H)  f32   lane-dense packed GRU+Linear output
    hout_ref: (G, N, H)    f32   final hidden state
    """
    G, N, H = h0_ref.shape
    T = y_ref.shape[1]

    # Weights / biases hoisted out of the recurrence (loaded once).
    wh = wh_ref[...]
    fcw = fcw_ref[...]
    bhn = bhn_ref[...]
    fcb = fcb_ref[...]

    # Recurrence: T is small & static -> fully unrolled; h carried in vregs.
    # Each step is ONE batched (G,N,H)@(G,H,3H) MXU op -> G independent recurrences
    # interleave on the MXU/EUP/VPU latency chain.
    h = h0_ref[...]                                              # (G, N, H) f32
    for t in range(T):
        # Per-step static sublane slice of the hoisted projection (kept in VMEM,
        # not in vregs, to bound register pressure).
        gi_t = gi_ref[:, t * N:(t + 1) * N, :]                   # (G, N, 3H) f32
        gh = jnp.einsum('gnh,ghk->gnk', h.astype(wh.dtype), wh,
                        preferred_element_type=jnp.float32)      # (G, N, 3H) f32

        # PyTorch GRU gate order (r, z, n); b_hr/b_hz folded into gi, b_hn inside r*(...).
        r = jax.nn.sigmoid(gi_t[..., 0:H] + gh[..., 0:H])
        z = jax.nn.sigmoid(gi_t[..., H:2 * H] + gh[..., H:2 * H])
        n = jnp.tanh(gi_t[..., 2 * H:] + r * (gh[..., 2 * H:] + bhn))
        h = (1.0 - z) * n + z * h                                # (G, N, H) f32

        # Fused per-group nn.Linear; result repacked sublane->lane and stored as a
        # full 128-lane row at a static offset (no masked stores, no epilogue concat).
        y_t = jnp.einsum('gnh,ghk->gnk', h.astype(fcw.dtype), fcw,
                         preferred_element_type=jnp.float32) + fcb   # (G, N, H) f32
        y_ref[:, t:t + 1, :] = y_t.reshape(G, 1, N * H).astype(y_ref.dtype)

    hout_ref[...] = h.astype(hout_ref.dtype)


def path_extension_gru(x, hidden_states, params, groups,
                       compute_dtype=jnp.bfloat16):
    """x: (B, C, T, F); hidden_states: list of (1, N, H) per group."""
    B, C, T, F = x.shape
    assert F % groups == 0, "F must be divisible by groups"
    G = groups
    Fg = F // G
    N = B * Fg
    H = params["fc_b"].shape[-1]

    # ---- input glue: one fused reshape/transpose; row index is t*N + (b*Fg + f),
    # matching the torch chunk/permute/reshape exactly.
    xg = jnp.transpose(x.reshape(B, C, T, G, Fg), (3, 2, 0, 4, 1)).reshape(G, T * N, C)

    # ---- hoisted (non-recurrent) input projection, done once by XLA in the wrapper:
    # gi = x @ [W_ir|W_iz|W_in] + (b_ir+b_hr | b_iz+b_hz | b_in), f32 accumulation.
    gi = jnp.einsum('gmc,gck->gmk', xg.astype(compute_dtype),
                    params["wi"].astype(compute_dtype),
                    preferred_element_type=jnp.float32) + params["bi"]   # (G, T*N, 3H) f32

    h0 = jnp.concatenate(hidden_states, axis=0).astype(jnp.float32)      # (G, N, H)

    wh = params["wh"].astype(compute_dtype)
    fcw = params["fc_w"].astype(compute_dtype)
    bhn = params["bhn"].astype(jnp.float32)
    fcb = params["fc_b"].astype(jnp.float32)

    y_pk, hout = pl.pallas_call(
        _dpe_gru_kernel,
        out_shape=(jax.ShapeDtypeStruct((G, T, N * H), jnp.float32),
                   jax.ShapeDtypeStruct((G, N, H), jnp.float32)),
        grid=(1,),                                      # single invocation: all groups at once
        in_specs=[
            pl.BlockSpec((G, T * N, 3 * H), lambda i: (0, 0, 0)),   # gi (hoisted projection)
            pl.BlockSpec((G, N, H), lambda i: (0, 0, 0)),           # h0
            pl.BlockSpec((G, H, 3 * H), lambda i: (0, 0, 0)),       # W_h (r|z|n)
            pl.BlockSpec((G, 1, H), lambda i: (0, 0, 0)),           # b_hn
            pl.BlockSpec((G, H, H), lambda i: (0, 0, 0)),           # fc W^T
            pl.BlockSpec((G, 1, H), lambda i: (0, 0, 0)),           # fc b
        ],
        out_specs=(
            pl.BlockSpec((G, T, N * H), lambda i: (0, 0, 0)),       # y (lane-dense, 128 wide)
            pl.BlockSpec((G, N, H), lambda i: (0, 0, 0)),           # h_out
        ),
        compiler_params=pltpu.CompilerParams(
            dimension_semantics=("arbitrary",)),        # single grid step; see v7x TODO above
    )(gi, h0, wh, bhn, fcw, fcb)

    # ---- output glue: unpack lanes, then mirror torch reshape(B,-1,T,C)/permute/cat exactly.
    # (note: like the torch module, this is only "un-scrambled" when H == C)
    y_gtnh = y_pk.reshape(G, T, N, H)
    y_nt = jnp.transpose(y_gtnh, (0, 2, 1, 3))                   # (G, N, T, H)
    y_r = y_nt.reshape(G, B, -1, T, C)                           # per-group torch reshape
    y_out = jnp.transpose(y_r, (1, 4, 3, 0, 2)).reshape(B, C, T, -1)
    h_chunks = [hout[g:g + 1] for g in range(G)]                 # each (1, N, H)
    return y_out, h_chunks


# ----------------------------- parameter init --------------------------------
def init_params(key, groups, C, H):
    """Deterministic synthetic parameters (PyTorch GRU gate order r, z, n)."""
    k = float(1.0 / (H ** 0.5))
    keys = jax.random.split(key, groups * 6)
    raw = []
    for g in range(groups):
        kg = keys[6 * g: 6 * (g + 1)]
        w_ih = jax.random.uniform(kg[0], (3 * H, C), jnp.float32, -k, k)
        w_hh = jax.random.uniform(kg[1], (3 * H, H), jnp.float32, -k, k)
        b_ih = jax.random.uniform(kg[2], (3 * H,), jnp.float32, -k, k)
        b_hh = jax.random.uniform(kg[3], (3 * H,), jnp.float32, -k, k)
        fc_w = jax.random.uniform(kg[4], (H, H), jnp.float32, -k, k)
        fc_b = jax.random.uniform(kg[5], (H,), jnp.float32, -k, k)
        raw.append((w_ih, w_hh, b_ih, b_hh, fc_w, fc_b))

    def folded_bias(b_ih, b_hh):
        # r and z gates fuse both biases; n gate keeps b_hn separate (scaled by r).
        return jnp.concatenate([b_ih[:H] + b_hh[:H],
                                b_ih[H:2 * H] + b_hh[H:2 * H],
                                b_ih[2 * H:]]).reshape(1, 3 * H)

    kern = {
        "wi":   jnp.stack([r[0].T for r in raw]),                      # (G, C, 3H) cols r|z|n
        "wh":   jnp.stack([r[1].T for r in raw]),                      # (G, H, 3H) cols r|z|n
        "bi":   jnp.stack([folded_bias(r[2], r[3]) for r in raw]),     # (G, 1, 3H)
        "bhn":  jnp.stack([r[3][2 * H:].reshape(1, H) for r in raw]),  # (G, 1, H)
        "fc_w": jnp.stack([r[4].T for r in raw]),                      # (G, H, H)
        "fc_b": jnp.stack([r[5].reshape(1, H) for r in raw]),          # (G, 1, H)
    }
    return raw, kern


# -------------------------- pure-JAX reference -------------------------------
def ref_forward(x, hidden_states, raw, groups):
    B, C, T, F = x.shape
    Fg = F // groups
    N = B * Fg
    H = raw[0][5].shape[0]
    x_chunks = jnp.split(x, groups, axis=3)
    y_chunks, h_chunks = [], []
    for g in range(groups):
        w_ih, w_hh, b_ih, b_hh, fc_w, fc_b = raw[g]
        xc = jnp.transpose(x_chunks[g], (0, 3, 2, 1)).reshape(N, T, C)
        h = hidden_states[g][0]

        def step(h_prev, x_t):
            gi = x_t @ w_ih.T + b_ih
            gh = h_prev @ w_hh.T + b_hh
            r = jax.nn.sigmoid(gi[:, 0:H] + gh[:, 0:H])
            z = jax.nn.sigmoid(gi[:, H:2 * H] + gh[:, H:2 * H])
            n = jnp.tanh(gi[:, 2 * H:] + r * gh[:, 2 * H:])
            h_new = (1.0 - z) * n + z * h_prev
            return h_new, h_new

        h_final, ys = lax.scan(step, h, jnp.transpose(xc, (1, 0, 2)))
        y = jnp.transpose(ys, (1, 0, 2)) @ fc_w.T + fc_b       # (N, T, H)
        y = y.reshape(B, -1, T, C)
        y = jnp.transpose(y, (0, 3, 2, 1))
        y_chunks.append(y)
        h_chunks.append(h_final[None])
    return jnp.concatenate(y_chunks, axis=3), h_chunks


if __name__ == "__main__":
    B, C, T, F = 2, 16, 8, 16
    groups, H = 4, 16            # hidden_size == C (standard FSPEN configuration)
    Fg = F // groups
    N = B * Fg                   # N*H = N*C = 128 -> lane-dense packed blocks

    key = jax.random.PRNGKey(0)
    kx, kh, kp = jax.random.split(key, 3)
    x = jax.random.normal(kx, (B, C, T, F), jnp.float32)
    hkeys = jax.random.split(kh, groups)
    hidden_states = [jax.random.normal(hkeys[g], (1, N, H), jnp.float32)
                     for g in range(groups)]
    raw, kern = init_params(kp, groups, C, H)

    y_ref, h_ref = ref_forward(x, hidden_states, raw, groups)

    # Exactness check: f32 compute path matches the reference at 1e-3.
    y32, h32 = path_extension_gru(x, hidden_states, kern, groups,
                                  compute_dtype=jnp.float32)
    y32 = jax.block_until_ready(y32)
    assert y32.shape == (B, C, T, F), y32.shape
    assert jnp.allclose(y32, y_ref, atol=1e-3, rtol=1e-3)
    for g in range(groups):
        assert h32[g].shape == (1, N, H)
        assert jnp.allclose(h32[g], h_ref[g], atol=1e-3, rtol=1e-3)

    # Default bf16-MXU-operand path (v6e/v7x recommendation): same math, looser tolerance.
    ybf, hbf = path_extension_gru(x, hidden_states, kern, groups,
                                  compute_dtype=jnp.bfloat16)
    ybf = jax.block_until_ready(ybf)
    assert ybf.shape == (B, C, T, F), ybf.shape
    assert jnp.allclose(ybf, y_ref, atol=5e-2, rtol=5e-2)
    for g in range(groups):
        assert jnp.allclose(hbf[g], h_ref[g], atol=5e-2, rtol=5e-2)

    print("KERNEL_OK")
</pallas_src>

<mosaic_0001>
module attributes {stable_mosaic.version = 11 : i64} {
  func.func @_dpe_gru_kernel(%arg0: i32, %arg1: memref<4x64x48xf32, #tpu.memory_space<vmem>>, %arg2: memref<4x8x16xf32, #tpu.memory_space<vmem>>, %arg3: memref<4x16x48xf32, #tpu.memory_space<vmem>>, %arg4: memref<4x1x16xf32, #tpu.memory_space<vmem>>, %arg5: memref<4x16x16xf32, #tpu.memory_space<vmem>>, %arg6: memref<4x1x16xf32, #tpu.memory_space<vmem>>, %arg7: memref<4x8x128xf32, #tpu.memory_space<vmem>>, %arg8: memref<4x8x16xf32, #tpu.memory_space<vmem>>) attributes {dimension_semantics = [#tpu.dimension_semantics<arbitrary>], iteration_bounds = array<i64: 1>, scalar_prefetch = 0 : i64, scratch_operands = 0 : i64, tpu.core_type = #tpu.core_type<tc>, window_params = [{pipeline_mode = #tpu.pipeline_mode<synchronous>, transform_indices = @transform_0, window_bounds = array<i64: 4, 64, 48>}, {pipeline_mode = #tpu.pipeline_mode<synchronous>, transform_indices = @transform_1, window_bounds = array<i64: 4, 8, 16>}, {pipeline_mode = #tpu.pipeline_mode<synchronous>, transform_indices = @transform_2, window_bounds = array<i64: 4, 16, 48>}, {pipeline_mode = #tpu.pipeline_mode<synchronous>, transform_indices = @transform_3, window_bounds = array<i64: 4, 1, 16>}, {pipeline_mode = #tpu.pipeline_mode<synchronous>, transform_indices = @transform_4, window_bounds = array<i64: 4, 16, 16>}, {pipeline_mode = #tpu.pipeline_mode<synchronous>, transform_indices = @transform_5, window_bounds = array<i64: 4, 1, 16>}, {pipeline_mode = #tpu.pipeline_mode<synchronous>, transform_indices = @transform_6, window_bounds = array<i64: 4, 8, 128>}, {pipeline_mode = #tpu.pipeline_mode<synchronous>, transform_indices = @transform_7, window_bounds = array<i64: 4, 8, 16>}]} {
    %c0 = arith.constant 0 : index
    %c0_0 = arith.constant 0 : index
    %c0_1 = arith.constant 0 : index
    %0 = vector.load %arg3[%c0, %c0_0, %c0_1] : memref<4x16x48xf32, #tpu.memory_space<vmem>>, vector<4x16x48xf32>
    %c0_2 = arith.constant 0 : index
    %c0_3 = arith.constant 0 : index
    %c0_4 = arith.constant 0 : index
    %1 = vector.load %arg5[%c0_2, %c0_3, %c0_4] : memref<4x16x16xf32, #tpu.memory_space<vmem>>, vector<4x16x16xf32>
    %c0_5 = arith.constant 0 : index
    %c0_6 = arith.constant 0 : index
    %c0_7 = arith.constant 0 : index
    %2 = vector.load %arg4[%c0_5, %c0_6, %c0_7] : memref<4x1x16xf32, #tpu.memory_space<vmem>>, vector<4x1x16xf32>
    %c0_8 = arith.constant 0 : index
    %c0_9 = arith.constant 0 : index
    %c0_10 = arith.constant 0 : index
    %3 = vector.load %arg6[%c0_8, %c0_9, %c0_10] : memref<4x1x16xf32, #tpu.memory_space<vmem>>, vector<4x1x16xf32>
    %c0_11 = arith.constant 0 : index
    %c0_12 = arith.constant 0 : index
    %c0_13 = arith.constant 0 : index
    %4 = vector.load %arg2[%c0_11, %c0_12, %c0_13] : memref<4x8x16xf32, #tpu.memory_space<vmem>>, vector<4x8x16xf32>
    %c0_14 = arith.constant 0 : index
    %c0_15 = arith.constant 0 : index
    %c0_16 = arith.constant 0 : index
    %5 = vector.load %arg1[%c0_14, %c0_15, %c0_16] : memref<4x64x48xf32, #tpu.memory_space<vmem>>, vector<4x8x48xf32>
    "tpu.trace_start"() <{level = 10 : i32, message = "gnh,ghk->gnk"}> : () -> ()
    %cst = arith.constant dense<0.000000e+00> : vector<4x8x48xf32>
    %6 = tpu.matmul %4, %0, %cst {dimension_numbers = #tpu.dot_dimension_numbers<[2], [1], [1], [2], [0, 0, 0, 1, 1, 2], [0], [0]>} : vector<4x8x16xf32>, vector<4x16x48xf32>, vector<4x8x48xf32> -> vector<4x8x48xf32>
    "tpu.trace_stop"() : () -> ()
    %7 = vector.extract_strided_slice %5 {offsets = [0, 0, 0], sizes = [4, 8, 16], strides = [1, 1, 1]} : vector<4x8x48xf32> to vector<4x8x16xf32>
    %8 = vector.extract_strided_slice %6 {offsets = [0, 0, 0], sizes = [4, 8, 16], strides = [1, 1, 1]} : vector<4x8x48xf32> to vector<4x8x16xf32>
    %9 = arith.addf %7, %8 : vector<4x8x16xf32>
    %10 = arith.negf %9 : vector<4x8x16xf32>
    %11 = math.exp %10 : vector<4x8x16xf32>
    %cst_17 = arith.constant 1.000000e+00 : f32
    %12 = vector.broadcast %cst_17 : f32 to vector<4x8x16xf32>
    %13 = arith.addf %12, %11 : vector<4x8x16xf32>
    %14 = arith.divf %12, %13 : vector<4x8x16xf32>
    %15 = vector.extract_strided_slice %5 {offsets = [0, 0, 16], sizes = [4, 8, 16], strides = [1, 1, 1]} : vector<4x8x48xf32> to vector<4x8x16xf32>
    %16 = vector.extract_strided_slice %6 {offsets = [0, 0, 16], sizes = [4, 8, 16], strides = [1, 1, 1]} : vector<4x8x48xf32> to vector<4x8x16xf32>
    %17 = arith.addf %15, %16 : vector<4x8x16xf32>
    %18 = arith.negf %17 : vector<4x8x16xf32>
    %19 = math.exp %18 : vector<4x8x16xf32>
    %cst_18 = arith.constant 1.000000e+00 : f32
    %20 = vector.broadcast %cst_18 : f32 to vector<4x8x16xf32>
    %21 = arith.addf %20, %19 : vector<4x8x16xf32>
    %22 = arith.divf %20, %21 : vector<4x8x16xf32>
    %23 = vector.extract_strided_slice %5 {offsets = [0, 0, 32], sizes = [4, 8, 16], strides = [1, 1, 1]} : vector<4x8x48xf32> to vector<4x8x16xf32>
    %24 = vector.extract_strided_slice %6 {offsets = [0, 0, 32], sizes = [4, 8, 16], strides = [1, 1, 1]} : vector<4x8x48xf32> to vector<4x8x16xf32>
    %25 = vector.broadcast %2 : vector<4x1x16xf32> to vector<4x8x16xf32>
    %26 = arith.addf %24, %25 : vector<4x8x16xf32>
    %27 = arith.mulf %14, %26 : vector<4x8x16xf32>
    %28 = arith.addf %23, %27 : vector<4x8x16xf32>
    %29 = math.tanh %28 : vector<4x8x16xf32>
    %cst_19 = arith.constant 1.000000e+00 : f32
    %30 = vector.broadcast %cst_19 : f32 to vector<4x8x16xf32>
    %31 = arith.subf %30, %22 : vector<4x8x16xf32>
    %32 = arith.mulf %31, %29 : vector<4x8x16xf32>
    %33 = arith.mulf %22, %4 : vector<4x8x16xf32>
    %34 = arith.addf %32, %33 : vector<4x8x16xf32>
    "tpu.trace_start"() <{level = 10 : i32, message = "gnh,ghk->gnk"}> : () -> ()
    %cst_20 = arith.constant dense<0.000000e+00> : vector<4x8x16xf32>
    %35 = tpu.matmul %34, %1, %cst_20 {dimension_numbers = #tpu.dot_dimension_numbers<[2], [1], [1], [2], [0, 0, 0, 1, 1, 2], [0], [0]>} : vector<4x8x16xf32>, vector<4x16x16xf32>, vector<4x8x16xf32> -> vector<4x8x16xf32>
    "tpu.trace_stop"() : () -> ()
    %36 = vector.broadcast %3 : vector<4x1x16xf32> to vector<4x8x16xf32>
    %37 = arith.addf %35, %36 : vector<4x8x16xf32>
    %38 = vector.shape_cast %37 : vector<4x8x16xf32> to vector<4x1x128xf32>
    %c0_21 = arith.constant 0 : index
    %c0_22 = arith.constant 0 : index
    %c0_23 = arith.constant 0 : index
    %39 = vector.load %arg7[%c0_21, %c0_22, %c0_23] : memref<4x8x128xf32, #tpu.memory_space<vmem>>, vector<4x1x128xf32>
    tpu.vector_store %arg7[%c0_21, %c0_22, %c0_23], %38 {strides = array<i32>} : memref<4x8x128xf32, #tpu.memory_space<vmem>>, vector<4x1x128xf32>,
    %c0_24 = arith.constant 0 : index
    %c8 = arith.constant 8 : index
    %c0_25 = arith.constant 0 : index
    %40 = vector.load %arg1[%c0_24, %c8, %c0_25] : memref<4x64x48xf32, #tpu.memory_space<vmem>>, vector<4x8x48xf32>
    "tpu.trace_start"() <{level = 10 : i32, message = "gnh,ghk->gnk"}> : () -> ()
    %cst_26 = arith.constant dense<0.000000e+00> : vector<4x8x48xf32>
    %41 = tpu.matmul %34, %0, %cst_26 {dimension_numbers = #tpu.dot_dimension_numbers<[2], [1], [1], [2], [0, 0, 0, 1, 1, 2], [0], [0]>} : vector<4x8x16xf32>, vector<4x16x48xf32>, vector<4x8x48xf32> -> vector<4x8x48xf32>
    "tpu.trace_stop"() : () -> ()
    %42 = vector.extract_strided_slice %40 {offsets = [0, 0, 0], sizes = [4, 8, 16], strides = [1, 1, 1]} : vector<4x8x48xf32> to vector<4x8x16xf32>
    %43 = vector.extract_strided_slice %41 {offsets = [0, 0, 0], sizes = [4, 8, 16], strides = [1, 1, 1]} : vector<4x8x48xf32> to vector<4x8x16xf32>
    %44 = arith.addf %42, %43 : vector<4x8x16xf32>
    %45 = arith.negf %44 : vector<4x8x16xf32>
    %46 = math.exp %45 : vector<4x8x16xf32>
    %cst_27 = arith.constant 1.000000e+00 : f32
    %47 = vector.broadcast %cst_27 : f32 to vector<4x8x16xf32>
    %48 = arith.addf %47, %46 : vector<4x8x16xf32>
    %49 = arith.divf %47, %48 : vector<4x8x16xf32>
    %50 = vector.extract_strided_slice %40 {offsets = [0, 0, 16], sizes = [4, 8, 16], strides = [1, 1, 1]} : vector<4x8x48xf32> to vector<4x8x16xf32>
    %51 = vector.extract_strided_slice %41 {offsets = [0, 0, 16], sizes = [4, 8, 16], strides = [1, 1, 1]} : vector<4x8x48xf32> to vector<4x8x16xf32>
    %52 = arith.addf %50, %51 : vector<4x8x16xf32>
    %53 = arith.negf %52 : vector<4x8x16xf32>
    %54 = math.exp %53 : vector<4x8x16xf32>
    %cst_28 = arith.constant 1.000000e+00 : f32
    %55 = vector.broadcast %cst_28 : f32 to vector<4x8x16xf32>
    %56 = arith.addf %55, %54 : vector<4x8x16xf32>
    %57 = arith.divf %55, %56 : vector<4x8x16xf32>
    %58 = vector.extract_strided_slice %40 {offsets = [0, 0, 32], sizes = [4, 8, 16], strides = [1, 1, 1]} : vector<4x8x48xf32> to vector<4x8x16xf32>
    %59 = vector.extract_strided_slice %41 {offsets = [0, 0, 32], sizes = [4, 8, 16], strides = [1, 1, 1]} : vector<4x8x48xf32> to vector<4x8x16xf32>
    %60 = vector.broadcast %2 : vector<4x1x16xf32> to vector<4x8x16xf32>
    %61 = arith.addf %59, %60 : vector<4x8x16xf32>
    %62 = arith.mulf %49, %61 : vector<4x8x16xf32>
    %63 = arith.addf %58, %62 : vector<4x8x16xf32>
    %64 = math.tanh %63 : vector<4x8x16xf32>
    %cst_29 = arith.constant 1.000000e+00 : f32
    %65 = vector.broadcast %cst_29 : f32 to vector<4x8x16xf32>
    %66 = arith.subf %65, %57 : vector<4x8x16xf32>
    %67 = arith.mulf %66, %64 : vector<4x8x16xf32>
    %68 = arith.mulf %57, %34 : vector<4x8x16xf32>
    %69 = arith.addf %67, %68 : vector<4x8x16xf32>
    "tpu.trace_start"() <{level = 10 : i32, message = "gnh,ghk->gnk"}> : () -> ()
    %cst_30 = arith.constant dense<0.000000e+00> : vector<4x8x16xf32>
    %70 = tpu.matmul %69, %1, %cst_30 {dimension_numbers = #tpu.dot_dimension_numbers<[2], [1], [1], [2], [0, 0, 0, 1, 1, 2], [0], [0]>} : vector<4x8x16xf32>, vector<4x16x16xf32>, vector<4x8x16xf32> -> vector<4x8x16xf32>
    "tpu.trace_stop"() : () -> ()
    %71 = vector.broadcast %3 : vector<4x1x16xf32> to vector<4x8x16xf32>
    %72 = arith.addf %70, %71 : vector<4x8x16xf32>
    %73 = vector.shape_cast %72 : vector<4x8x16xf32> to vector<4x1x128xf32>
    %c0_31 = arith.constant 0 : index
    %c1 = arith.constant 1 : index
    %c0_32 = arith.constant 0 : index
    %74 = vector.load %arg7[%c0_31, %c1, %c0_32] : memref<4x8x128xf32, #tpu.memory_space<vmem>>, vector<4x1x128xf32>
    tpu.vector_store %arg7[%c0_31, %c1, %c0_32], %73 {strides = array<i32>} : memref<4x8x128xf32, #tpu.memory_space<vmem>>, vector<4x1x128xf32>,
    %c0_33 = arith.constant 0 : index
    %c16 = arith.constant 16 : index
    %c0_34 = arith.constant 0 : index
    %75 = vector.load %arg1[%c0_33, %c16, %c0_34] : memref<4x64x48xf32, #tpu.memory_space<vmem>>, vector<4x8x48xf32>
    "tpu.trace_start"() <{level = 10 : i32, message = "gnh,ghk->gnk"}> : () -> ()
    %cst_35 = arith.constant dense<0.000000e+00> : vector<4x8x48xf32>
    %76 = tpu.matmul %69, %0, %cst_35 {dimension_numbers = #tpu.dot_dimension_numbers<[2], [1], [1], [2], [0, 0, 0, 1, 1, 2], [0], [0]>} : vector<4x8x16xf32>, vector<4x16x48xf32>, vector<4x8x48xf32> -> vector<4x8x48xf32>
    "tpu.trace_stop"() : () -> ()
    %77 = vector.extract_strided_slice %75 {offsets = [0, 0, 0], sizes = [4, 8, 16], strides = [1, 1, 1]} : vector<4x8x48xf32> to vector<4x8x16xf32>
    %78 = vector.extract_strided_slice %76 {offsets = [0, 0, 0], sizes = [4, 8, 16], strides = [1, 1, 1]} : vector<4x8x48xf32> to vector<4x8x16xf32>
    %79 = arith.addf %77, %78 : vector<4x8x16xf32>
    %80 = arith.negf %79 : vector<4x8x16xf32>
    %81 = math.exp %80 : vector<4x8x16xf32>
    %cst_36 = arith.constant 1.000000e+00 : f32
    %82 = vector.broadcast %cst_36 : f32 to vector<4x8x16xf32>
    %83 = arith.addf %82, %81 : vector<4x8x16xf32>
    %84 = arith.divf %82, %83 : vector<4x8x16xf32>
    %85 = vector.extract_strided_slice %75 {offsets = [0, 0, 16], sizes = [4, 8, 16], strides = [1, 1, 1]} : vector<4x8x48xf32> to vector<4x8x16xf32>
    %86 = vector.extract_strided_slice %76 {offsets = [0, 0, 16], sizes = [4, 8, 16], strides = [1, 1, 1]} : vector<4x8x48xf32> to vector<4x8x16xf32>
    %87 = arith.addf %85, %86 : vector<4x8x16xf32>
    %88 = arith.negf %87 : vector<4x8x16xf32>
    %89 = math.exp %88 : vector<4x8x16xf32>
    %cst_37 = arith.constant 1.000000e+00 : f32
    %90 = vector.broadcast %cst_37 : f32 to vector<4x8x16xf32>
    %91 = arith.addf %90, %89 : vector<4x8x16xf32>
    %92 = arith.divf %90, %91 : vector<4x8x16xf32>
    %93 = vector.extract_strided_slice %75 {offsets = [0, 0, 32], sizes = [4, 8, 16], strides = [1, 1, 1]} : vector<4x8x48xf32> to vector<4x8x16xf32>
    %94 = vector.extract_strided_slice %76 {offsets = [0, 0, 32], sizes = [4, 8, 16], strides = [1, 1, 1]} : vector<4x8x48xf32> to vector<4x8x16xf32>
    %95 = vector.broadcast %2 : vector<4x1x16xf32> to vector<4x8x16xf32>
    %96 = arith.addf %94, %95 : vector<4x8x16xf32>
    %97 = arith.mulf %84, %96 : vector<4x8x16xf32>
    %98 = arith.addf %93, %97 : vector<4x8x16xf32>
    %99 = math.tanh %98 : vector<4x8x16xf32>
    %cst_38 = arith.constant 1.000000e+00 : f32
    %100 = vector.broadcast %cst_38 : f32 to vector<4x8x16xf32>
    %101 = arith.subf %100, %92 : vector<4x8x16xf32>
    %102 = arith.mulf %101, %99 : vector<4x8x16xf32>
    %103 = arith.mulf %92, %69 : vector<4x8x16xf32>
    %104 = arith.addf %102, %103 : vector<4x8x16xf32>
    "tpu.trace_start"() <{level = 10 : i32, message = "gnh,ghk->gnk"}> : () -> ()
    %cst_39 = arith.constant dense<0.000000e+00> : vector<4x8x16xf32>
    %105 = tpu.matmul %104, %1, %cst_39 {dimension_numbers = #tpu.dot_dimension_numbers<[2], [1], [1], [2], [0, 0, 0, 1, 1, 2], [0], [0]>} : vector<4x8x16xf32>, vector<4x16x16xf32>, vector<4x8x16xf32> -> vector<4x8x16xf32>
    "tpu.trace_stop"() : () -> ()
    %106 = vector.broadcast %3 : vector<4x1x16xf32> to vector<4x8x16xf32>
    %107 = arith.addf %105, %106 : vector<4x8x16xf32>
    %108 = vector.shape_cast %107 : vector<4x8x16xf32> to vector<4x1x128xf32>
    %c0_40 = arith.constant 0 : index
    %c2 = arith.constant 2 : index
    %c0_41 = arith.constant 0 : index
    %109 = vector.load %arg7[%c0_40, %c2, %c0_41] : memref<4x8x128xf32, #tpu.memory_space<vmem>>, vector<4x1x128xf32>
    tpu.vector_store %arg7[%c0_40, %c2, %c0_41], %108 {strides = array<i32>} : memref<4x8x128xf32, #tpu.memory_space<vmem>>, vector<4x1x128xf32>,
    %c0_42 = arith.constant 0 : index
    %c24 = arith.constant 24 : index
    %c0_43 = arith.constant 0 : index
    %110 = vector.load %arg1[%c0_42, %c24, %c0_43] : memref<4x64x48xf32, #tpu.memory_space<vmem>>, vector<4x8x48xf32>
    "tpu.trace_start"() <{level = 10 : i32, message = "gnh,ghk->gnk"}> : () -> ()
    %cst_44 = arith.constant dense<0.000000e+00> : vector<4x8x48xf32>
    %111 = tpu.matmul %104, %0, %cst_44 {dimension_numbers = #tpu.dot_dimension_numbers<[2], [1], [1], [2], [0, 0, 0, 1, 1, 2], [0], [0]>} : vector<4x8x16xf32>, vector<4x16x48xf32>, vector<4x8x48xf32> -> vector<4x8x48xf32>
    "tpu.trace_stop"() : () -> ()
    %112 = vector.extract_strided_slice %110 {offsets = [0, 0, 0], sizes = [4, 8, 16], strides = [1, 1, 1]} : vector<4x8x48xf32> to vector<4x8x16xf32>
    %113 = vector.extract_strided_slice %111 {offsets = [0, 0, 0], sizes = [4, 8, 16], strides = [1, 1, 1]} : vector<4x8x48xf32> to vector<4x8x16xf32>
    %114 = arith.addf %112, %113 : vector<4x8x16xf32>
    %115 = arith.negf %114 : vector<4x8x16xf32>
    %116 = math.exp %115 : vector<4x8x16xf32>
    %cst_45 = arith.constant 1.000000e+00 : f32
    %117 = vector.broadcast %cst_45 : f32 to vector<4x8x16xf32>
    %118 = arith.addf %117, %116 : vector<4x8x16xf32>
    %119 = arith.divf %117, %118 : vector<4x8x16xf32>
    %120 = vector.extract_strided_slice %110 {offsets = [0, 0, 16], sizes = [4, 8, 16], strides = [1, 1, 1]} : vector<4x8x48xf32> to vector<4x8x16xf32>
    %121 = vector.extract_strided_slice %111 {offsets = [0, 0, 16], sizes = [4, 8, 16], strides = [1, 1, 1]} : vector<4x8x48xf32> to vector<4x8x16xf32>
    %122 = arith.addf %120, %121 : vector<4x8x16xf32>
    %123 = arith.negf %122 : vector<4x8x16xf32>
    %124 = math.exp %123 : vector<4x8x16xf32>
    %cst_46 = arith.constant 1.000000e+00 : f32
    %125 = vector.broadcast %cst_46 : f32 to vector<4x8x16xf32>
    %126 = arith.addf %125, %124 : vector<4x8x16xf32>
    %127 = arith.divf %125, %126 : vector<4x8x16xf32>
    %128 = vector.extract_strided_slice %110 {offsets = [0, 0, 32], sizes = [4, 8, 16], strides = [1, 1, 1]} : vector<4x8x48xf32> to vector<4x8x16xf32>
    %129 = vector.extract_strided_slice %111 {offsets = [0, 0, 32], sizes = [4, 8, 16], strides = [1, 1, 1]} : vector<4x8x48xf32> to vector<4x8x16xf32>
    %130 = vector.broadcast %2 : vector<4x1x16xf32> to vector<4x8x16xf32>
    %131 = arith.addf %129, %130 : vector<4x8x16xf32>
    %132 = arith.mulf %119, %131 : vector<4x8x16xf32>
    %133 = arith.addf %128, %132 : vector<4x8x16xf32>
    %134 = math.tanh %133 : vector<4x8x16xf32>
    %cst_47 = arith.constant 1.000000e+00 : f32
    %135 = vector.broadcast %cst_47 : f32 to vector<4x8x16xf32>
    %136 = arith.subf %135, %127 : vector<4x8x16xf32>
    %137 = arith.mulf %136, %134 : vector<4x8x16xf32>
    %138 = arith.mulf %127, %104 : vector<4x8x16xf32>
    %139 = arith.addf %137, %138 : vector<4x8x16xf32>
    "tpu.trace_start"() <{level = 10 : i32, message = "gnh,ghk->gnk"}> : () -> ()
    %cst_48 = arith.constant dense<0.000000e+00> : vector<4x8x16xf32>
    %140 = tpu.matmul %139, %1, %cst_48 {dimension_numbers = #tpu.dot_dimension_numbers<[2], [1], [1], [2], [0, 0, 0, 1, 1, 2], [0], [0]>} : vector<4x8x16xf32>, vector<4x16x16xf32>, vector<4x8x16xf32> -> vector<4x8x16xf32>
    "tpu.trace_stop"() : () -> ()
    %141 = vector.broadcast %3 : vector<4x1x16xf32> to vector<4x8x16xf32>
    %142 = arith.addf %140, %141 : vector<4x8x16xf32>
    %143 = vector.shape_cast %142 : vector<4x8x16xf32> to vector<4x1x128xf32>
    %c0_49 = arith.constant 0 : index
    %c3 = arith.constant 3 : index
    %c0_50 = arith.constant 0 : index
    %144 = vector.load %arg7[%c0_49, %c3, %c0_50] : memref<4x8x128xf32, #tpu.memory_space<vmem>>, vector<4x1x128xf32>
    tpu.vector_store %arg7[%c0_49, %c3, %c0_50], %143 {strides = array<i32>} : memref<4x8x128xf32, #tpu.memory_space<vmem>>, vector<4x1x128xf32>,
    %c0_51 = arith.constant 0 : index
    %c32 = arith.constant 32 : index
    %c0_52 = arith.constant 0 : index
    %145 = vector.load %arg1[%c0_51, %c32, %c0_52] : memref<4x64x48xf32, #tpu.memory_space<vmem>>, vector<4x8x48xf32>
    "tpu.trace_start"() <{level = 10 : i32, message = "gnh,ghk->gnk"}> : () -> ()
    %cst_53 = arith.constant dense<0.000000e+00> : vector<4x8x48xf32>
    %146 = tpu.matmul %139, %0, %cst_53 {dimension_numbers = #tpu.dot_dimension_numbers<[2], [1], [1], [2], [0, 0, 0, 1, 1, 2], [0], [0]>} : vector<4x8x16xf32>, vector<4x16x48xf32>, vector<4x8x48xf32> -> vector<4x8x48xf32>
    "tpu.trace_stop"() : () -> ()
    %147 = vector.extract_strided_slice %145 {offsets = [0, 0, 0], sizes = [4, 8, 16], strides = [1, 1, 1]} : vector<4x8x48xf32> to vector<4x8x16xf32>
    %148 = vector.extract_strided_slice %146 {offsets = [0, 0, 0], sizes = [4, 8, 16], strides = [1, 1, 1]} : vector<4x8x48xf32> to vector<4x8x16xf32>
    %149 = arith.addf %147, %148 : vector<4x8x16xf32>
    %150 = arith.negf %149 : vector<4x8x16xf32>
    %151 = math.exp %150 : vector<4x8x16xf32>
    %cst_54 = arith.constant 1.000000e+00 : f32
    %152 = vector.broadcast %cst_54 : f32 to vector<4x8x16xf32>
    %153 = arith.addf %152, %151 : vector<4x8x16xf32>
    %154 = arith.divf %152, %153 : vector<4x8x16xf32>
    %155 = vector.extract_strided_slice %145 {offsets = [0, 0, 16], sizes = [4, 8, 16], strides = [1, 1, 1]} : vector<4x8x48xf32> to vector<4x8x16xf32>
    %156 = vector.extract_strided_slice %146 {offsets = [0, 0, 16], sizes = [4, 8, 16], strides = [1, 1, 1]} : vector<4x8x48xf32> to vector<4x8x16xf32>
    %157 = arith.addf %155, %156 : vector<4x8x16xf32>
    %158 = arith.negf %157 : vector<4x8x16xf32>
    %159 = math.exp %158 : vector<4x8x16xf32>
    %cst_55 = arith.constant 1.000000e+00 : f32
    %160 = vector.broadcast %cst_55 : f32 to vector<4x8x16xf32>
    %161 = arith.addf %160, %159 : vector<4x8x16xf32>
    %162 = arith.divf %160, %161 : vector<4x8x16xf32>
    %163 = vector.extract_strided_slice %145 {offsets = [0, 0, 32], sizes = [4, 8, 16], strides = [1, 1, 1]} : vector<4x8x48xf32> to vector<4x8x16xf32>
    %164 = vector.extract_strided_slice %146 {offsets = [0, 0, 32], sizes = [4, 8, 16], strides = [1, 1, 1]} : vector<4x8x48xf32> to vector<4x8x16xf32>
    %165 = vector.broadcast %2 : vector<4x1x16xf32> to vector<4x8x16xf32>
    %166 = arith.addf %164, %165 : vector<4x8x16xf32>
    %167 = arith.mulf %154, %166 : vector<4x8x16xf32>
    %168 = arith.addf %163, %167 : vector<4x8x16xf32>
    %169 = math.tanh %168 : vector<4x8x16xf32>
    %cst_56 = arith.constant 1.000000e+00 : f32
    %170 = vector.broadcast %cst_56 : f32 to vector<4x8x16xf32>
    %171 = arith.subf %170, %162 : vector<4x8x16xf32>
    %172 = arith.mulf %171, %169 : vector<4x8x16xf32>
    %173 = arith.mulf %162, %139 : vector<4x8x16xf32>
    %174 = arith.addf %172, %173 : vector<4x8x16xf32>
    "tpu.trace_start"() <{level = 10 : i32, message = "gnh,ghk->gnk"}> : () -> ()
    %cst_57 = arith.constant dense<0.000000e+00> : vector<4x8x16xf32>
    %175 = tpu.matmul %174, %1, %cst_57 {dimension_numbers = #tpu.dot_dimension_numbers<[2], [1], [1], [2], [0, 0, 0, 1, 1, 2], [0], [0]>} : vector<4x8x16xf32>, vector<4x16x16xf32>, vector<4x8x16xf32> -> vector<4x8x16xf32>
    "tpu.trace_stop"() : () -> ()
    %176 = vector.broadcast %3 : vector<4x1x16xf32> to vector<4x8x16xf32>
    %177 = arith.addf %175, %176 : vector<4x8x16xf32>
    %178 = vector.shape_cast %177 : vector<4x8x16xf32> to vector<4x1x128xf32>
    %c0_58 = arith.constant 0 : index
    %c4 = arith.constant 4 : index
    %c0_59 = arith.constant 0 : index
    %179 = vector.load %arg7[%c0_58, %c4, %c0_59] : memref<4x8x128xf32, #tpu.memory_space<vmem>>, vector<4x1x128xf32>
    tpu.vector_store %arg7[%c0_58, %c4, %c0_59], %178 {strides = array<i32>} : memref<4x8x128xf32, #tpu.memory_space<vmem>>, vector<4x1x128xf32>,
    %c0_60 = arith.constant 0 : index
    %c40 = arith.constant 40 : index
    %c0_61 = arith.constant 0 : index
    %180 = vector.load %arg1[%c0_60, %c40, %c0_61] : memref<4x64x48xf32, #tpu.memory_space<vmem>>, vector<4x8x48xf32>
    "tpu.trace_start"() <{level = 10 : i32, message = "gnh,ghk->gnk"}> : () -> ()
    %cst_62 = arith.constant dense<0.000000e+00> : vector<4x8x48xf32>
    %181 = tpu.matmul %174, %0, %cst_62 {dimension_numbers = #tpu.dot_dimension_numbers<[2], [1], [1], [2], [0, 0, 0, 1, 1, 2], [0], [0]>} : vector<4x8x16xf32>, vector<4x16x48xf32>, vector<4x8x48xf32> -> vector<4x8x48xf32>
    "tpu.trace_stop"() : () -> ()
    %182 = vector.extract_strided_slice %180 {offsets = [0, 0, 0], sizes = [4, 8, 16], strides = [1, 1, 1]} : vector<4x8x48xf32> to vector<4x8x16xf32>
    %183 = vector.extract_strided_slice %181 {offsets = [0, 0, 0], sizes = [4, 8, 16], strides = [1, 1, 1]} : vector<4x8x48xf32> to vector<4x8x16xf32>
    %184 = arith.addf %182, %183 : vector<4x8x16xf32>
    %185 = arith.negf %184 : vector<4x8x16xf32>
    %186 = math.exp %185 : vector<4x8x16xf32>
    %cst_63 = arith.constant 1.000000e+00 : f32
    %187 = vector.broadcast %cst_63 : f32 to vector<4x8x16xf32>
    %188 = arith.addf %187, %186 : vector<4x8x16xf32>
    %189 = arith.divf %187, %188 : vector<4x8x16xf32>
    %190 = vector.extract_strided_slice %180 {offsets = [0, 0, 16], sizes = [4, 8, 16], strides = [1, 1, 1]} : vector<4x8x48xf32> to vector<4x8x16xf32>
    %191 = vector.extract_strided_slice %181 {offsets = [0, 0, 16], sizes = [4, 8, 16], strides = [1, 1, 1]} : vector<4x8x48xf32> to vector<4x8x16xf32>
    %192 = arith.addf %190, %191 : vector<4x8x16xf32>
    %193 = arith.negf %192 : vector<4x8x16xf32>
    %194 = math.exp %193 : vector<4x8x16xf32>
    %cst_64 = arith.constant 1.000000e+00 : f32
    %195 = vector.broadcast %cst_64 : f32 to vector<4x8x16xf32>
    %196 = arith.addf %195, %194 : vector<4x8x16xf32>
    %197 = arith.divf %195, %196 : vector<4x8x16xf32>
    %198 = vector.extract_strided_slice %180 {offsets = [0, 0, 32], sizes = [4, 8, 16], strides = [1, 1, 1]} : vector<4x8x48xf32> to vector<4x8x16xf32>
    %199 = vector.extract_strided_slice %181 {offsets = [0, 0, 32], sizes = [4, 8, 16], strides = [1, 1, 1]} : vector<4x8x48xf32> to vector<4x8x16xf32>
    %200 = vector.broadcast %2 : vector<4x1x16xf32> to vector<4x8x16xf32>
    %201 = arith.addf %199, %200 : vector<4x8x16xf32>
    %202 = arith.mulf %189, %201 : vector<4x8x16xf32>
    %203 = arith.addf %198, %202 : vector<4x8x16xf32>
    %204 = math.tanh %203 : vector<4x8x16xf32>
    %cst_65 = arith.constant 1.000000e+00 : f32
    %205 = vector.broadcast %cst_65 : f32 to vector<4x8x16xf32>
    %206 = arith.subf %205, %197 : vector<4x8x16xf32>
    %207 = arith.mulf %206, %204 : vector<4x8x16xf32>
    %208 = arith.mulf %197, %174 : vector<4x8x16xf32>
    %209 = arith.addf %207, %208 : vector<4x8x16xf32>
    "tpu.trace_start"() <{level = 10 : i32, message = "gnh,ghk->gnk"}> : () -> ()
    %cst_66 = arith.constant dense<0.000000e+00> : vector<4x8x16xf32>
    %210 = tpu.matmul %209, %1, %cst_66 {dimension_numbers = #tpu.dot_dimension_numbers<[2], [1], [1], [2], [0, 0, 0, 1, 1, 2], [0], [0]>} : vector<4x8x16xf32>, vector<4x16x16xf32>, vector<4x8x16xf32> -> vector<4x8x16xf32>
    "tpu.trace_stop"() : () -> ()
    %211 = vector.broadcast %3 : vector<4x1x16xf32> to vector<4x8x16xf32>
    %212 = arith.addf %210, %211 : vector<4x8x16xf32>
    %213 = vector.shape_cast %212 : vector<4x8x16xf32> to vector<4x1x128xf32>
    %c0_67 = arith.constant 0 : index
    %c5 = arith.constant 5 : index
    %c0_68 = arith.constant 0 : index
    %214 = vector.load %arg7[%c0_67, %c5, %c0_68] : memref<4x8x128xf32, #tpu.memory_space<vmem>>, vector<4x1x128xf32>
    tpu.vector_store %arg7[%c0_67, %c5, %c0_68], %213 {strides = array<i32>} : memref<4x8x128xf32, #tpu.memory_space<vmem>>, vector<4x1x128xf32>,
    %c0_69 = arith.constant 0 : index
    %c48 = arith.constant 48 : index
    %c0_70 = arith.constant 0 : index
    %215 = vector.load %arg1[%c0_69, %c48, %c0_70] : memref<4x64x48xf32, #tpu.memory_space<vmem>>, vector<4x8x48xf32>
    "tpu.trace_start"() <{level = 10 : i32, message = "gnh,ghk->gnk"}> : () -> ()
    %cst_71 = arith.constant dense<0.000000e+00> : vector<4x8x48xf32>
    %216 = tpu.matmul %209, %0, %cst_71 {dimension_numbers = #tpu.dot_dimension_numbers<[2], [1], [1], [2], [0, 0, 0, 1, 1, 2], [0], [0]>} : vector<4x8x16xf32>, vector<4x16x48xf32>, vector<4x8x48xf32> -> vector<4x8x48xf32>
    "tpu.trace_stop"() : () -> ()
    %217 = vector.extract_strided_slice %215 {offsets = [0, 0, 0], sizes = [4, 8, 16], strides = [1, 1, 1]} : vector<4x8x48xf32> to vector<4x8x16xf32>
    %218 = vector.extract_strided_slice %216 {offsets = [0, 0, 0], sizes = [4, 8, 16], strides = [1, 1, 1]} : vector<4x8x48xf32> to vector<4x8x16xf32>
    %219 = arith.addf %217, %218 : vector<4x8x16xf32>
    %220 = arith.negf %219 : vector<4x8x16xf32>
    %221 = math.exp %220 : vector<4x8x16xf32>
    %cst_72 = arith.constant 1.000000e+00 : f32
    %222 = vector.broadcast %cst_72 : f32 to vector<4x8x16xf32>
    %223 = arith.addf %222, %221 : vector<4x8x16xf32>
    %224 = arith.divf %222, %223 : vector<4x8x16xf32>
    %225 = vector.extract_strided_slice %215 {offsets = [0, 0, 16], sizes = [4, 8, 16], strides = [1, 1, 1]} : vector<4x8x48xf32> to vector<4x8x16xf32>
    %226 = vector.extract_strided_slice %216 {offsets = [0, 0, 16], sizes = [4, 8, 16], strides = [1, 1, 1]} : vector<4x8x48xf32> to vector<4x8x16xf32>
    %227 = arith.addf %225, %226 : vector<4x8x16xf32>
    %228 = arith.negf %227 : vector<4x8x16xf32>
    %229 = math.exp %228 : vector<4x8x16xf32>
    %cst_73 = arith.constant 1.000000e+00 : f32
    %230 = vector.broadcast %cst_73 : f32 to vector<4x8x16xf32>
    %231 = arith.addf %230, %229 : vector<4x8x16xf32>
    %232 = arith.divf %230, %231 : vector<4x8x16xf32>
    %233 = vector.extract_strided_slice %215 {offsets = [0, 0, 32], sizes = [4, 8, 16], strides = [1, 1, 1]} : vector<4x8x48xf32> to vector<4x8x16xf32>
    %234 = vector.extract_strided_slice %216 {offsets = [0, 0, 32], sizes = [4, 8, 16], strides = [1, 1, 1]} : vector<4x8x48xf32> to vector<4x8x16xf32>
    %235 = vector.broadcast %2 : vector<4x1x16xf32> to vector<4x8x16xf32>
    %236 = arith.addf %234, %235 : vector<4x8x16xf32>
    %237 = arith.mulf %224, %236 : vector<4x8x16xf32>
    %238 = arith.addf %233, %237 : vector<4x8x16xf32>
    %239 = math.tanh %238 : vector<4x8x16xf32>
    %cst_74 = arith.constant 1.000000e+00 : f32
    %240 = vector.broadcast %cst_74 : f32 to vector<4x8x16xf32>
    %241 = arith.subf %240, %232 : vector<4x8x16xf32>
    %242 = arith.mulf %241, %239 : vector<4x8x16xf32>
    %243 = arith.mulf %232, %209 : vector<4x8x16xf32>
    %244 = arith.addf %242, %243 : vector<4x8x16xf32>
    "tpu.trace_start"() <{level = 10 : i32, message = "gnh,ghk->gnk"}> : () -> ()
    %cst_75 = arith.constant dense<0.000000e+00> : vector<4x8x16xf32>
    %245 = tpu.matmul %244, %1, %cst_75 {dimension_numbers = #tpu.dot_dimension_numbers<[2], [1], [1], [2], [0, 0, 0, 1, 1, 2], [0], [0]>} : vector<4x8x16xf32>, vector<4x16x16xf32>, vector<4x8x16xf32> -> vector<4x8x16xf32>
    "tpu.trace_stop"() : () -> ()
    %246 = vector.broadcast %3 : vector<4x1x16xf32> to vector<4x8x16xf32>
    %247 = arith.addf %245, %246 : vector<4x8x16xf32>
    %248 = vector.shape_cast %247 : vector<4x8x16xf32> to vector<4x1x128xf32>
    %c0_76 = arith.constant 0 : index
    %c6 = arith.constant 6 : index
    %c0_77 = arith.constant 0 : index
    %249 = vector.load %arg7[%c0_76, %c6, %c0_77] : memref<4x8x128xf32, #tpu.memory_space<vmem>>, vector<4x1x128xf32>
    tpu.vector_store %arg7[%c0_76, %c6, %c0_77], %248 {strides = array<i32>} : memref<4x8x128xf32, #tpu.memory_space<vmem>>, vector<4x1x128xf32>,
    %c0_78 = arith.constant 0 : index
    %c56 = arith.constant 56 : index
    %c0_79 = arith.constant 0 : index
    %250 = vector.load %arg1[%c0_78, %c56, %c0_79] : memref<4x64x48xf32, #tpu.memory_space<vmem>>, vector<4x8x48xf32>
    "tpu.trace_start"() <{level = 10 : i32, message = "gnh,ghk->gnk"}> : () -> ()
    %cst_80 = arith.constant dense<0.000000e+00> : vector<4x8x48xf32>
    %251 = tpu.matmul %244, %0, %cst_80 {dimension_numbers = #tpu.dot_dimension_numbers<[2], [1], [1], [2], [0, 0, 0, 1, 1, 2], [0], [0]>} : vector<4x8x16xf32>, vector<4x16x48xf32>, vector<4x8x48xf32> -> vector<4x8x48xf32>
    "tpu.trace_stop"() : () -> ()
    %252 = vector.extract_strided_slice %250 {offsets = [0, 0, 0], sizes = [4, 8, 16], strides = [1, 1, 1]} : vector<4x8x48xf32> to vector<4x8x16xf32>
    %253 = vector.extract_strided_slice %251 {offsets = [0, 0, 0], sizes = [4, 8, 16], strides = [1, 1, 1]} : vector<4x8x48xf32> to vector<4x8x16xf32>
    %254 = arith.addf %252, %253 : vector<4x8x16xf32>
    %255 = arith.negf %254 : vector<4x8x16xf32>
    %256 = math.exp %255 : vector<4x8x16xf32>
    %cst_81 = arith.constant 1.000000e+00 : f32
    %257 = vector.broadcast %cst_81 : f32 to vector<4x8x16xf32>
    %258 = arith.addf %257, %256 : vector<4x8x16xf32>
    %259 = arith.divf %257, %258 : vector<4x8x16xf32>
    %260 = vector.extract_strided_slice %250 {offsets = [0, 0, 16], sizes = [4, 8, 16], strides = [1, 1, 1]} : vector<4x8x48xf32> to vector<4x8x16xf32>
    %261 = vector.extract_strided_slice %251 {offsets = [0, 0, 16], sizes = [4, 8, 16], strides = [1, 1, 1]} : vector<4x8x48xf32> to vector<4x8x16xf32>
    %262 = arith.addf %260, %261 : vector<4x8x16xf32>
    %263 = arith.negf %262 : vector<4x8x16xf32>
    %264 = math.exp %263 : vector<4x8x16xf32>
    %cst_82 = arith.constant 1.000000e+00 : f32
    %265 = vector.broadcast %cst_82 : f32 to vector<4x8x16xf32>
    %266 = arith.addf %265, %264 : vector<4x8x16xf32>
    %267 = arith.divf %265, %266 : vector<4x8x16xf32>
    %268 = vector.extract_strided_slice %250 {offsets = [0, 0, 32], sizes = [4, 8, 16], strides = [1, 1, 1]} : vector<4x8x48xf32> to vector<4x8x16xf32>
    %269 = vector.extract_strided_slice %251 {offsets = [0, 0, 32], sizes = [4, 8, 16], strides = [1, 1, 1]} : vector<4x8x48xf32> to vector<4x8x16xf32>
    %270 = vector.broadcast %2 : vector<4x1x16xf32> to vector<4x8x16xf32>
    %271 = arith.addf %269, %270 : vector<4x8x16xf32>
    %272 = arith.mulf %259, %271 : vector<4x8x16xf32>
    %273 = arith.addf %268, %272 : vector<4x8x16xf32>
    %274 = math.tanh %273 : vector<4x8x16xf32>
    %cst_83 = arith.constant 1.000000e+00 : f32
    %275 = vector.broadcast %cst_83 : f32 to vector<4x8x16xf32>
    %276 = arith.subf %275, %267 : vector<4x8x16xf32>
    %277 = arith.mulf %276, %274 : vector<4x8x16xf32>
    %278 = arith.mulf %267, %244 : vector<4x8x16xf32>
    %279 = arith.addf %277, %278 : vector<4x8x16xf32>
    "tpu.trace_start"() <{level = 10 : i32, message = "gnh,ghk->gnk"}> : () -> ()
    %cst_84 = arith.constant dense<0.000000e+00> : vector<4x8x16xf32>
    %280 = tpu.matmul %279, %1, %cst_84 {dimension_numbers = #tpu.dot_dimension_numbers<[2], [1], [1], [2], [0, 0, 0, 1, 1, 2], [0], [0]>} : vector<4x8x16xf32>, vector<4x16x16xf32>, vector<4x8x16xf32> -> vector<4x8x16xf32>
    "tpu.trace_stop"() : () -> ()
    %281 = vector.broadcast %3 : vector<4x1x16xf32> to vector<4x8x16xf32>
    %282 = arith.addf %280, %281 : vector<4x8x16xf32>
    %283 = vector.shape_cast %282 : vector<4x8x16xf32> to vector<4x1x128xf32>
    %c0_85 = arith.constant 0 : index
    %c7 = arith.constant 7 : index
    %c0_86 = arith.constant 0 : index
    %284 = vector.load %arg7[%c0_85, %c7, %c0_86] : memref<4x8x128xf32, #tpu.memory_space<vmem>>, vector<4x1x128xf32>
    tpu.vector_store %arg7[%c0_85, %c7, %c0_86], %283 {strides = array<i32>} : memref<4x8x128xf32, #tpu.memory_space<vmem>>, vector<4x1x128xf32>,
    %c0_87 = arith.constant 0 : index
    %c0_88 = arith.constant 0 : index
    %c0_89 = arith.constant 0 : index
    %285 = vector.load %arg8[%c0_87, %c0_88, %c0_89] : memref<4x8x16xf32, #tpu.memory_space<vmem>>, vector<4x8x16xf32>
    tpu.vector_store %arg8[%c0_87, %c0_88, %c0_89], %279 {strides = array<i32>} : memref<4x8x16xf32, #tpu.memory_space<vmem>>, vector<4x8x16xf32>,
    return
  }
  func.func @transform_0(%arg0: i32) -> (i32, i32, i32) {
    %c0_i32 = arith.constant 0 : i32
    %c0_i32_0 = arith.constant 0 : i32
    %c0_i32_1 = arith.constant 0 : i32
    %c0_i32_2 = arith.constant 0 : i32
    return %c0_i32, %c0_i32_0, %c0_i32_1 : i32, i32, i32
  }
  func.func @transform_1(%arg0: i32) -> (i32, i32, i32) {
    %c0_i32 = arith.constant 0 : i32
    %c0_i32_0 = arith.constant 0 : i32
    %c0_i32_1 = arith.constant 0 : i32
    %c0_i32_2 = arith.constant 0 : i32
    return %c0_i32, %c0_i32_0, %c0_i32_1 : i32, i32, i32
  }
  func.func @transform_2(%arg0: i32) -> (i32, i32, i32) {
    %c0_i32 = arith.constant 0 : i32
    %c0_i32_0 = arith.constant 0 : i32
    %c0_i32_1 = arith.constant 0 : i32
    %c0_i32_2 = arith.constant 0 : i32
    return %c0_i32, %c0_i32_0, %c0_i32_1 : i32, i32, i32
  }
  func.func @transform_3(%arg0: i32) -> (i32, i32, i32) {
    %c0_i32 = arith.constant 0 : i32
    %c0_i32_0 = arith.constant 0 : i32
    %c0_i32_1 = arith.constant 0 : i32
    %c0_i32_2 = arith.constant 0 : i32
    return %c0_i32, %c0_i32_0, %c0_i32_1 : i32, i32, i32
  }
  func.func @transform_4(%arg0: i32) -> (i32, i32, i32) {
    %c0_i32 = arith.constant 0 : i32
    %c0_i32_0 = arith.constant 0 : i32
    %c0_i32_1 = arith.constant 0 : i32
    %c0_i32_2 = arith.constant 0 : i32
    return %c0_i32, %c0_i32_0, %c0_i32_1 : i32, i32, i32
  }
  func.func @transform_5(%arg0: i32) -> (i32, i32, i32) {
    %c0_i32 = arith.constant 0 : i32
    %c0_i32_0 = arith.constant 0 : i32
    %c0_i32_1 = arith.constant 0 : i32
    %c0_i32_2 = arith.constant 0 : i32
    return %c0_i32, %c0_i32_0, %c0_i32_1 : i32, i32, i32
  }
  func.func @transform_6(%arg0: i32) -> (i32, i32, i32) {
    %c0_i32 = arith.constant 0 : i32
    %c0_i32_0 = arith.constant 0 : i32
    %c0_i32_1 = arith.constant 0 : i32
    %c0_i32_2 = arith.constant 0 : i32
    return %c0_i32, %c0_i32_0, %c0_i32_1 : i32, i32, i32
  }
  func.func @transform_7(%arg0: i32) -> (i32, i32, i32) {
    %c0_i32 = arith.constant 0 : i32
    %c0_i32_0 = arith.constant 0 : i32
    %c0_i32_1 = arith.constant 0 : i32
    %c0_i32_2 = arith.constant 0 : i32
    return %c0_i32, %c0_i32_0, %c0_i32_1 : i32, i32, i32
  }
}

</mosaic_0001>

<llo_original>
// kernel: tpu_custom_call.1
$region0: #{tpu_custom_call.1}
  #allocation0 [shape = 'u32[]', space=smem, size = 0x4, offset = 0x4, fixed_abs, tag = 'smem constant byte address 0x4 - core index']
  #allocation1 [shape = 'u32[72,128]{1,0:T(1,128)}', space=vmem, size = 0x9000, scoped, tag = 'internal scratch']
  %s0 = inlined_call_operand.vmem [shape: f32[4,64,48], index: 0, kind: input, shape index: {}]
  %s1 = inlined_call_operand.vmem [shape: f32[4,8,16], index: 1, kind: input, shape index: {}]
  %s2 = inlined_call_operand.vmem [shape: f32[4,16,48], index: 2, kind: input, shape index: {}]
  %s3 = inlined_call_operand.vmem [shape: f32[4,1,16], index: 3, kind: input, shape index: {}]
  %s4 = inlined_call_operand.vmem [shape: f32[4,16,16], index: 4, kind: input, shape index: {}]
  %s5 = inlined_call_operand.vmem [shape: f32[4,1,16], index: 5, kind: input, shape index: {}]
  %s6 = inlined_call_operand.hbm [shape: f32[4,8,128], index: 6, kind: output, shape index: {0}]
  %s7 = inlined_call_operand.hbm [shape: f32[4,8,16], index: 7, kind: output, shape index: {1}]
  %8 = xla_tuple %s6, %s7
  %s9 = sld [smem:[#allocation0]]
  $region42: #{tpu_custom_call.1} parent=0
    _
  %s11 = ssub.s32 1, %s9
  %s12 = scalar_select 0, %s11, %s9
  $region1: #{tpu_custom_call.1} parent=0
    #allocation2 [shape = 'u8[16384]{0}', space=vmem, size = 0x4000, scoped, tag = 'output window, operand 0, single buffered']
    #allocation3 [shape = 's32[1]{0}', space=sflag, size = 0x4, scoped, tag = 'scoped memory for tpu_custom_call.1']
    #allocation4 [shape = 'u8[16384]{0}', space=vmem, size = 0x4000, scoped, tag = 'output window, operand 1, single buffered']
    #allocation5 [shape = 's32[1]{0}', space=sflag, size = 0x4, scoped, tag = 'scoped memory for tpu_custom_call.1']
    %13 = vsyncpa [#allocation3], 0
    %14 = vsyncpa [#allocation5], 0
    // Predicated region
    $region2: #{tpu_custom_call.1} parent=1 // pred_check
      _
    $region3: #{tpu_custom_call.1} parent=1 // pred_check_branch
      %16 = sbr.rel (0) target = $region5
    $region4: #{tpu_custom_call.1} parent=1 // pred_region
      _
    $region5: #{tpu_custom_call.1} parent=1 // pred_fallthru
      _
    // Predicated region
    $region6: #{tpu_custom_call.1} parent=1 // pred_check
      _
    $region7: #{tpu_custom_call.1} parent=1 // pred_check_branch
      %18 = sbr.rel (0) target = $region9
    $region8: #{tpu_custom_call.1} parent=1 // pred_region
      _
    $region9: #{tpu_custom_call.1} parent=1 // pred_fallthru
      _
    // Predicated region
    $region10: #{tpu_custom_call.1} parent=1 // pred_check
      _
    $region11: #{tpu_custom_call.1} parent=1 // pred_check_branch
      %20 = sbr.rel (0) target = $region13
    $region12: #{tpu_custom_call.1} parent=1 // pred_region
      _
    $region13: #{tpu_custom_call.1} parent=1 // pred_fallthru
      _
    // Predicated region
    $region14: #{tpu_custom_call.1} parent=1 // pred_check
      _
    $region15: #{tpu_custom_call.1} parent=1 // pred_check_branch
      %22 = sbr.rel (0) target = $region17
    $region16: #{tpu_custom_call.1} parent=1 // pred_region
      _
    $region17: #{tpu_custom_call.1} parent=1 // pred_fallthru
      _
    // Predicated region
    $region18: #{tpu_custom_call.1} parent=1 // pred_check
      _
    $region19: #{tpu_custom_call.1} parent=1 // pred_check_branch
      %24 = sbr.rel (0) target = $region21
    $region20: #{tpu_custom_call.1} parent=1 // pred_region
      _
    $region21: #{tpu_custom_call.1} parent=1 // pred_fallthru
      _
    // Predicated region
    $region22: #{tpu_custom_call.1} parent=1 // pred_check
      _
    $region23: #{tpu_custom_call.1} parent=1 // pred_check_branch
      %26 = sbr.rel (0) target = $region25
    $region24: #{tpu_custom_call.1} parent=1 // pred_region
      _
    $region25: #{tpu_custom_call.1} parent=1 // pred_fallthru
      _
    %v27 = vld [vmem:[%s2] sm:$0xff]
    %v28 = vld [vmem:[%s2 + $0x8] sm:$0xff]
    %v29 = vld [vmem:[%s2 + $0x10] sm:$0xff]
    %v30 = vld [vmem:[%s2 + $0x18] sm:$0xff]
    %v31 = vld [vmem:[%s2 + $0x20] sm:$0xff]
    %v32 = vld [vmem:[%s2 + $0x28] sm:$0xff]
    %v33 = vld [vmem:[%s2 + $0x30] sm:$0xff]
    %v34 = vld [vmem:[%s2 + $0x38] sm:$0xff]
    %v35 = vld [vmem:[%s4] sm:$0xff]
    %v36 = vld [vmem:[%s4 + $0x8] sm:$0xff]
    %v37 = vld [vmem:[%s4 + $0x10] sm:$0xff]
    %v38 = vld [vmem:[%s4 + $0x18] sm:$0xff]
    %v39 = vld [vmem:[%s4 + $0x20] sm:$0xff]
    %v40 = vld [vmem:[%s4 + $0x28] sm:$0xff]
    %v41 = vld [vmem:[%s4 + $0x30] sm:$0xff]
    %v42 = vld [vmem:[%s4 + $0x38] sm:$0xff]
    %v43 = vld [vmem:[%s3] sm:$0x1]
    %v44 = vld [vmem:[%s3 + $0x1] sm:$0x1]
    %v45 = vld [vmem:[%s3 + $0x2] sm:$0x1]
    %v46 = vld [vmem:[%s3 + $0x3] sm:$0x1]
    %v47 = vld [vmem:[%s5] sm:$0x1]
    %v48 = vld [vmem:[%s5 + $0x1] sm:$0x1]
    %v49 = vld [vmem:[%s5 + $0x2] sm:$0x1]
    %v50 = vld [vmem:[%s5 + $0x3] sm:$0x1]
    %v51 = vld [vmem:[%s1] sm:$0xff]
    %v52 = vld [vmem:[%s1 + $0x8] sm:$0xff]
    %v53 = vld [vmem:[%s1 + $0x10] sm:$0xff]
    %v54 = vld [vmem:[%s1 + $0x18] sm:$0xff]
    %v55 = vld [vmem:[%s0] sm:$0xff]
    %v56 = vld [vmem:[%s0 + $0x40] sm:$0xff]
    %v57 = vld [vmem:[%s0 + $0x80] sm:$0xff]
    %v58 = vld [vmem:[%s0 + $0xc0] sm:$0xff]
    %vm59 = vcmask 130048
    %v61 = vsel %vm59, %v51, 0
    %63 = vmatpush.msra.mxu0 0.0
    %64 = vmatpush.msra.mxu0 0.0
    %65 = vmatpush.msra.mxu0 0.0
    %66 = vmatpush.msra.mxu0 0.0
    %67 = vmatpush.msra.mxu0 0.0
    %68 = vmatpush.msra.mxu0 0.0
    %69 = vmatpush.msra.mxu0 0.0
    %70 = vmatpush.msra.mxu0 0.0
    %71 = vmatpush.msra.mxu0 0.0
    %72 = vmatpush.msra.mxu0 0.0
    %73 = vmatpush.msra.mxu0 0.0
    %74 = vmatpush.msra.mxu0 0.0
    %75 = vmatpush.msra.mxu0 0.0
    %76 = vmatpush.msra.mxu0 0.0
    %77 = vmatpush.msra.mxu0 %v28
    %78 = vmatpush.msra.mxu0 %v27
    %79 = vmatmul.f32.gmra.mxu0 %v61
    %v80 = vpop.f32.mrf.mxu0
    %v81 = vadd.f32 0.0, %v80
    %82 = vdwg.mxu0
    %v84 = vsel %vm59, %v52, 0
    %86 = vmatpush.msra.mxu0 0.0
    %87 = vmatpush.msra.mxu0 0.0
    %88 = vmatpush.msra.mxu0 0.0
    %89 = vmatpush.msra.mxu0 0.0
    %90 = vmatpush.msra.mxu0 0.0
    %91 = vmatpush.msra.mxu0 0.0
    %92 = vmatpush.msra.mxu0 0.0
    %93 = vmatpush.msra.mxu0 0.0
    %94 = vmatpush.msra.mxu0 0.0
    %95 = vmatpush.msra.mxu0 0.0
    %96 = vmatpush.msra.mxu0 0.0
    %97 = vmatpush.msra.mxu0 0.0
    %98 = vmatpush.msra.mxu0 0.0
    %99 = vmatpush.msra.mxu0 0.0
    %100 = vmatpush.msra.mxu0 %v30
    %101 = vmatpush.msra.mxu0 %v29
    %102 = vmatmul.f32.gmra.mxu0 %v84
    %v103 = vpop.f32.mrf.mxu0
    %v104 = vadd.f32 0.0, %v103
    %105 = vdwg.mxu0
    %v107 = vsel %vm59, %v53, 0
    %109 = vmatpush.msra.mxu0 0.0
    %110 = vmatpush.msra.mxu0 0.0
    %111 = vmatpush.msra.mxu0 0.0
    %112 = vmatpush.msra.mxu0 0.0
    %113 = vmatpush.msra.mxu0 0.0
    %114 = vmatpush.msra.mxu0 0.0
    %115 = vmatpush.msra.mxu0 0.0
    %116 = vmatpush.msra.mxu0 0.0
    %117 = vmatpush.msra.mxu0 0.0
    %118 = vmatpush.msra.mxu0 0.0
    %119 = vmatpush.msra.mxu0 0.0
    %120 = vmatpush.msra.mxu0 0.0
    %121 = vmatpush.msra.mxu0 0.0
    %122 = vmatpush.msra.mxu0 0.0
    %123 = vmatpush.msra.mxu0 %v32
    %124 = vmatpush.msra.mxu0 %v31
    %125 = vmatmul.f32.gmra.mxu0 %v107
    %v126 = vpop.f32.mrf.mxu0
    %v127 = vadd.f32 0.0, %v126
    %128 = vdwg.mxu0
    %v130 = vsel %vm59, %v54, 0
    %132 = vmatpush.msra.mxu0 0.0
    %133 = vmatpush.msra.mxu0 0.0
    %134 = vmatpush.msra.mxu0 0.0
    %135 = vmatpush.msra.mxu0 0.0
    %136 = vmatpush.msra.mxu0 0.0
    %137 = vmatpush.msra.mxu0 0.0
    %138 = vmatpush.msra.mxu0 0.0
    %139 = vmatpush.msra.mxu0 0.0
    %140 = vmatpush.msra.mxu0 0.0
    %141 = vmatpush.msra.mxu0 0.0
    %142 = vmatpush.msra.mxu0 0.0
    %143 = vmatpush.msra.mxu0 0.0
    %144 = vmatpush.msra.mxu0 0.0
    %145 = vmatpush.msra.mxu0 0.0
    %146 = vmatpush.msra.mxu0 %v34
    %147 = vmatpush.msra.mxu0 %v33
    %148 = vmatmul.f32.gmra.mxu0 %v130
    %v149 = vpop.f32.mrf.mxu0
    %v150 = vadd.f32 0.0, %v149
    %151 = vdwg.mxu0
    %v152 = vadd.f32 %v55, %v81
    %v153 = vadd.f32 %v56, %v104
    %v154 = vadd.f32 %v57, %v127
    %v155 = vadd.f32 %v58, %v150
    %v156 = vxor.u32 %v152, 2147483648
    %v157 = vxor.u32 %v153, 2147483648
    %v158 = vxor.u32 %v154, 2147483648
    %v159 = vxor.u32 %v155, 2147483648
    %v160 = vmul.f32 %v156, 1.442695
    %v161 = vpow.pop %v160
    %v162 = vmul.f32 %v157, 1.442695
    %v163 = vpow.pop %v162
    %v164 = vmul.f32 %v158, 1.442695
    %v165 = vpow.pop %v164
    %v166 = vmul.f32 %v159, 1.442695
    %v167 = vpow.pop %v166
    %v168 = vadd.f32 %v161, 1.0
    %v169 = vadd.f32 %v163, 1.0
    %v170 = vadd.f32 %v165, 1.0
    %v171 = vadd.f32 %v167, 1.0
    %v172 = vrcp.pop %v168
    %v173 = vmul.f32 %v168, %v172
    %v174 = vsub.f32 1.0, %v173
    %v175 = vmul.f32 %v172, %v174
    %v176 = vadd.f32 %v172, %v175
    %vm177 = vweird.f32 %v168
    %vm178 = vweird.f32 %v172
    %vm179 = vmor %vm177, %vm178
    %v180 = vsel %vm179, %v172, %v176
    %v181 = vand.u32 2147483647, %v168
    %vm182 = vcmp.eq.f32.partialorder %v181, 8.507059e+37
    %v183 = vand.u32 %v168, 2147483648
    %v184 = vor.u32 1.1754944e-38, %v183
    %v185 = vsel %vm182, %v184, %v180
    %v186 = vmul.f32 1.0, %v185
    %v187 = vrcp.pop %v169
    %v188 = vmul.f32 %v169, %v187
    %v189 = vsub.f32 1.0, %v188
    %v190 = vmul.f32 %v187, %v189
    %v191 = vadd.f32 %v187, %v190
    %vm192 = vweird.f32 %v169
    %vm193 = vweird.f32 %v187
    %vm194 = vmor %vm192, %vm193
    %v195 = vsel %vm194, %v187, %v191
    %v196 = vand.u32 2147483647, %v169
    %vm197 = vcmp.eq.f32.partialorder %v196, 8.507059e+37
    %v198 = vand.u32 %v169, 2147483648
    %v199 = vor.u32 1.1754944e-38, %v198
    %v200 = vsel %vm197, %v199, %v195
    %v201 = vmul.f32 1.0, %v200
    %v202 = vrcp.pop %v170
    %v203 = vmul.f32 %v170, %v202
    %v204 = vsub.f32 1.0, %v203
    %v205 = vmul.f32 %v202, %v204
    %v206 = vadd.f32 %v202, %v205
    %vm207 = vweird.f32 %v170
    %vm208 = vweird.f32 %v202
    %vm209 = vmor %vm207, %vm208
    %v210 = vsel %vm209, %v202, %v206
    %v211 = vand.u32 2147483647, %v170
    %vm212 = vcmp.eq.f32.partialorder %v211, 8.507059e+37
    %v213 = vand.u32 %v170, 2147483648
    %v214 = vor.u32 1.1754944e-38, %v213
    %v215 = vsel %vm212, %v214, %v210
    %v216 = vmul.f32 1.0, %v215
    %v217 = vrcp.pop %v171
    %v218 = vmul.f32 %v171, %v217
    %v219 = vsub.f32 1.0, %v218
    %v220 = vmul.f32 %v217, %v219
    %v221 = vadd.f32 %v217, %v220
    %vm222 = vweird.f32 %v171
    %vm223 = vweird.f32 %v217
    %vm224 = vmor %vm222, %vm223
    %v225 = vsel %vm224, %v217, %v221
    %v226 = vand.u32 2147483647, %v171
    %vm227 = vcmp.eq.f32.partialorder %v226, 8.507059e+37
    %v228 = vand.u32 %v171, 2147483648
    %v229 = vor.u32 1.1754944e-38, %v228
    %v230 = vsel %vm227, %v229, %v225
    %v231 = vmul.f32 1.0, %v230
    %v236 = vperm.slane %v43, 0
    %v237 = vperm.slane %v44, 0
    %v238 = vperm.slane %v45, 0
    %v239 = vperm.slane %v46, 0
    %240 = vrot.lane.b32.xlu0 %v236, 32
    %v241 = vpop.permute.xlu0 %240
    %242 = vrot.lane.b32.xlu0 %v237, 32
    %v243 = vpop.permute.xlu0 %242
    %244 = vrot.lane.b32.xlu0 %v238, 32
    %v245 = vpop.permute.xlu0 %244
    %246 = vrot.lane.b32.xlu0 %v239, 32
    %v247 = vpop.permute.xlu0 %246
    %v252 = vadd.f32 %v81, %v241
    %v253 = vadd.f32 %v104, %v243
    %v254 = vadd.f32 %v127, %v245
    %v255 = vadd.f32 %v150, %v247
    %260 = vrot.lane.b32.xlu0 %v252, 96
    %v261 = vpop.permute.xlu0 %260
    %262 = vrot.lane.b32.xlu0 %v253, 96
    %v263 = vpop.permute.xlu0 %262
    %264 = vrot.lane.b32.xlu0 %v254, 96
    %v265 = vpop.permute.xlu0 %264
    %266 = vrot.lane.b32.xlu0 %v255, 96
    %v267 = vpop.permute.xlu0 %266
    %v272 = vmul.f32 %v186, %v261
    %v273 = vmul.f32 %v201, %v263
    %v274 = vmul.f32 %v216, %v265
    %v275 = vmul.f32 %v231, %v267
    %280 = vrot.lane.b32.xlu0 %v272, 32
    %v281 = vpop.permute.xlu0 %280
    %282 = vrot.lane.b32.xlu0 %v273, 32
    %v283 = vpop.permute.xlu0 %282
    %284 = vrot.lane.b32.xlu0 %v274, 32
    %v285 = vpop.permute.xlu0 %284
    %286 = vrot.lane.b32.xlu0 %v275, 32
    %v287 = vpop.permute.xlu0 %286
    %v292 = vadd.f32 %v55, %v281
    %v293 = vadd.f32 %v56, %v283
    %v294 = vadd.f32 %v57, %v285
    %v295 = vadd.f32 %v58, %v287
    %v296 = vtanh.pop %v292
    %v297 = vtanh.pop %v293
    %v298 = vtanh.pop %v294
    %v299 = vtanh.pop %v295
    %v300 = vsub.f32 1.0, %v186
    %v301 = vsub.f32 1.0, %v201
    %v302 = vsub.f32 1.0, %v216
    %v303 = vsub.f32 1.0, %v231
    %308 = vrot.lane.b32.xlu0 %v296, 112
    %v309 = vpop.permute.xlu0 %308
    %310 = vrot.lane.b32.xlu0 %v297, 112
    %v311 = vpop.permute.xlu0 %310
    %312 = vrot.lane.b32.xlu0 %v298, 112
    %v313 = vpop.permute.xlu0 %312
    %314 = vrot.lane.b32.xlu0 %v299, 112
    %v315 = vpop.permute.xlu0 %314
    %v320 = vmul.f32 %v300, %v309
    %v321 = vmul.f32 %v301, %v311
    %v322 = vmul.f32 %v302, %v313
    %v323 = vmul.f32 %v303, %v315
    %324 = vrot.lane.b32.xlu0 %v51, 16
    %v325 = vpop.permute.xlu0 %324
    %326 = vrot.lane.b32.xlu0 %v52, 16
    %v327 = vpop.permute.xlu0 %326
    %328 = vrot.lane.b32.xlu0 %v53, 16
    %v329 = vpop.permute.xlu0 %328
    %330 = vrot.lane.b32.xlu0 %v54, 16
    %v331 = vpop.permute.xlu0 %330
    %v336 = vmul.f32 %v186, %v325
    %v337 = vmul.f32 %v201, %v327
    %v338 = vmul.f32 %v216, %v329
    %v339 = vmul.f32 %v231, %v331
    %v340 = vadd.f32 %v320, %v336
    %v341 = vadd.f32 %v321, %v337
    %v342 = vadd.f32 %v322, %v338
    %v343 = vadd.f32 %v323, %v339
    %v348 = vperm.slane %v47, 0
    %v349 = vperm.slane %v48, 0
    %v350 = vperm.slane %v49, 0
    %v351 = vperm.slane %v50, 0
    %357 = vrot.lane.b32.xlu0 %v340, 112
    %v358 = vpop.permute.xlu0 %357
    %v359 = vsel %vm59, %v358, 0
    %361 = vmatpush.msra.mxu0 0.0
    %362 = vmatpush.msra.mxu0 0.0
    %363 = vmatpush.msra.mxu0 0.0
    %364 = vmatpush.msra.mxu0 0.0
    %365 = vmatpush.msra.mxu0 0.0
    %366 = vmatpush.msra.mxu0 0.0
    %367 = vmatpush.msra.mxu0 0.0
    %368 = vmatpush.msra.mxu0 0.0
    %369 = vmatpush.msra.mxu0 0.0
    %370 = vmatpush.msra.mxu0 0.0
    %371 = vmatpush.msra.mxu0 0.0
    %372 = vmatpush.msra.mxu0 0.0
    %373 = vmatpush.msra.mxu0 0.0
    %374 = vmatpush.msra.mxu0 0.0
    %375 = vmatpush.msra.mxu0 %v36
    %376 = vmatpush.msra.mxu0 %v35
    %377 = vmatmul.f32.gmra.mxu0 %v359
    %v378 = vpop.f32.mrf.mxu0
    %v379 = vadd.f32 %v348, %v378
    %380 = vdwg.mxu0
    %382 = vrot.lane.b32.xlu0 %v341, 112
    %v383 = vpop.permute.xlu0 %382
    %v384 = vsel %vm59, %v383, 0
    %386 = vmatpush.msra.mxu0 0.0
    %387 = vmatpush.msra.mxu0 0.0
    %388 = vmatpush.msra.mxu0 0.0
    %389 = vmatpush.msra.mxu0 0.0
    %390 = vmatpush.msra.mxu0 0.0
    %391 = vmatpush.msra.mxu0 0.0
    %392 = vmatpush.msra.mxu0 0.0
    %393 = vmatpush.msra.mxu0 0.0
    %394 = vmatpush.msra.mxu0 0.0
    %395 = vmatpush.msra.mxu0 0.0
    %396 = vmatpush.msra.mxu0 0.0
    %397 = vmatpush.msra.mxu0 0.0
    %398 = vmatpush.msra.mxu0 0.0
    %399 = vmatpush.msra.mxu0 0.0
    %400 = vmatpush.msra.mxu0 %v38
    %401 = vmatpush.msra.mxu0 %v37
    %402 = vmatmul.f32.gmra.mxu0 %v384
    %v403 = vpop.f32.mrf.mxu0
    %v404 = vadd.f32 %v349, %v403
    %405 = vdwg.mxu0
    %407 = vrot.lane.b32.xlu0 %v342, 112
    %v408 = vpop.permute.xlu0 %407
    %v409 = vsel %vm59, %v408, 0
    %411 = vmatpush.msra.mxu0 0.0
    %412 = vmatpush.msra.mxu0 0.0
    %413 = vmatpush.msra.mxu0 0.0
    %414 = vmatpush.msra.mxu0 0.0
    %415 = vmatpush.msra.mxu0 0.0
    %416 = vmatpush.msra.mxu0 0.0
    %417 = vmatpush.msra.mxu0 0.0
    %418 = vmatpush.msra.mxu0 0.0
    %419 = vmatpush.msra.mxu0 0.0
    %420 = vmatpush.msra.mxu0 0.0
    %421 = vmatpush.msra.mxu0 0.0
    %422 = vmatpush.msra.mxu0 0.0
    %423 = vmatpush.msra.mxu0 0.0
    %424 = vmatpush.msra.mxu0 0.0
    %425 = vmatpush.msra.mxu0 %v40
    %426 = vmatpush.msra.mxu0 %v39
    %427 = vmatmul.f32.gmra.mxu0 %v409
    %v428 = vpop.f32.mrf.mxu0
    %v429 = vadd.f32 %v350, %v428
    %430 = vdwg.mxu0
    %432 = vrot.lane.b32.xlu0 %v343, 112
    %v433 = vpop.permute.xlu0 %432
    %v434 = vsel %vm59, %v433, 0
    %436 = vmatpush.msra.mxu0 0.0
    %437 = vmatpush.msra.mxu0 0.0
    %438 = vmatpush.msra.mxu0 0.0
    %439 = vmatpush.msra.mxu0 0.0
    %440 = vmatpush.msra.mxu0 0.0
    %441 = vmatpush.msra.mxu0 0.0
    %442 = vmatpush.msra.mxu0 0.0
    %443 = vmatpush.msra.mxu0 0.0
    %444 = vmatpush.msra.mxu0 0.0
    %445 = vmatpush.msra.mxu0 0.0
    %446 = vmatpush.msra.mxu0 0.0
    %447 = vmatpush.msra.mxu0 0.0
    %448 = vmatpush.msra.mxu0 0.0
    %449 = vmatpush.msra.mxu0 0.0
    %450 = vmatpush.msra.mxu0 %v42
    %451 = vmatpush.msra.mxu0 %v41
    %452 = vmatmul.f32.gmra.mxu0 %v434
    %v453 = vpop.f32.mrf.mxu0
    %v454 = vadd.f32 %v351, %v453
    %455 = vdwg.mxu0
    %v456 = vrot.slane %v379, 4
    %vm457 = vcmask 1047556
    %v458 = vsel %vm457, 0.0, %v456
    %v460 = vunpack.c.l.s4 1983009808
    %v461 = vunpack.c.0.s8 %v460
    %v462 = vperm.slane %v379, %v461
    %v464 = vunpack.c.l.s4 1983009808
    %v465 = vunpack.c.0.s8 %v464
    %v466 = vperm.slane %v458, %v465
    %v467 = vrot.slane %v462, 4
    %v468 = vsel %vm457, 0.0, %v467
    %v470 = vunpack.c.l.s4 1934713408
    %v471 = vunpack.c.0.s8 %v470
    %v472 = vperm.slane %v462, %v471
    %v474 = vunpack.c.l.s4 1934713408
    %v475 = vunpack.c.0.s8 %v474
    %v476 = vperm.slane %v468, %v475
    %v477 = vrot.slane %v466, 4
    %v478 = vsel %vm457, 0.0, %v477
    %v480 = vunpack.c.l.s4 1934713408
    %v481 = vunpack.c.0.s8 %v480
    %v482 = vperm.slane %v466, %v481
    %v484 = vunpack.c.l.s4 1934713408
    %v485 = vunpack.c.0.s8 %v484
    %v486 = vperm.slane %v478, %v485
    %v487 = vrot.slane %v472, 4
    %v488 = vsel %vm457, 0.0, %v487
    %v489 = vrot.slane %v476, 4
    %v490 = vsel %vm457, 0.0, %v489
    %v491 = vrot.slane %v482, 4
    %v492 = vsel %vm457, 0.0, %v491
    %v493 = vrot.slane %v486, 4
    %v494 = vsel %vm457, 0.0, %v493
    %v495 = vrot.slane %v404, 4
    %v496 = vsel %vm457, 0.0, %v495
    %v498 = vunpack.c.l.s4 1983009808
    %v499 = vunpack.c.0.s8 %v498
    %v500 = vperm.slane %v404, %v499
    %v502 = vunpack.c.l.s4 1983009808
    %v503 = vunpack.c.0.s8 %v502
    %v504 = vperm.slane %v496, %v503
    %v505 = vrot.slane %v500, 4
    %v506 = vsel %vm457, 0.0, %v505
    %v508 = vunpack.c.l.s4 1934713408
    %v509 = vunpack.c.0.s8 %v508
    %v510 = vperm.slane %v500, %v509
    %v512 = vunpack.c.l.s4 1934713408
    %v513 = vunpack.c.0.s8 %v512
    %v514 = vperm.slane %v506, %v513
    %v515 = vrot.slane %v504, 4
    %v516 = vsel %vm457, 0.0, %v515
    %v518 = vunpack.c.l.s4 1934713408
    %v519 = vunpack.c.0.s8 %v518
    %v520 = vperm.slane %v504, %v519
    %v522 = vunpack.c.l.s4 1934713408
    %v523 = vunpack.c.0.s8 %v522
    %v524 = vperm.slane %v516, %v523
    %v525 = vrot.slane %v510, 4
    %v526 = vsel %vm457, 0.0, %v525
    %v527 = vrot.slane %v514, 4
    %v528 = vsel %vm457, 0.0, %v527
    %v529 = vrot.slane %v520, 4
    %v530 = vsel %vm457, 0.0, %v529
    %v531 = vrot.slane %v524, 4
    %v532 = vsel %vm457, 0.0, %v531
    %v533 = vrot.slane %v429, 4
    %v534 = vsel %vm457, 0.0, %v533
    %v536 = vunpack.c.l.s4 1983009808
    %v537 = vunpack.c.0.s8 %v536
    %v538 = vperm.slane %v429, %v537
    %v540 = vunpack.c.l.s4 1983009808
    %v541 = vunpack.c.0.s8 %v540
    %v542 = vperm.slane %v534, %v541
    %v543 = vrot.slane %v538, 4
    %v544 = vsel %vm457, 0.0, %v543
    %v546 = vunpack.c.l.s4 1934713408
    %v547 = vunpack.c.0.s8 %v546
    %v548 = vperm.slane %v538, %v547
    %v550 = vunpack.c.l.s4 1934713408
    %v551 = vunpack.c.0.s8 %v550
    %v552 = vperm.slane %v544, %v551
    %v553 = vrot.slane %v542, 4
    %v554 = vsel %vm457, 0.0, %v553
    %v556 = vunpack.c.l.s4 1934713408
    %v557 = vunpack.c.0.s8 %v556
    %v558 = vperm.slane %v542, %v557
    %v560 = vunpack.c.l.s4 1934713408
    %v561 = vunpack.c.0.s8 %v560
    %v562 = vperm.slane %v554, %v561
    %v563 = vrot.slane %v548, 4
    %v564 = vsel %vm457, 0.0, %v563
    %v565 = vrot.slane %v552, 4
    %v566 = vsel %vm457, 0.0, %v565
    %v567 = vrot.slane %v558, 4
    %v568 = vsel %vm457, 0.0, %v567
    %v569 = vrot.slane %v562, 4
    %v570 = vsel %vm457, 0.0, %v569
    %v571 = vrot.slane %v454, 4
    %v572 = vsel %vm457, 0.0, %v571
    %v574 = vunpack.c.l.s4 1983009808
    %v575 = vunpack.c.0.s8 %v574
    %v576 = vperm.slane %v454, %v575
    %v578 = vunpack.c.l.s4 1983009808
    %v579 = vunpack.c.0.s8 %v578
    %v580 = vperm.slane %v572, %v579
    %v581 = vrot.slane %v576, 4
    %v582 = vsel %vm457, 0.0, %v581
    %v584 = vunpack.c.l.s4 1934713408
    %v585 = vunpack.c.0.s8 %v584
    %v586 = vperm.slane %v576, %v585
    %v588 = vunpack.c.l.s4 1934713408
    %v589 = vunpack.c.0.s8 %v588
    %v590 = vperm.slane %v582, %v589
    %v591 = vrot.slane %v580, 4
    %v592 = vsel %vm457, 0.0, %v591
    %v594 = vunpack.c.l.s4 1934713408
    %v595 = vunpack.c.0.s8 %v594
    %v596 = vperm.slane %v580, %v595
    %v598 = vunpack.c.l.s4 1934713408
    %v599 = vunpack.c.0.s8 %v598
    %v600 = vperm.slane %v592, %v599
    %v601 = vrot.slane %v586, 4
    %v602 = vsel %vm457, 0.0, %v601
    %v603 = vrot.slane %v590, 4
    %v604 = vsel %vm457, 0.0, %v603
    %v605 = vrot.slane %v596, 4
    %v606 = vsel %vm457, 0.0, %v605
    %v607 = vrot.slane %v600, 4
    %v608 = vsel %vm457, 0.0, %v607
    %613 = vrot.lane.b32.xlu0 %v488, 16
    %v614 = vpop.permute.xlu0 %613
    %615 = vrot.lane.b32.xlu0 %v526, 16
    %v616 = vpop.permute.xlu0 %615
    %617 = vrot.lane.b32.xlu0 %v564, 16
    %v618 = vpop.permute.xlu0 %617
    %619 = vrot.lane.b32.xlu0 %v602, 16
    %v620 = vpop.permute.xlu0 %619
    %629 = vrot.lane.b32.xlu0 %v476, 32
    %v630 = vpop.permute.xlu0 %629
    %631 = vrot.lane.b32.xlu0 %v514, 32
    %v632 = vpop.permute.xlu0 %631
    %633 = vrot.lane.b32.xlu0 %v552, 32
    %v634 = vpop.permute.xlu0 %633
    %635 = vrot.lane.b32.xlu0 %v590, 32
    %v636 = vpop.permute.xlu0 %635
    %645 = vrot.lane.b32.xlu0 %v490, 48
    %v646 = vpop.permute.xlu0 %645
    %647 = vrot.lane.b32.xlu0 %v528, 48
    %v648 = vpop.permute.xlu0 %647
    %649 = vrot.lane.b32.xlu0 %v566, 48
    %v650 = vpop.permute.xlu0 %649
    %651 = vrot.lane.b32.xlu0 %v604, 48
    %v652 = vpop.permute.xlu0 %651
    %661 = vrot.lane.b32.xlu0 %v482, 64
    %v662 = vpop.permute.xlu0 %661
    %663 = vrot.lane.b32.xlu0 %v520, 64
    %v664 = vpop.permute.xlu0 %663
    %665 = vrot.lane.b32.xlu0 %v558, 64
    %v666 = vpop.permute.xlu0 %665
    %667 = vrot.lane.b32.xlu0 %v596, 64
    %v668 = vpop.permute.xlu0 %667
    %677 = vrot.lane.b32.xlu0 %v492, 80
    %v678 = vpop.permute.xlu0 %677
    %679 = vrot.lane.b32.xlu0 %v530, 80
    %v680 = vpop.permute.xlu0 %679
    %681 = vrot.lane.b32.xlu0 %v568, 80
    %v682 = vpop.permute.xlu0 %681
    %683 = vrot.lane.b32.xlu0 %v606, 80
    %v684 = vpop.permute.xlu0 %683
    %693 = vrot.lane.b32.xlu0 %v486, 96
    %v694 = vpop.permute.xlu0 %693
    %695 = vrot.lane.b32.xlu0 %v524, 96
    %v696 = vpop.permute.xlu0 %695
    %697 = vrot.lane.b32.xlu0 %v562, 96
    %v698 = vpop.permute.xlu0 %697
    %699 = vrot.lane.b32.xlu0 %v600, 96
    %v700 = vpop.permute.xlu0 %699
    %709 = vrot.lane.b32.xlu0 %v494, 112
    %v710 = vpop.permute.xlu0 %709
    %711 = vrot.lane.b32.xlu0 %v532, 112
    %v712 = vpop.permute.xlu0 %711
    %713 = vrot.lane.b32.xlu0 %v570, 112
    %v714 = vpop.permute.xlu0 %713
    %715 = vrot.lane.b32.xlu0 %v608, 112
    %v716 = vpop.permute.xlu0 %715
    %v721 = vsel %vm59, %v472, %v614
    %v722 = vsel %vm59, %v510, %v616
    %v723 = vsel %vm59, %v548, %v618
    %v724 = vsel %vm59, %v586, %v620
    %vm725 = vcmask 261120
    %v726 = vsel %vm725, %v721, %v630
    %v727 = vsel %vm725, %v722, %v632
    %v728 = vsel %vm725, %v723, %v634
    %v729 = vsel %vm725, %v724, %v636
    %vm730 = vcmask 392192
    %v731 = vsel %vm730, %v726, %v646
    %v732 = vsel %vm730, %v727, %v648
    %v733 = vsel %vm730, %v728, %v650
    %v734 = vsel %vm730, %v729, %v652
    %vm735 = vcmask 523264
    %v736 = vsel %vm735, %v731, %v662
    %v737 = vsel %vm735, %v732, %v664
    %v738 = vsel %vm735, %v733, %v666
    %v739 = vsel %vm735, %v734, %v668
    %vm740 = vcmask 654336
    %v741 = vsel %vm740, %v736, %v678
    %v742 = vsel %vm740, %v737, %v680
    %v743 = vsel %vm740, %v738, %v682
    %v744 = vsel %vm740, %v739, %v684
    %vm745 = vcmask 785408
    %v746 = vsel %vm745, %v741, %v694
    %v747 = vsel %vm745, %v742, %v696
    %v748 = vsel %vm745, %v743, %v698
    %v749 = vsel %vm745, %v744, %v700
    %vm750 = vcmask 916480
    %v751 = vsel %vm750, %v746, %v710
    %v752 = vsel %vm750, %v747, %v712
    %v753 = vsel %vm750, %v748, %v714
    %v754 = vsel %vm750, %v749, %v716
    %755 = vst [vmem:[#allocation2] sm:$0x1] %v751
    %756 = vst [vmem:[#allocation2 + $0x8] sm:$0x1] %v752
    %757 = vst [vmem:[#allocation2 + $0x10] sm:$0x1] %v753
    %758 = vst [vmem:[#allocation2 + $0x18] sm:$0x1] %v754
    %v759 = vld [vmem:[%s0 + $0x8] sm:$0xff]
    %v760 = vld [vmem:[%s0 + $0x48] sm:$0xff]
    %v761 = vld [vmem:[%s0 + $0x88] sm:$0xff]
    %v762 = vld [vmem:[%s0 + $0xc8] sm:$0xff]
    %763 = vmatpush.msra.mxu0 0.0
    %764 = vmatpush.msra.mxu0 0.0
    %765 = vmatpush.msra.mxu0 0.0
    %766 = vmatpush.msra.mxu0 0.0
    %767 = vmatpush.msra.mxu0 0.0
    %768 = vmatpush.msra.mxu0 0.0
    %769 = vmatpush.msra.mxu0 0.0
    %770 = vmatpush.msra.mxu0 0.0
    %771 = vmatpush.msra.mxu0 0.0
    %772 = vmatpush.msra.mxu0 0.0
    %773 = vmatpush.msra.mxu0 0.0
    %774 = vmatpush.msra.mxu0 0.0
    %775 = vmatpush.msra.mxu0 0.0
    %776 = vmatpush.msra.mxu0 0.0
    %777 = vmatpush.msra.mxu0 %v28
    %778 = vmatpush.msra.mxu0 %v27
    %779 = vmatmul.f32.gmra.mxu0 %v359
    %v780 = vpop.f32.mrf.mxu0
    %v781 = vadd.f32 0.0, %v780
    %782 = vdwg.mxu0
    %783 = vmatpush.msra.mxu0 0.0
    %784 = vmatpush.msra.mxu0 0.0
    %785 = vmatpush.msra.mxu0 0.0
    %786 = vmatpush.msra.mxu0 0.0
    %787 = vmatpush.msra.mxu0 0.0
    %788 = vmatpush.msra.mxu0 0.0
    %789 = vmatpush.msra.mxu0 0.0
    %790 = vmatpush.msra.mxu0 0.0
    %791 = vmatpush.msra.mxu0 0.0
    %792 = vmatpush.msra.mxu0 0.0
    %793 = vmatpush.msra.mxu0 0.0
    %794 = vmatpush.msra.mxu0 0.0
    %795 = vmatpush.msra.mxu0 0.0
    %796 = vmatpush.msra.mxu0 0.0
    %797 = vmatpush.msra.mxu0 %v30
    %798 = vmatpush.msra.mxu0 %v29
    %799 = vmatmul.f32.gmra.mxu0 %v384
    %v800 = vpop.f32.mrf.mxu0
    %v801 = vadd.f32 0.0, %v800
    %802 = vdwg.mxu0
    %803 = vmatpush.msra.mxu0 0.0
    %804 = vmatpush.msra.mxu0 0.0
    %805 = vmatpush.msra.mxu0 0.0
    %806 = vmatpush.msra.mxu0 0.0
    %807 = vmatpush.msra.mxu0 0.0
    %808 = vmatpush.msra.mxu0 0.0
    %809 = vmatpush.msra.mxu0 0.0
    %810 = vmatpush.msra.mxu0 0.0
    %811 = vmatpush.msra.mxu0 0.0
    %812 = vmatpush.msra.mxu0 0.0
    %813 = vmatpush.msra.mxu0 0.0
    %814 = vmatpush.msra.mxu0 0.0
    %815 = vmatpush.msra.mxu0 0.0
    %816 = vmatpush.msra.mxu0 0.0
    %817 = vmatpush.msra.mxu0 %v32
    %818 = vmatpush.msra.mxu0 %v31
    %819 = vmatmul.f32.gmra.mxu0 %v409
    %v820 = vpop.f32.mrf.mxu0
    %v821 = vadd.f32 0.0, %v820
    %822 = vdwg.mxu0
    %823 = vmatpush.msra.mxu0 0.0
    %824 = vmatpush.msra.mxu0 0.0
    %825 = vmatpush.msra.mxu0 0.0
    %826 = vmatpush.msra.mxu0 0.0
    %827 = vmatpush.msra.mxu0 0.0
    %828 = vmatpush.msra.mxu0 0.0
    %829 = vmatpush.msra.mxu0 0.0
    %830 = vmatpush.msra.mxu0 0.0
    %831 = vmatpush.msra.mxu0 0.0
    %832 = vmatpush.msra.mxu0 0.0
    %833 = vmatpush.msra.mxu0 0.0
    %834 = vmatpush.msra.mxu0 0.0
    %835 = vmatpush.msra.mxu0 0.0
    %836 = vmatpush.msra.mxu0 0.0
    %837 = vmatpush.msra.mxu0 %v34
    %838 = vmatpush.msra.mxu0 %v33
    %839 = vmatmul.f32.gmra.mxu0 %v434
    %v840 = vpop.f32.mrf.mxu0
    %v841 = vadd.f32 0.0, %v840
    %842 = vdwg.mxu0
    %v843 = vadd.f32 %v759, %v781
    %v844 = vadd.f32 %v760, %v801
    %v845 = vadd.f32 %v761, %v821
    %v846 = vadd.f32 %v762, %v841
    %v847 = vxor.u32 %v843, 2147483648
    %v848 = vxor.u32 %v844, 2147483648
    %v849 = vxor.u32 %v845, 2147483648
    %v850 = vxor.u32 %v846, 2147483648
    %v851 = vmul.f32 %v847, 1.442695
    %v852 = vpow.pop %v851
    %v853 = vmul.f32 %v848, 1.442695
    %v854 = vpow.pop %v853
    %v855 = vmul.f32 %v849, 1.442695
    %v856 = vpow.pop %v855
    %v857 = vmul.f32 %v850, 1.442695
    %v858 = vpow.pop %v857
    %v859 = vadd.f32 %v852, 1.0
    %v860 = vadd.f32 %v854, 1.0
    %v861 = vadd.f32 %v856, 1.0
    %v862 = vadd.f32 %v858, 1.0
    %v863 = vrcp.pop %v859
    %v864 = vmul.f32 %v859, %v863
    %v865 = vsub.f32 1.0, %v864
    %v866 = vmul.f32 %v863, %v865
    %v867 = vadd.f32 %v863, %v866
    %vm868 = vweird.f32 %v859
    %vm869 = vweird.f32 %v863
    %vm870 = vmor %vm868, %vm869
    %v871 = vsel %vm870, %v863, %v867
    %v872 = vand.u32 2147483647, %v859
    %vm873 = vcmp.eq.f32.partialorder %v872, 8.507059e+37
    %v874 = vand.u32 %v859, 2147483648
    %v875 = vor.u32 1.1754944e-38, %v874
    %v876 = vsel %vm873, %v875, %v871
    %v877 = vmul.f32 1.0, %v876
    %v878 = vrcp.pop %v860
    %v879 = vmul.f32 %v860, %v878
    %v880 = vsub.f32 1.0, %v879
    %v881 = vmul.f32 %v878, %v880
    %v882 = vadd.f32 %v878, %v881
    %vm883 = vweird.f32 %v860
    %vm884 = vweird.f32 %v878
    %vm885 = vmor %vm883, %vm884
    %v886 = vsel %vm885, %v878, %v882
    %v887 = vand.u32 2147483647, %v860
    %vm888 = vcmp.eq.f32.partialorder %v887, 8.507059e+37
    %v889 = vand.u32 %v860, 2147483648
    %v890 = vor.u32 1.1754944e-38, %v889
    %v891 = vsel %vm888, %v890, %v886
    %v892 = vmul.f32 1.0, %v891
    %v893 = vrcp.pop %v861
    %v894 = vmul.f32 %v861, %v893
    %v895 = vsub.f32 1.0, %v894
    %v896 = vmul.f32 %v893, %v895
    %v897 = vadd.f32 %v893, %v896
    %vm898 = vweird.f32 %v861
    %vm899 = vweird.f32 %v893
    %vm900 = vmor %vm898, %vm899
    %v901 = vsel %vm900, %v893, %v897
    %v902 = vand.u32 2147483647, %v861
    %vm903 = vcmp.eq.f32.partialorder %v902, 8.507059e+37
    %v904 = vand.u32 %v861, 2147483648
    %v905 = vor.u32 1.1754944e-38, %v904
    %v906 = vsel %vm903, %v905, %v901
    %v907 = vmul.f32 1.0, %v906
    %v908 = vrcp.pop %v862
    %v909 = vmul.f32 %v862, %v908
    %v910 = vsub.f32 1.0, %v909
    %v911 = vmul.f32 %v908, %v910
    %v912 = vadd.f32 %v908, %v911
    %vm913 = vweird.f32 %v862
    %vm914 = vweird.f32 %v908
    %vm915 = vmor %vm913, %vm914
    %v916 = vsel %vm915, %v908, %v912
    %v917 = vand.u32 2147483647, %v862
    %vm918 = vcmp.eq.f32.partialorder %v917, 8.507059e+37
    %v919 = vand.u32 %v862, 2147483648
    %v920 = vor.u32 1.1754944e-38, %v919
    %v921 = vsel %vm918, %v920, %v916
    %v922 = vmul.f32 1.0, %v921
    %v923 = vadd.f32 %v781, %v241
    %v924 = vadd.f32 %v801, %v243
    %v925 = vadd.f32 %v821, %v245
    %v926 = vadd.f32 %v841, %v247
    %931 = vrot.lane.b32.xlu0 %v923, 96
    %v932 = vpop.permute.xlu0 %931
    %933 = vrot.lane.b32.xlu0 %v924, 96
    %v934 = vpop.permute.xlu0 %933
    %935 = vrot.lane.b32.xlu0 %v925, 96
    %v936 = vpop.permute.xlu0 %935
    %937 = vrot.lane.b32.xlu0 %v926, 96
    %v938 = vpop.permute.xlu0 %937
    %v943 = vmul.f32 %v877, %v932
    %v944 = vmul.f32 %v892, %v934
    %v945 = vmul.f32 %v907, %v936
    %v946 = vmul.f32 %v922, %v938
    %951 = vrot.lane.b32.xlu0 %v943, 32
    %v952 = vpop.permute.xlu0 %951
    %953 = vrot.lane.b32.xlu0 %v944, 32
    %v954 = vpop.permute.xlu0 %953
    %955 = vrot.lane.b32.xlu0 %v945, 32
    %v956 = vpop.permute.xlu0 %955
    %957 = vrot.lane.b32.xlu0 %v946, 32
    %v958 = vpop.permute.xlu0 %957
    %v963 = vadd.f32 %v759, %v952
    %v964 = vadd.f32 %v760, %v954
    %v965 = vadd.f32 %v761, %v956
    %v966 = vadd.f32 %v762, %v958
    %v967 = vtanh.pop %v963
    %v968 = vtanh.pop %v964
    %v969 = vtanh.pop %v965
    %v970 = vtanh.pop %v966
    %v971 = vsub.f32 1.0, %v877
    %v972 = vsub.f32 1.0, %v892
    %v973 = vsub.f32 1.0, %v907
    %v974 = vsub.f32 1.0, %v922
    %979 = vrot.lane.b32.xlu0 %v967, 112
    %v980 = vpop.permute.xlu0 %979
    %981 = vrot.lane.b32.xlu0 %v968, 112
    %v982 = vpop.permute.xlu0 %981
    %983 = vrot.lane.b32.xlu0 %v969, 112
    %v984 = vpop.permute.xlu0 %983
    %985 = vrot.lane.b32.xlu0 %v970, 112
    %v986 = vpop.permute.xlu0 %985
    %v991 = vmul.f32 %v971, %v980
    %v992 = vmul.f32 %v972, %v982
    %v993 = vmul.f32 %v973, %v984
    %v994 = vmul.f32 %v974, %v986
    %v995 = vmul.f32 %v877, %v340
    %v996 = vmul.f32 %v892, %v341
    %v997 = vmul.f32 %v907, %v342
    %v998 = vmul.f32 %v922, %v343
    %v999 = vadd.f32 %v991, %v995
    %v1000 = vadd.f32 %v992, %v996
    %v1001 = vadd.f32 %v993, %v997
    %v1002 = vadd.f32 %v994, %v998
    %1004 = vrot.lane.b32.xlu0 %v999, 112
    %v1005 = vpop.permute.xlu0 %1004
    %v1006 = vsel %vm59, %v1005, 0
    %1008 = vmatpush.msra.mxu0 0.0
    %1009 = vmatpush.msra.mxu0 0.0
    %1010 = vmatpush.msra.mxu0 0.0
    %1011 = vmatpush.msra.mxu0 0.0
    %1012 = vmatpush.msra.mxu0 0.0
    %1013 = vmatpush.msra.mxu0 0.0
    %1014 = vmatpush.msra.mxu0 0.0
    %1015 = vmatpush.msra.mxu0 0.0
    %1016 = vmatpush.msra.mxu0 0.0
    %1017 = vmatpush.msra.mxu0 0.0
    %1018 = vmatpush.msra.mxu0 0.0
    %1019 = vmatpush.msra.mxu0 0.0
    %1020 = vmatpush.msra.mxu0 0.0
    %1021 = vmatpush.msra.mxu0 0.0
    %1022 = vmatpush.msra.mxu0 %v36
    %1023 = vmatpush.msra.mxu0 %v35
    %1024 = vmatmul.f32.gmra.mxu0 %v1006
    %v1025 = vpop.f32.mrf.mxu0
    %v1026 = vadd.f32 %v348, %v1025
    %1027 = vdwg.mxu0
    %1029 = vrot.lane.b32.xlu0 %v1000, 112
    %v1030 = vpop.permute.xlu0 %1029
    %v1031 = vsel %vm59, %v1030, 0
    %1033 = vmatpush.msra.mxu0 0.0
    %1034 = vmatpush.msra.mxu0 0.0
    %1035 = vmatpush.msra.mxu0 0.0
    %1036 = vmatpush.msra.mxu0 0.0
    %1037 = vmatpush.msra.mxu0 0.0
    %1038 = vmatpush.msra.mxu0 0.0
    %1039 = vmatpush.msra.mxu0 0.0
    %1040 = vmatpush.msra.mxu0 0.0
    %1041 = vmatpush.msra.mxu0 0.0
    %1042 = vmatpush.msra.mxu0 0.0
    %1043 = vmatpush.msra.mxu0 0.0
    %1044 = vmatpush.msra.mxu0 0.0
    %1045 = vmatpush.msra.mxu0 0.0
    %1046 = vmatpush.msra.mxu0 0.0
    %1047 = vmatpush.msra.mxu0 %v38
    %1048 = vmatpush.msra.mxu0 %v37
    %1049 = vmatmul.f32.gmra.mxu0 %v1031
    %v1050 = vpop.f32.mrf.mxu0
    %v1051 = vadd.f32 %v349, %v1050
    %1052 = vdwg.mxu0
    %1054 = vrot.lane.b32.xlu0 %v1001, 112
    %v1055 = vpop.permute.xlu0 %1054
    %v1056 = vsel %vm59, %v1055, 0
    %1058 = vmatpush.msra.mxu0 0.0
    %1059 = vmatpush.msra.mxu0 0.0
    %1060 = vmatpush.msra.mxu0 0.0
    %1061 = vmatpush.msra.mxu0 0.0
    %1062 = vmatpush.msra.mxu0 0.0
    %1063 = vmatpush.msra.mxu0 0.0
    %1064 = vmatpush.msra.mxu0 0.0
    %1065 = vmatpush.msra.mxu0 0.0
    %1066 = vmatpush.msra.mxu0 0.0
    %1067 = vmatpush.msra.mxu0 0.0
    %1068 = vmatpush.msra.mxu0 0.0
    %1069 = vmatpush.msra.mxu0 0.0
    %1070 = vmatpush.msra.mxu0 0.0
    %1071 = vmatpush.msra.mxu0 0.0
    %1072 = vmatpush.msra.mxu0 %v40
    %1073 = vmatpush.msra.mxu0 %v39
    %1074 = vmatmul.f32.gmra.mxu0 %v1056
    %v1075 = vpop.f32.mrf.mxu0
    %v1076 = vadd.f32 %v350, %v1075
    %1077 = vdwg.mxu0
    %1079 = vrot.lane.b32.xlu0 %v1002, 112
    %v1080 = vpop.permute.xlu0 %1079
    %v1081 = vsel %vm59, %v1080, 0
    %1083 = vmatpush.msra.mxu0 0.0
    %1084 = vmatpush.msra.mxu0 0.0
    %1085 = vmatpush.msra.mxu0 0.0
    %1086 = vmatpush.msra.mxu0 0.0
    %1087 = vmatpush.msra.mxu0 0.0
    %1088 = vmatpush.msra.mxu0 0.0
    %1089 = vmatpush.msra.mxu0 0.0
    %1090 = vmatpush.msra.mxu0 0.0
    %1091 = vmatpush.msra.mxu0 0.0
    %1092 = vmatpush.msra.mxu0 0.0
    %1093 = vmatpush.msra.mxu0 0.0
    %1094 = vmatpush.msra.mxu0 0.0
    %1095 = vmatpush.msra.mxu0 0.0
    %1096 = vmatpush.msra.mxu0 0.0
    %1097 = vmatpush.msra.mxu0 %v42
    %1098 = vmatpush.msra.mxu0 %v41
    %1099 = vmatmul.f32.gmra.mxu0 %v1081
    %v1100 = vpop.f32.mrf.mxu0
    %v1101 = vadd.f32 %v351, %v1100
    %1102 = vdwg.mxu0
    %v1103 = vrot.slane %v1026, 4
    %v1104 = vsel %vm457, 0.0, %v1103
    %v1106 = vunpack.c.l.s4 1983009808
    %v1107 = vunpack.c.0.s8 %v1106
    %v1108 = vperm.slane %v1026, %v1107
    %v1110 = vunpack.c.l.s4 1983009808
    %v1111 = vunpack.c.0.s8 %v1110
    %v1112 = vperm.slane %v1104, %v1111
    %v1113 = vrot.slane %v1108, 4
    %v1114 = vsel %vm457, 0.0, %v1113
    %v1116 = vunpack.c.l.s4 1934713408
    %v1117 = vunpack.c.0.s8 %v1116
    %v1118 = vperm.slane %v1108, %v1117
    %v1120 = vunpack.c.l.s4 1934713408
    %v1121 = vunpack.c.0.s8 %v1120
    %v1122 = vperm.slane %v1114, %v1121
    %v1123 = vrot.slane %v1112, 4
    %v1124 = vsel %vm457, 0.0, %v1123
    %v1126 = vunpack.c.l.s4 1934713408
    %v1127 = vunpack.c.0.s8 %v1126
    %v1128 = vperm.slane %v1112, %v1127
    %v1130 = vunpack.c.l.s4 1934713408
    %v1131 = vunpack.c.0.s8 %v1130
    %v1132 = vperm.slane %v1124, %v1131
    %v1133 = vrot.slane %v1118, 4
    %v1134 = vsel %vm457, 0.0, %v1133
    %v1135 = vrot.slane %v1122, 4
    %v1136 = vsel %vm457, 0.0, %v1135
    %v1137 = vrot.slane %v1128, 4
    %v1138 = vsel %vm457, 0.0, %v1137
    %v1139 = vrot.slane %v1132, 4
    %v1140 = vsel %vm457, 0.0, %v1139
    %v1141 = vrot.slane %v1051, 4
    %v1142 = vsel %vm457, 0.0, %v1141
    %v1144 = vunpack.c.l.s4 1983009808
    %v1145 = vunpack.c.0.s8 %v1144
    %v1146 = vperm.slane %v1051, %v1145
    %v1148 = vunpack.c.l.s4 1983009808
    %v1149 = vunpack.c.0.s8 %v1148
    %v1150 = vperm.slane %v1142, %v1149
    %v1151 = vrot.slane %v1146, 4
    %v1152 = vsel %vm457, 0.0, %v1151
    %v1154 = vunpack.c.l.s4 1934713408
    %v1155 = vunpack.c.0.s8 %v1154
    %v1156 = vperm.slane %v1146, %v1155
    %v1158 = vunpack.c.l.s4 1934713408
    %v1159 = vunpack.c.0.s8 %v1158
    %v1160 = vperm.slane %v1152, %v1159
    %v1161 = vrot.slane %v1150, 4
    %v1162 = vsel %vm457, 0.0, %v1161
    %v1164 = vunpack.c.l.s4 1934713408
    %v1165 = vunpack.c.0.s8 %v1164
    %v1166 = vperm.slane %v1150, %v1165
    %v1168 = vunpack.c.l.s4 1934713408
    %v1169 = vunpack.c.0.s8 %v1168
    %v1170 = vperm.slane %v1162, %v1169
    %v1171 = vrot.slane %v1156, 4
    %v1172 = vsel %vm457, 0.0, %v1171
    %v1173 = vrot.slane %v1160, 4
    %v1174 = vsel %vm457, 0.0, %v1173
    %v1175 = vrot.slane %v1166, 4
    %v1176 = vsel %vm457, 0.0, %v1175
    %v1177 = vrot.slane %v1170, 4
    %v1178 = vsel %vm457, 0.0, %v1177
    %v1179 = vrot.slane %v1076, 4
    %v1180 = vsel %vm457, 0.0, %v1179
    %v1182 = vunpack.c.l.s4 1983009808
    %v1183 = vunpack.c.0.s8 %v1182
    %v1184 = vperm.slane %v1076, %v1183
    %v1186 = vunpack.c.l.s4 1983009808
    %v1187 = vunpack.c.0.s8 %v1186
    %v1188 = vperm.slane %v1180, %v1187
    %v1189 = vrot.slane %v1184, 4
    %v1190 = vsel %vm457, 0.0, %v1189
    %v1192 = vunpack.c.l.s4 1934713408
    %v1193 = vunpack.c.0.s8 %v1192
    %v1194 = vperm.slane %v1184, %v1193
    %v1196 = vunpack.c.l.s4 1934713408
    %v1197 = vunpack.c.0.s8 %v1196
    %v1198 = vperm.slane %v1190, %v1197
    %v1199 = vrot.slane %v1188, 4
    %v1200 = vsel %vm457, 0.0, %v1199
    %v1202 = vunpack.c.l.s4 1934713408
    %v1203 = vunpack.c.0.s8 %v1202
    %v1204 = vperm.slane %v1188, %v1203
    %v1206 = vunpack.c.l.s4 1934713408
    %v1207 = vunpack.c.0.s8 %v1206
    %v1208 = vperm.slane %v1200, %v1207
    %v1209 = vrot.slane %v1194, 4
    %v1210 = vsel %vm457, 0.0, %v1209
    %v1211 = vrot.slane %v1198, 4
    %v1212 = vsel %vm457, 0.0, %v1211
    %v1213 = vrot.slane %v1204, 4
    %v1214 = vsel %vm457, 0.0, %v1213
    %v1215 = vrot.slane %v1208, 4
    %v1216 = vsel %vm457, 0.0, %v1215
    %v1217 = vrot.slane %v1101, 4
    %v1218 = vsel %vm457, 0.0, %v1217
    %v1220 = vunpack.c.l.s4 1983009808
    %v1221 = vunpack.c.0.s8 %v1220
    %v1222 = vperm.slane %v1101, %v1221
    %v1224 = vunpack.c.l.s4 1983009808
    %v1225 = vunpack.c.0.s8 %v1224
    %v1226 = vperm.slane %v1218, %v1225
    %v1227 = vrot.slane %v1222, 4
    %v1228 = vsel %vm457, 0.0, %v1227
    %v1230 = vunpack.c.l.s4 1934713408
    %v1231 = vunpack.c.0.s8 %v1230
    %v1232 = vperm.slane %v1222, %v1231
    %v1234 = vunpack.c.l.s4 1934713408
    %v1235 = vunpack.c.0.s8 %v1234
    %v1236 = vperm.slane %v1228, %v1235
    %v1237 = vrot.slane %v1226, 4
    %v1238 = vsel %vm457, 0.0, %v1237
    %v1240 = vunpack.c.l.s4 1934713408
    %v1241 = vunpack.c.0.s8 %v1240
    %v1242 = vperm.slane %v1226, %v1241
    %v1244 = vunpack.c.l.s4 1934713408
    %v1245 = vunpack.c.0.s8 %v1244
    %v1246 = vperm.slane %v1238, %v1245
    %v1247 = vrot.slane %v1232, 4
    %v1248 = vsel %vm457, 0.0, %v1247
    %v1249 = vrot.slane %v1236, 4
    %v1250 = vsel %vm457, 0.0, %v1249
    %v1251 = vrot.slane %v1242, 4
    %v1252 = vsel %vm457, 0.0, %v1251
    %v1253 = vrot.slane %v1246, 4
    %v1254 = vsel %vm457, 0.0, %v1253
    %1259 = vrot.lane.b32.xlu0 %v1134, 16
    %v1260 = vpop.permute.xlu0 %1259
    %1261 = vrot.lane.b32.xlu0 %v1172, 16
    %v1262 = vpop.permute.xlu0 %1261
    %1263 = vrot.lane.b32.xlu0 %v1210, 16
    %v1264 = vpop.permute.xlu0 %1263
    %1265 = vrot.lane.b32.xlu0 %v1248, 16
    %v1266 = vpop.permute.xlu0 %1265
    %1275 = vrot.lane.b32.xlu0 %v1122, 32
    %v1276 = vpop.permute.xlu0 %1275
    %1277 = vrot.lane.b32.xlu0 %v1160, 32
    %v1278 = vpop.permute.xlu0 %1277
    %1279 = vrot.lane.b32.xlu0 %v1198, 32
    %v1280 = vpop.permute.xlu0 %1279
    %1281 = vrot.lane.b32.xlu0 %v1236, 32
    %v1282 = vpop.permute.xlu0 %1281
    %1291 = vrot.lane.b32.xlu0 %v1136, 48
    %v1292 = vpop.permute.xlu0 %1291
    %1293 = vrot.lane.b32.xlu0 %v1174, 48
    %v1294 = vpop.permute.xlu0 %1293
    %1295 = vrot.lane.b32.xlu0 %v1212, 48
    %v1296 = vpop.permute.xlu0 %1295
    %1297 = vrot.lane.b32.xlu0 %v1250, 48
    %v1298 = vpop.permute.xlu0 %1297
    %1307 = vrot.lane.b32.xlu0 %v1128, 64
    %v1308 = vpop.permute.xlu0 %1307
    %1309 = vrot.lane.b32.xlu0 %v1166, 64
    %v1310 = vpop.permute.xlu0 %1309
    %1311 = vrot.lane.b32.xlu0 %v1204, 64
    %v1312 = vpop.permute.xlu0 %1311
    %1313 = vrot.lane.b32.xlu0 %v1242, 64
    %v1314 = vpop.permute.xlu0 %1313
    %1323 = vrot.lane.b32.xlu0 %v1138, 80
    %v1324 = vpop.permute.xlu0 %1323
    %1325 = vrot.lane.b32.xlu0 %v1176, 80
    %v1326 = vpop.permute.xlu0 %1325
    %1327 = vrot.lane.b32.xlu0 %v1214, 80
    %v1328 = vpop.permute.xlu0 %1327
    %1329 = vrot.lane.b32.xlu0 %v1252, 80
    %v1330 = vpop.permute.xlu0 %1329
    %1339 = vrot.lane.b32.xlu0 %v1132, 96
    %v1340 = vpop.permute.xlu0 %1339
    %1341 = vrot.lane.b32.xlu0 %v1170, 96
    %v1342 = vpop.permute.xlu0 %1341
    %1343 = vrot.lane.b32.xlu0 %v1208, 96
    %v1344 = vpop.permute.xlu0 %1343
    %1345 = vrot.lane.b32.xlu0 %v1246, 96
    %v1346 = vpop.permute.xlu0 %1345
    %1355 = vrot.lane.b32.xlu0 %v1140, 112
    %v1356 = vpop.permute.xlu0 %1355
    %1357 = vrot.lane.b32.xlu0 %v1178, 112
    %v1358 = vpop.permute.xlu0 %1357
    %1359 = vrot.lane.b32.xlu0 %v1216, 112
    %v1360 = vpop.permute.xlu0 %1359
    %1361 = vrot.lane.b32.xlu0 %v1254, 112
    %v1362 = vpop.permute.xlu0 %1361
    %v1367 = vsel %vm59, %v1118, %v1260
    %v1368 = vsel %vm59, %v1156, %v1262
    %v1369 = vsel %vm59, %v1194, %v1264
    %v1370 = vsel %vm59, %v1232, %v1266
    %v1371 = vsel %vm725, %v1367, %v1276
    %v1372 = vsel %vm725, %v1368, %v1278
    %v1373 = vsel %vm725, %v1369, %v1280
    %v1374 = vsel %vm725, %v1370, %v1282
    %v1375 = vsel %vm730, %v1371, %v1292
    %v1376 = vsel %vm730, %v1372, %v1294
    %v1377 = vsel %vm730, %v1373, %v1296
    %v1378 = vsel %vm730, %v1374, %v1298
    %v1379 = vsel %vm735, %v1375, %v1308
    %v1380 = vsel %vm735, %v1376, %v1310
    %v1381 = vsel %vm735, %v1377, %v1312
    %v1382 = vsel %vm735, %v1378, %v1314
    %v1383 = vsel %vm740, %v1379, %v1324
    %v1384 = vsel %vm740, %v1380, %v1326
    %v1385 = vsel %vm740, %v1381, %v1328
    %v1386 = vsel %vm740, %v1382, %v1330
    %v1387 = vsel %vm745, %v1383, %v1340
    %v1388 = vsel %vm745, %v1384, %v1342
    %v1389 = vsel %vm745, %v1385, %v1344
    %v1390 = vsel %vm745, %v1386, %v1346
    %v1391 = vsel %vm750, %v1387, %v1356
    %v1392 = vsel %vm750, %v1388, %v1358
    %v1393 = vsel %vm750, %v1389, %v1360
    %v1394 = vsel %vm750, %v1390, %v1362
    %1395 = vst [vmem:[#allocation2 + $0x1] sm:$0x1] %v1391
    %1396 = vst [vmem:[#allocation2 + $0x9] sm:$0x1] %v1392
    %1397 = vst [vmem:[#allocation2 + $0x11] sm:$0x1] %v1393
    %1398 = vst [vmem:[#allocation2 + $0x19] sm:$0x1] %v1394
    %v1399 = vld [vmem:[%s0 + $0x10] sm:$0xff]
    %v1400 = vld [vmem:[%s0 + $0x50] sm:$0xff]
    %v1401 = vld [vmem:[%s0 + $0x90] sm:$0xff]
    %v1402 = vld [vmem:[%s0 + $0xd0] sm:$0xff]
    %1403 = vmatpush.msra.mxu0 0.0
    %1404 = vmatpush.msra.mxu0 0.0
    %1405 = vmatpush.msra.mxu0 0.0
    %1406 = vmatpush.msra.mxu0 0.0
    %1407 = vmatpush.msra.mxu0 0.0
    %1408 = vmatpush.msra.mxu0 0.0
    %1409 = vmatpush.msra.mxu0 0.0
    %1410 = vmatpush.msra.mxu0 0.0
    %1411 = vmatpush.msra.mxu0 0.0
    %1412 = vmatpush.msra.mxu0 0.0
    %1413 = vmatpush.msra.mxu0 0.0
    %1414 = vmatpush.msra.mxu0 0.0
    %1415 = vmatpush.msra.mxu0 0.0
    %1416 = vmatpush.msra.mxu0 0.0
    %1417 = vmatpush.msra.mxu0 %v28
    %1418 = vmatpush.msra.mxu0 %v27
    %1419 = vmatmul.f32.gmra.mxu0 %v1006
    %v1420 = vpop.f32.mrf.mxu0
    %v1421 = vadd.f32 0.0, %v1420
    %1422 = vdwg.mxu0
    %1423 = vmatpush.msra.mxu0 0.0
    %1424 = vmatpush.msra.mxu0 0.0
    %1425 = vmatpush.msra.mxu0 0.0
    %1426 = vmatpush.msra.mxu0 0.0
    %1427 = vmatpush.msra.mxu0 0.0
    %1428 = vmatpush.msra.mxu0 0.0
    %1429 = vmatpush.msra.mxu0 0.0
    %1430 = vmatpush.msra.mxu0 0.0
    %1431 = vmatpush.msra.mxu0 0.0
    %1432 = vmatpush.msra.mxu0 0.0
    %1433 = vmatpush.msra.mxu0 0.0
    %1434 = vmatpush.msra.mxu0 0.0
    %1435 = vmatpush.msra.mxu0 0.0
    %1436 = vmatpush.msra.mxu0 0.0
    %1437 = vmatpush.msra.mxu0 %v30
    %1438 = vmatpush.msra.mxu0 %v29
    %1439 = vmatmul.f32.gmra.mxu0 %v1031
    %v1440 = vpop.f32.mrf.mxu0
    %v1441 = vadd.f32 0.0, %v1440
    %1442 = vdwg.mxu0
    %1443 = vmatpush.msra.mxu0 0.0
    %1444 = vmatpush.msra.mxu0 0.0
    %1445 = vmatpush.msra.mxu0 0.0
    %1446 = vmatpush.msra.mxu0 0.0
    %1447 = vmatpush.msra.mxu0 0.0
    %1448 = vmatpush.msra.mxu0 0.0
    %1449 = vmatpush.msra.mxu0 0.0
    %1450 = vmatpush.msra.mxu0 0.0
    %1451 = vmatpush.msra.mxu0 0.0
    %1452 = vmatpush.msra.mxu0 0.0
    %1453 = vmatpush.msra.mxu0 0.0
    %1454 = vmatpush.msra.mxu0 0.0
    %1455 = vmatpush.msra.mxu0 0.0
    %1456 = vmatpush.msra.mxu0 0.0
    %1457 = vmatpush.msra.mxu0 %v32
    %1458 = vmatpush.msra.mxu0 %v31
    %1459 = vmatmul.f32.gmra.mxu0 %v1056
    %v1460 = vpop.f32.mrf.mxu0
    %v1461 = vadd.f32 0.0, %v1460
    %1462 = vdwg.mxu0
    %1463 = vmatpush.msra.mxu0 0.0
    %1464 = vmatpush.msra.mxu0 0.0
    %1465 = vmatpush.msra.mxu0 0.0
    %1466 = vmatpush.msra.mxu0 0.0
    %1467 = vmatpush.msra.mxu0 0.0
    %1468 = vmatpush.msra.mxu0 0.0
    %1469 = vmatpush.msra.mxu0 0.0
    %1470 = vmatpush.msra.mxu0 0.0
    %1471 = vmatpush.msra.mxu0 0.0
    %1472 = vmatpush.msra.mxu0 0.0
    %1473 = vmatpush.msra.mxu0 0.0
    %1474 = vmatpush.msra.mxu0 0.0
    %1475 = vmatpush.msra.mxu0 0.0
    %1476 = vmatpush.msra.mxu0 0.0
    %1477 = vmatpush.msra.mxu0 %v34
    %1478 = vmatpush.msra.mxu0 %v33
    %1479 = vmatmul.f32.gmra.mxu0 %v1081
    %v1480 = vpop.f32.mrf.mxu0
    %v1481 = vadd.f32 0.0, %v1480
    %1482 = vdwg.mxu0
    %v1483 = vadd.f32 %v1399, %v1421
    %v1484 = vadd.f32 %v1400, %v1441
    %v1485 = vadd.f32 %v1401, %v1461
    %v1486 = vadd.f32 %v1402, %v1481
    %v1487 = vxor.u32 %v1483, 2147483648
    %v1488 = vxor.u32 %v1484, 2147483648
    %v1489 = vxor.u32 %v1485, 2147483648
    %v1490 = vxor.u32 %v1486, 2147483648
    %v1491 = vmul.f32 %v1487, 1.442695
    %v1492 = vpow.pop %v1491
    %v1493 = vmul.f32 %v1488, 1.442695
    %v1494 = vpow.pop %v1493
    %v1495 = vmul.f32 %v1489, 1.442695
    %v1496 = vpow.pop %v1495
    %v1497 = vmul.f32 %v1490, 1.442695
    %v1498 = vpow.pop %v1497
    %v1499 = vadd.f32 %v1492, 1.0
    %v1500 = vadd.f32 %v1494, 1.0
    %v1501 = vadd.f32 %v1496, 1.0
    %v1502 = vadd.f32 %v1498, 1.0
    %v1503 = vrcp.pop %v1499
    %v1504 = vmul.f32 %v1499, %v1503
    %v1505 = vsub.f32 1.0, %v1504
    %v1506 = vmul.f32 %v1503, %v1505
    %v1507 = vadd.f32 %v1503, %v1506
    %vm1508 = vweird.f32 %v1499
    %vm1509 = vweird.f32 %v1503
    %vm1510 = vmor %vm1508, %vm1509
    %v1511 = vsel %vm1510, %v1503, %v1507
    %v1512 = vand.u32 2147483647, %v1499
    %vm1513 = vcmp.eq.f32.partialorder %v1512, 8.507059e+37
    %v1514 = vand.u32 %v1499, 2147483648
    %v1515 = vor.u32 1.1754944e-38, %v1514
    %v1516 = vsel %vm1513, %v1515, %v1511
    %v1517 = vmul.f32 1.0, %v1516
    %v1518 = vrcp.pop %v1500
    %v1519 = vmul.f32 %v1500, %v1518
    %v1520 = vsub.f32 1.0, %v1519
    %v1521 = vmul.f32 %v1518, %v1520
    %v1522 = vadd.f32 %v1518, %v1521
    %vm1523 = vweird.f32 %v1500
    %vm1524 = vweird.f32 %v1518
    %vm1525 = vmor %vm1523, %vm1524
    %v1526 = vsel %vm1525, %v1518, %v1522
    %v1527 = vand.u32 2147483647, %v1500
    %vm1528 = vcmp.eq.f32.partialorder %v1527, 8.507059e+37
    %v1529 = vand.u32 %v1500, 2147483648
    %v1530 = vor.u32 1.1754944e-38, %v1529
    %v1531 = vsel %vm1528, %v1530, %v1526
    %v1532 = vmul.f32 1.0, %v1531
    %v1533 = vrcp.pop %v1501
    %v1534 = vmul.f32 %v1501, %v1533
    %v1535 = vsub.f32 1.0, %v1534
    %v1536 = vmul.f32 %v1533, %v1535
    %v1537 = vadd.f32 %v1533, %v1536
    %vm1538 = vweird.f32 %v1501
    %vm1539 = vweird.f32 %v1533
    %vm1540 = vmor %vm1538, %vm1539
    %v1541 = vsel %vm1540, %v1533, %v1537
    %v1542 = vand.u32 2147483647, %v1501
    %vm1543 = vcmp.eq.f32.partialorder %v1542, 8.507059e+37
    %v1544 = vand.u32 %v1501, 2147483648
    %v1545 = vor.u32 1.1754944e-38, %v1544
    %v1546 = vsel %vm1543, %v1545, %v1541
    %v1547 = vmul.f32 1.0, %v1546
    %v1548 = vrcp.pop %v1502
    %v1549 = vmul.f32 %v1502, %v1548
    %v1550 = vsub.f32 1.0, %v1549
    %v1551 = vmul.f32 %v1548, %v1550
    %v1552 = vadd.f32 %v1548, %v1551
    %vm1553 = vweird.f32 %v1502
    %vm1554 = vweird.f32 %v1548
    %vm1555 = vmor %vm1553, %vm1554
    %v1556 = vsel %vm1555, %v1548, %v1552
    %v1557 = vand.u32 2147483647, %v1502
    %vm1558 = vcmp.eq.f32.partialorder %v1557, 8.507059e+37
    %v1559 = vand.u32 %v1502, 2147483648
    %v1560 = vor.u32 1.1754944e-38, %v1559
    %v1561 = vsel %vm1558, %v1560, %v1556
    %v1562 = vmul.f32 1.0, %v1561
    %v1563 = vadd.f32 %v1421, %v241
    %v1564 = vadd.f32 %v1441, %v243
    %v1565 = vadd.f32 %v1461, %v245
    %v1566 = vadd.f32 %v1481, %v247
    %1571 = vrot.lane.b32.xlu0 %v1563, 96
    %v1572 = vpop.permute.xlu0 %1571
    %1573 = vrot.lane.b32.xlu0 %v1564, 96
    %v1574 = vpop.permute.xlu0 %1573
    %1575 = vrot.lane.b32.xlu0 %v1565, 96
    %v1576 = vpop.permute.xlu0 %1575
    %1577 = vrot.lane.b32.xlu0 %v1566, 96
    %v1578 = vpop.permute.xlu0 %1577
    %v1583 = vmul.f32 %v1517, %v1572
    %v1584 = vmul.f32 %v1532, %v1574
    %v1585 = vmul.f32 %v1547, %v1576
    %v1586 = vmul.f32 %v1562, %v1578
    %1591 = vrot.lane.b32.xlu0 %v1583, 32
    %v1592 = vpop.permute.xlu0 %1591
    %1593 = vrot.lane.b32.xlu0 %v1584, 32
    %v1594 = vpop.permute.xlu0 %1593
    %1595 = vrot.lane.b32.xlu0 %v1585, 32
    %v1596 = vpop.permute.xlu0 %1595
    %1597 = vrot.lane.b32.xlu0 %v1586, 32
    %v1598 = vpop.permute.xlu0 %1597
    %v1603 = vadd.f32 %v1399, %v1592
    %v1604 = vadd.f32 %v1400, %v1594
    %v1605 = vadd.f32 %v1401, %v1596
    %v1606 = vadd.f32 %v1402, %v1598
    %v1607 = vtanh.pop %v1603
    %v1608 = vtanh.pop %v1604
    %v1609 = vtanh.pop %v1605
    %v1610 = vtanh.pop %v1606
    %v1611 = vsub.f32 1.0, %v1517
    %v1612 = vsub.f32 1.0, %v1532
    %v1613 = vsub.f32 1.0, %v1547
    %v1614 = vsub.f32 1.0, %v1562
    %1619 = vrot.lane.b32.xlu0 %v1607, 112
    %v1620 = vpop.permute.xlu0 %1619
    %1621 = vrot.lane.b32.xlu0 %v1608, 112
    %v1622 = vpop.permute.xlu0 %1621
    %1623 = vrot.lane.b32.xlu0 %v1609, 112
    %v1624 = vpop.permute.xlu0 %1623
    %1625 = vrot.lane.b32.xlu0 %v1610, 112
    %v1626 = vpop.permute.xlu0 %1625
    %v1631 = vmul.f32 %v1611, %v1620
    %v1632 = vmul.f32 %v1612, %v1622
    %v1633 = vmul.f32 %v1613, %v1624
    %v1634 = vmul.f32 %v1614, %v1626
    %v1635 = vmul.f32 %v1517, %v999
    %v1636 = vmul.f32 %v1532, %v1000
    %v1637 = vmul.f32 %v1547, %v1001
    %v1638 = vmul.f32 %v1562, %v1002
    %v1639 = vadd.f32 %v1631, %v1635
    %v1640 = vadd.f32 %v1632, %v1636
    %v1641 = vadd.f32 %v1633, %v1637
    %v1642 = vadd.f32 %v1634, %v1638
    %1644 = vrot.lane.b32.xlu0 %v1639, 112
    %v1645 = vpop.permute.xlu0 %1644
    %v1646 = vsel %vm59, %v1645, 0
    %1648 = vmatpush.msra.mxu0 0.0
    %1649 = vmatpush.msra.mxu0 0.0
    %1650 = vmatpush.msra.mxu0 0.0
    %1651 = vmatpush.msra.mxu0 0.0
    %1652 = vmatpush.msra.mxu0 0.0
    %1653 = vmatpush.msra.mxu0 0.0
    %1654 = vmatpush.msra.mxu0 0.0
    %1655 = vmatpush.msra.mxu0 0.0
    %1656 = vmatpush.msra.mxu0 0.0
    %1657 = vmatpush.msra.mxu0 0.0
    %1658 = vmatpush.msra.mxu0 0.0
    %1659 = vmatpush.msra.mxu0 0.0
    %1660 = vmatpush.msra.mxu0 0.0
    %1661 = vmatpush.msra.mxu0 0.0
    %1662 = vmatpush.msra.mxu0 %v36
    %1663 = vmatpush.msra.mxu0 %v35
    %1664 = vmatmul.f32.gmra.mxu0 %v1646
    %v1665 = vpop.f32.mrf.mxu0
    %v1666 = vadd.f32 %v348, %v1665
    %1667 = vdwg.mxu0
    %1669 = vrot.lane.b32.xlu0 %v1640, 112
    %v1670 = vpop.permute.xlu0 %1669
    %v1671 = vsel %vm59, %v1670, 0
    %1673 = vmatpush.msra.mxu0 0.0
    %1674 = vmatpush.msra.mxu0 0.0
    %1675 = vmatpush.msra.mxu0 0.0
    %1676 = vmatpush.msra.mxu0 0.0
    %1677 = vmatpush.msra.mxu0 0.0
    %1678 = vmatpush.msra.mxu0 0.0
    %1679 = vmatpush.msra.mxu0 0.0
    %1680 = vmatpush.msra.mxu0 0.0
    %1681 = vmatpush.msra.mxu0 0.0
    %1682 = vmatpush.msra.mxu0 0.0
    %1683 = vmatpush.msra.mxu0 0.0
    %1684 = vmatpush.msra.mxu0 0.0
    %1685 = vmatpush.msra.mxu0 0.0
    %1686 = vmatpush.msra.mxu0 0.0
    %1687 = vmatpush.msra.mxu0 %v38
    %1688 = vmatpush.msra.mxu0 %v37
    %1689 = vmatmul.f32.gmra.mxu0 %v1671
    %v1690 = vpop.f32.mrf.mxu0
    %v1691 = vadd.f32 %v349, %v1690
    %1692 = vdwg.mxu0
    %1694 = vrot.lane.b32.xlu0 %v1641, 112
    %v1695 = vpop.permute.xlu0 %1694
    %v1696 = vsel %vm59, %v1695, 0
    %1698 = vmatpush.msra.mxu0 0.0
    %1699 = vmatpush.msra.mxu0 0.0
    %1700 = vmatpush.msra.mxu0 0.0
    %1701 = vmatpush.msra.mxu0 0.0
    %1702 = vmatpush.msra.mxu0 0.0
    %1703 = vmatpush.msra.mxu0 0.0
    %1704 = vmatpush.msra.mxu0 0.0
    %1705 = vmatpush.msra.mxu0 0.0
    %1706 = vmatpush.msra.mxu0 0.0
    %1707 = vmatpush.msra.mxu0 0.0
    %1708 = vmatpush.msra.mxu0 0.0
    %1709 = vmatpush.msra.mxu0 0.0
    %1710 = vmatpush.msra.mxu0 0.0
    %1711 = vmatpush.msra.mxu0 0.0
    %1712 = vmatpush.msra.mxu0 %v40
    %1713 = vmatpush.msra.mxu0 %v39
    %1714 = vmatmul.f32.gmra.mxu0 %v1696
    %v1715 = vpop.f32.mrf.mxu0
    %v1716 = vadd.f32 %v350, %v1715
    %1717 = vdwg.mxu0
    %1719 = vrot.lane.b32.xlu0 %v1642, 112
    %v1720 = vpop.permute.xlu0 %1719
    %v1721 = vsel %vm59, %v1720, 0
    %1723 = vmatpush.msra.mxu0 0.0
    %1724 = vmatpush.msra.mxu0 0.0
    %1725 = vmatpush.msra.mxu0 0.0
    %1726 = vmatpush.msra.mxu0 0.0
    %1727 = vmatpush.msra.mxu0 0.0
    %1728 = vmatpush.msra.mxu0 0.0
    %1729 = vmatpush.msra.mxu0 0.0
    %1730 = vmatpush.msra.mxu0 0.0
    %1731 = vmatpush.msra.mxu0 0.0
    %1732 = vmatpush.msra.mxu0 0.0
    %1733 = vmatpush.msra.mxu0 0.0
    %1734 = vmatpush.msra.mxu0 0.0
    %1735 = vmatpush.msra.mxu0 0.0
    %1736 = vmatpush.msra.mxu0 0.0
    %1737 = vmatpush.msra.mxu0 %v42
    %1738 = vmatpush.msra.mxu0 %v41
    %1739 = vmatmul.f32.gmra.mxu0 %v1721
    %v1740 = vpop.f32.mrf.mxu0
    %v1741 = vadd.f32 %v351, %v1740
    %1742 = vdwg.mxu0
    %v1743 = vrot.slane %v1666, 4
    %v1744 = vsel %vm457, 0.0, %v1743
    %v1746 = vunpack.c.l.s4 1983009808
    %v1747 = vunpack.c.0.s8 %v1746
    %v1748 = vperm.slane %v1666, %v1747
    %v1750 = vunpack.c.l.s4 1983009808
    %v1751 = vunpack.c.0.s8 %v1750
    %v1752 = vperm.slane %v1744, %v1751
    %v1753 = vrot.slane %v1748, 4
    %v1754 = vsel %vm457, 0.0, %v1753
    %v1756 = vunpack.c.l.s4 1934713408
    %v1757 = vunpack.c.0.s8 %v1756
    %v1758 = vperm.slane %v1748, %v1757
    %v1760 = vunpack.c.l.s4 1934713408
    %v1761 = vunpack.c.0.s8 %v1760
    %v1762 = vperm.slane %v1754, %v1761
    %v1763 = vrot.slane %v1752, 4
    %v1764 = vsel %vm457, 0.0, %v1763
    %v1766 = vunpack.c.l.s4 1934713408
    %v1767 = vunpack.c.0.s8 %v1766
    %v1768 = vperm.slane %v1752, %v1767
    %v1770 = vunpack.c.l.s4 1934713408
    %v1771 = vunpack.c.0.s8 %v1770
    %v1772 = vperm.slane %v1764, %v1771
    %v1773 = vrot.slane %v1758, 4
    %v1774 = vsel %vm457, 0.0, %v1773
    %v1775 = vrot.slane %v1762, 4
    %v1776 = vsel %vm457, 0.0, %v1775
    %v1777 = vrot.slane %v1768, 4
    %v1778 = vsel %vm457, 0.0, %v1777
    %v1779 = vrot.slane %v1772, 4
    %v1780 = vsel %vm457, 0.0, %v1779
    %v1781 = vrot.slane %v1691, 4
    %v1782 = vsel %vm457, 0.0, %v1781
    %v1784 = vunpack.c.l.s4 1983009808
    %v1785 = vunpack.c.0.s8 %v1784
    %v1786 = vperm.slane %v1691, %v1785
    %v1788 = vunpack.c.l.s4 1983009808
    %v1789 = vunpack.c.0.s8 %v1788
    %v1790 = vperm.slane %v1782, %v1789
    %v1791 = vrot.slane %v1786, 4
    %v1792 = vsel %vm457, 0.0, %v1791
    %v1794 = vunpack.c.l.s4 1934713408
    %v1795 = vunpack.c.0.s8 %v1794
    %v1796 = vperm.slane %v1786, %v1795
    %v1798 = vunpack.c.l.s4 1934713408
    %v1799 = vunpack.c.0.s8 %v1798
    %v1800 = vperm.slane %v1792, %v1799
    %v1801 = vrot.slane %v1790, 4
    %v1802 = vsel %vm457, 0.0, %v1801
    %v1804 = vunpack.c.l.s4 1934713408
    %v1805 = vunpack.c.0.s8 %v1804
    %v1806 = vperm.slane %v1790, %v1805
    %v1808 = vunpack.c.l.s4 1934713408
    %v1809 = vunpack.c.0.s8 %v1808
    %v1810 = vperm.slane %v1802, %v1809
    %v1811 = vrot.slane %v1796, 4
    %v1812 = vsel %vm457, 0.0, %v1811
    %v1813 = vrot.slane %v1800, 4
    %v1814 = vsel %vm457, 0.0, %v1813
    %v1815 = vrot.slane %v1806, 4
    %v1816 = vsel %vm457, 0.0, %v1815
    %v1817 = vrot.slane %v1810, 4
    %v1818 = vsel %vm457, 0.0, %v1817
    %v1819 = vrot.slane %v1716, 4
    %v1820 = vsel %vm457, 0.0, %v1819
    %v1822 = vunpack.c.l.s4 1983009808
    %v1823 = vunpack.c.0.s8 %v1822
    %v1824 = vperm.slane %v1716, %v1823
    %v1826 = vunpack.c.l.s4 1983009808
    %v1827 = vunpack.c.0.s8 %v1826
    %v1828 = vperm.slane %v1820, %v1827
    %v1829 = vrot.slane %v1824, 4
    %v1830 = vsel %vm457, 0.0, %v1829
    %v1832 = vunpack.c.l.s4 1934713408
    %v1833 = vunpack.c.0.s8 %v1832
    %v1834 = vperm.slane %v1824, %v1833
    %v1836 = vunpack.c.l.s4 1934713408
    %v1837 = vunpack.c.0.s8 %v1836
    %v1838 = vperm.slane %v1830, %v1837
    %v1839 = vrot.slane %v1828, 4
    %v1840 = vsel %vm457, 0.0, %v1839
    %v1842 = vunpack.c.l.s4 1934713408
    %v1843 = vunpack.c.0.s8 %v1842
    %v1844 = vperm.slane %v1828, %v1843
    %v1846 = vunpack.c.l.s4 1934713408
    %v1847 = vunpack.c.0.s8 %v1846
    %v1848 = vperm.slane %v1840, %v1847
    %v1849 = vrot.slane %v1834, 4
    %v1850 = vsel %vm457, 0.0, %v1849
    %v1851 = vrot.slane %v1838, 4
    %v1852 = vsel %vm457, 0.0, %v1851
    %v1853 = vrot.slane %v1844, 4
    %v1854 = vsel %vm457, 0.0, %v1853
    %v1855 = vrot.slane %v1848, 4
    %v1856 = vsel %vm457, 0.0, %v1855
    %v1857 = vrot.slane %v1741, 4
    %v1858 = vsel %vm457, 0.0, %v1857
    %v1860 = vunpack.c.l.s4 1983009808
    %v1861 = vunpack.c.0.s8 %v1860
    %v1862 = vperm.slane %v1741, %v1861
    %v1864 = vunpack.c.l.s4 1983009808
    %v1865 = vunpack.c.0.s8 %v1864
    %v1866 = vperm.slane %v1858, %v1865
    %v1867 = vrot.slane %v1862, 4
    %v1868 = vsel %vm457, 0.0, %v1867
    %v1870 = vunpack.c.l.s4 1934713408
    %v1871 = vunpack.c.0.s8 %v1870
    %v1872 = vperm.slane %v1862, %v1871
    %v1874 = vunpack.c.l.s4 1934713408
    %v1875 = vunpack.c.0.s8 %v1874
    %v1876 = vperm.slane %v1868, %v1875
    %v1877 = vrot.slane %v1866, 4
    %v1878 = vsel %vm457, 0.0, %v1877
    %v1880 = vunpack.c.l.s4 1934713408
    %v1881 = vunpack.c.0.s8 %v1880
    %v1882 = vperm.slane %v1866, %v1881
    %v1884 = vunpack.c.l.s4 1934713408
    %v1885 = vunpack.c.0.s8 %v1884
    %v1886 = vperm.slane %v1878, %v1885
    %v1887 = vrot.slane %v1872, 4
    %v1888 = vsel %vm457, 0.0, %v1887
    %v1889 = vrot.slane %v1876, 4
    %v1890 = vsel %vm457, 0.0, %v1889
    %v1891 = vrot.slane %v1882, 4
    %v1892 = vsel %vm457, 0.0, %v1891
    %v1893 = vrot.slane %v1886, 4
    %v1894 = vsel %vm457, 0.0, %v1893
    %1899 = vrot.lane.b32.xlu0 %v1774, 16
    %v1900 = vpop.permute.xlu0 %1899
    %1901 = vrot.lane.b32.xlu0 %v1812, 16
    %v1902 = vpop.permute.xlu0 %1901
    %1903 = vrot.lane.b32.xlu0 %v1850, 16
    %v1904 = vpop.permute.xlu0 %1903
    %1905 = vrot.lane.b32.xlu0 %v1888, 16
    %v1906 = vpop.permute.xlu0 %1905
    %1915 = vrot.lane.b32.xlu0 %v1762, 32
    %v1916 = vpop.permute.xlu0 %1915
    %1917 = vrot.lane.b32.xlu0 %v1800, 32
    %v1918 = vpop.permute.xlu0 %1917
    %1919 = vrot.lane.b32.xlu0 %v1838, 32
    %v1920 = vpop.permute.xlu0 %1919
    %1921 = vrot.lane.b32.xlu0 %v1876, 32
    %v1922 = vpop.permute.xlu0 %1921
    %1931 = vrot.lane.b32.xlu0 %v1776, 48
    %v1932 = vpop.permute.xlu0 %1931
    %1933 = vrot.lane.b32.xlu0 %v1814, 48
    %v1934 = vpop.permute.xlu0 %1933
    %1935 = vrot.lane.b32.xlu0 %v1852, 48
    %v1936 = vpop.permute.xlu0 %1935
    %1937 = vrot.lane.b32.xlu0 %v1890, 48
    %v1938 = vpop.permute.xlu0 %1937
    %1947 = vrot.lane.b32.xlu0 %v1768, 64
    %v1948 = vpop.permute.xlu0 %1947
    %1949 = vrot.lane.b32.xlu0 %v1806, 64
    %v1950 = vpop.permute.xlu0 %1949
    %1951 = vrot.lane.b32.xlu0 %v1844, 64
    %v1952 = vpop.permute.xlu0 %1951
    %1953 = vrot.lane.b32.xlu0 %v1882, 64
    %v1954 = vpop.permute.xlu0 %1953
    %1963 = vrot.lane.b32.xlu0 %v1778, 80
    %v1964 = vpop.permute.xlu0 %1963
    %1965 = vrot.lane.b32.xlu0 %v1816, 80
    %v1966 = vpop.permute.xlu0 %1965
    %1967 = vrot.lane.b32.xlu0 %v1854, 80
    %v1968 = vpop.permute.xlu0 %1967
    %1969 = vrot.lane.b32.xlu0 %v1892, 80
    %v1970 = vpop.permute.xlu0 %1969
    %1979 = vrot.lane.b32.xlu0 %v1772, 96
    %v1980 = vpop.permute.xlu0 %1979
    %1981 = vrot.lane.b32.xlu0 %v1810, 96
    %v1982 = vpop.permute.xlu0 %1981
    %1983 = vrot.lane.b32.xlu0 %v1848, 96
    %v1984 = vpop.permute.xlu0 %1983
    %1985 = vrot.lane.b32.xlu0 %v1886, 96
    %v1986 = vpop.permute.xlu0 %1985
    %1995 = vrot.lane.b32.xlu0 %v1780, 112
    %v1996 = vpop.permute.xlu0 %1995
    %1997 = vrot.lane.b32.xlu0 %v1818, 112
    %v1998 = vpop.permute.xlu0 %1997
    %1999 = vrot.lane.b32.xlu0 %v1856, 112
    %v2000 = vpop.permute.xlu0 %1999
    %2001 = vrot.lane.b32.xlu0 %v1894, 112
    %v2002 = vpop.permute.xlu0 %2001
    %v2007 = vsel %vm59, %v1758, %v1900
    %v2008 = vsel %vm59, %v1796, %v1902
    %v2009 = vsel %vm59, %v1834, %v1904
    %v2010 = vsel %vm59, %v1872, %v1906
    %v2011 = vsel %vm725, %v2007, %v1916
    %v2012 = vsel %vm725, %v2008, %v1918
    %v2013 = vsel %vm725, %v2009, %v1920
    %v2014 = vsel %vm725, %v2010, %v1922
    %v2015 = vsel %vm730, %v2011, %v1932
    %v2016 = vsel %vm730, %v2012, %v1934
    %v2017 = vsel %vm730, %v2013, %v1936
    %v2018 = vsel %vm730, %v2014, %v1938
    %v2019 = vsel %vm735, %v2015, %v1948
    %v2020 = vsel %vm735, %v2016, %v1950
    %v2021 = vsel %vm735, %v2017, %v1952
    %v2022 = vsel %vm735, %v2018, %v1954
    %v2023 = vsel %vm740, %v2019, %v1964
    %v2024 = vsel %vm740, %v2020, %v1966
    %v2025 = vsel %vm740, %v2021, %v1968
    %v2026 = vsel %vm740, %v2022, %v1970
    %v2027 = vsel %vm745, %v2023, %v1980
    %v2028 = vsel %vm745, %v2024, %v1982
    %v2029 = vsel %vm745, %v2025, %v1984
    %v2030 = vsel %vm745, %v2026, %v1986
    %v2031 = vsel %vm750, %v2027, %v1996
    %v2032 = vsel %vm750, %v2028, %v1998
    %v2033 = vsel %vm750, %v2029, %v2000
    %v2034 = vsel %vm750, %v2030, %v2002
    %2035 = vst [vmem:[#allocation2 + $0x2] sm:$0x1] %v2031
    %2036 = vst [vmem:[#allocation2 + $0xa] sm:$0x1] %v2032
    %2037 = vst [vmem:[#allocation2 + $0x12] sm:$0x1] %v2033
    %2038 = vst [vmem:[#allocation2 + $0x1a] sm:$0x1] %v2034
    %v2039 = vld [vmem:[%s0 + $0x18] sm:$0xff]
    %v2040 = vld [vmem:[%s0 + $0x58] sm:$0xff]
    %v2041 = vld [vmem:[%s0 + $0x98] sm:$0xff]
    %v2042 = vld [vmem:[%s0 + $0xd8] sm:$0xff]
    %2043 = vmatpush.msra.mxu0 0.0
    %2044 = vmatpush.msra.mxu0 0.0
    %2045 = vmatpush.msra.mxu0 0.0
    %2046 = vmatpush.msra.mxu0 0.0
    %2047 = vmatpush.msra.mxu0 0.0
    %2048 = vmatpush.msra.mxu0 0.0
    %2049 = vmatpush.msra.mxu0 0.0
    %2050 = vmatpush.msra.mxu0 0.0
    %2051 = vmatpush.msra.mxu0 0.0
    %2052 = vmatpush.msra.mxu0 0.0
    %2053 = vmatpush.msra.mxu0 0.0
    %2054 = vmatpush.msra.mxu0 0.0
    %2055 = vmatpush.msra.mxu0 0.0
    %2056 = vmatpush.msra.mxu0 0.0
    %2057 = vmatpush.msra.mxu0 %v28
    %2058 = vmatpush.msra.mxu0 %v27
    %2059 = vmatmul.f32.gmra.mxu0 %v1646
    %v2060 = vpop.f32.mrf.mxu0
    %v2061 = vadd.f32 0.0, %v2060
    %2062 = vdwg.mxu0
    %2063 = vmatpush.msra.mxu0 0.0
    %2064 = vmatpush.msra.mxu0 0.0
    %2065 = vmatpush.msra.mxu0 0.0
    %2066 = vmatpush.msra.mxu0 0.0
    %2067 = vmatpush.msra.mxu0 0.0
    %2068 = vmatpush.msra.mxu0 0.0
    %2069 = vmatpush.msra.mxu0 0.0
    %2070 = vmatpush.msra.mxu0 0.0
    %2071 = vmatpush.msra.mxu0 0.0
    %2072 = vmatpush.msra.mxu0 0.0
    %2073 = vmatpush.msra.mxu0 0.0
    %2074 = vmatpush.msra.mxu0 0.0
    %2075 = vmatpush.msra.mxu0 0.0
    %2076 = vmatpush.msra.mxu0 0.0
    %2077 = vmatpush.msra.mxu0 %v30
    %2078 = vmatpush.msra.mxu0 %v29
    %2079 = vmatmul.f32.gmra.mxu0 %v1671
    %v2080 = vpop.f32.mrf.mxu0
    %v2081 = vadd.f32 0.0, %v2080
    %2082 = vdwg.mxu0
    %2083 = vmatpush.msra.mxu0 0.0
    %2084 = vmatpush.msra.mxu0 0.0
    %2085 = vmatpush.msra.mxu0 0.0
    %2086 = vmatpush.msra.mxu0 0.0
    %2087 = vmatpush.msra.mxu0 0.0
    %2088 = vmatpush.msra.mxu0 0.0
    %2089 = vmatpush.msra.mxu0 0.0
    %2090 = vmatpush.msra.mxu0 0.0
    %2091 = vmatpush.msra.mxu0 0.0
    %2092 = vmatpush.msra.mxu0 0.0
    %2093 = vmatpush.msra.mxu0 0.0
    %2094 = vmatpush.msra.mxu0 0.0
    %2095 = vmatpush.msra.mxu0 0.0
    %2096 = vmatpush.msra.mxu0 0.0
    %2097 = vmatpush.msra.mxu0 %v32
    %2098 = vmatpush.msra.mxu0 %v31
    %2099 = vmatmul.f32.gmra.mxu0 %v1696
    %v2100 = vpop.f32.mrf.mxu0
    %v2101 = vadd.f32 0.0, %v2100
    %2102 = vdwg.mxu0
    %2103 = vmatpush.msra.mxu0 0.0
    %2104 = vmatpush.msra.mxu0 0.0
    %2105 = vmatpush.msra.mxu0 0.0
    %2106 = vmatpush.msra.mxu0 0.0
    %2107 = vmatpush.msra.mxu0 0.0
    %2108 = vmatpush.msra.mxu0 0.0
    %2109 = vmatpush.msra.mxu0 0.0
    %2110 = vmatpush.msra.mxu0 0.0
    %2111 = vmatpush.msra.mxu0 0.0
    %2112 = vmatpush.msra.mxu0 0.0
    %2113 = vmatpush.msra.mxu0 0.0
    %2114 = vmatpush.msra.mxu0 0.0
    %2115 = vmatpush.msra.mxu0 0.0
    %2116 = vmatpush.msra.mxu0 0.0
    %2117 = vmatpush.msra.mxu0 %v34
    %2118 = vmatpush.msra.mxu0 %v33
    %2119 = vmatmul.f32.gmra.mxu0 %v1721
    %v2120 = vpop.f32.mrf.mxu0
    %v2121 = vadd.f32 0.0, %v2120
    %2122 = vdwg.mxu0
    %v2123 = vadd.f32 %v2039, %v2061
    %v2124 = vadd.f32 %v2040, %v2081
    %v2125 = vadd.f32 %v2041, %v2101
    %v2126 = vadd.f32 %v2042, %v2121
    %v2127 = vxor.u32 %v2123, 2147483648
    %v2128 = vxor.u32 %v2124, 2147483648
    %v2129 = vxor.u32 %v2125, 2147483648
    %v2130 = vxor.u32 %v2126, 2147483648
    %v2131 = vmul.f32 %v2127, 1.442695
    %v2132 = vpow.pop %v2131
    %v2133 = vmul.f32 %v2128, 1.442695
    %v2134 = vpow.pop %v2133
    %v2135 = vmul.f32 %v2129, 1.442695
    %v2136 = vpow.pop %v2135
    %v2137 = vmul.f32 %v2130, 1.442695
    %v2138 = vpow.pop %v2137
    %v2139 = vadd.f32 %v2132, 1.0
    %v2140 = vadd.f32 %v2134, 1.0
    %v2141 = vadd.f32 %v2136, 1.0
    %v2142 = vadd.f32 %v2138, 1.0
    %v2143 = vrcp.pop %v2139
    %v2144 = vmul.f32 %v2139, %v2143
    %v2145 = vsub.f32 1.0, %v2144
    %v2146 = vmul.f32 %v2143, %v2145
    %v2147 = vadd.f32 %v2143, %v2146
    %vm2148 = vweird.f32 %v2139
    %vm2149 = vweird.f32 %v2143
    %vm2150 = vmor %vm2148, %vm2149
    %v2151 = vsel %vm2150, %v2143, %v2147
    %v2152 = vand.u32 2147483647, %v2139
    %vm2153 = vcmp.eq.f32.partialorder %v2152, 8.507059e+37
    %v2154 = vand.u32 %v2139, 2147483648
    %v2155 = vor.u32 1.1754944e-38, %v2154
    %v2156 = vsel %vm2153, %v2155, %v2151
    %v2157 = vmul.f32 1.0, %v2156
    %v2158 = vrcp.pop %v2140
    %v2159 = vmul.f32 %v2140, %v2158
    %v2160 = vsub.f32 1.0, %v2159
    %v2161 = vmul.f32 %v2158, %v2160
    %v2162 = vadd.f32 %v2158, %v2161
    %vm2163 = vweird.f32 %v2140
    %vm2164 = vweird.f32 %v2158
    %vm2165 = vmor %vm2163, %vm2164
    %v2166 = vsel %vm2165, %v2158, %v2162
    %v2167 = vand.u32 2147483647, %v2140
    %vm2168 = vcmp.eq.f32.partialorder %v2167, 8.507059e+37
    %v2169 = vand.u32 %v2140, 2147483648
    %v2170 = vor.u32 1.1754944e-38, %v2169
    %v2171 = vsel %vm2168, %v2170, %v2166
    %v2172 = vmul.f32 1.0, %v2171
    %v2173 = vrcp.pop %v2141
    %v2174 = vmul.f32 %v2141, %v2173
    %v2175 = vsub.f32 1.0, %v2174
    %v2176 = vmul.f32 %v2173, %v2175
    %v2177 = vadd.f32 %v2173, %v2176
    %vm2178 = vweird.f32 %v2141
    %vm2179 = vweird.f32 %v2173
    %vm2180 = vmor %vm2178, %vm2179
    %v2181 = vsel %vm2180, %v2173, %v2177
    %v2182 = vand.u32 2147483647, %v2141
    %vm2183 = vcmp.eq.f32.partialorder %v2182, 8.507059e+37
    %v2184 = vand.u32 %v2141, 2147483648
    %v2185 = vor.u32 1.1754944e-38, %v2184
    %v2186 = vsel %vm2183, %v2185, %v2181
    %v2187 = vmul.f32 1.0, %v2186
    %v2188 = vrcp.pop %v2142
    %v2189 = vmul.f32 %v2142, %v2188
    %v2190 = vsub.f32 1.0, %v2189
    %v2191 = vmul.f32 %v2188, %v2190
    %v2192 = vadd.f32 %v2188, %v2191
    %vm2193 = vweird.f32 %v2142
    %vm2194 = vweird.f32 %v2188
    %vm2195 = vmor %vm2193, %vm2194
    %v2196 = vsel %vm2195, %v2188, %v2192
    %v2197 = vand.u32 2147483647, %v2142
    %vm2198 = vcmp.eq.f32.partialorder %v2197, 8.507059e+37
    %v2199 = vand.u32 %v2142, 2147483648
    %v2200 = vor.u32 1.1754944e-38, %v2199
    %v2201 = vsel %vm2198, %v2200, %v2196
    %v2202 = vmul.f32 1.0, %v2201
    %v2203 = vadd.f32 %v2061, %v241
    %v2204 = vadd.f32 %v2081, %v243
    %v2205 = vadd.f32 %v2101, %v245
    %v2206 = vadd.f32 %v2121, %v247
    %2211 = vrot.lane.b32.xlu0 %v2203, 96
    %v2212 = vpop.permute.xlu0 %2211
    %2213 = vrot.lane.b32.xlu0 %v2204, 96
    %v2214 = vpop.permute.xlu0 %2213
    %2215 = vrot.lane.b32.xlu0 %v2205, 96
    %v2216 = vpop.permute.xlu0 %2215
    %2217 = vrot.lane.b32.xlu0 %v2206, 96
    %v2218 = vpop.permute.xlu0 %2217
    %v2223 = vmul.f32 %v2157, %v2212
    %v2224 = vmul.f32 %v2172, %v2214
    %v2225 = vmul.f32 %v2187, %v2216
    %v2226 = vmul.f32 %v2202, %v2218
    %2231 = vrot.lane.b32.xlu0 %v2223, 32
    %v2232 = vpop.permute.xlu0 %2231
    %2233 = vrot.lane.b32.xlu0 %v2224, 32
    %v2234 = vpop.permute.xlu0 %2233
    %2235 = vrot.lane.b32.xlu0 %v2225, 32
    %v2236 = vpop.permute.xlu0 %2235
    %2237 = vrot.lane.b32.xlu0 %v2226, 32
    %v2238 = vpop.permute.xlu0 %2237
    %v2243 = vadd.f32 %v2039, %v2232
    %v2244 = vadd.f32 %v2040, %v2234
    %v2245 = vadd.f32 %v2041, %v2236
    %v2246 = vadd.f32 %v2042, %v2238
    %v2247 = vtanh.pop %v2243
    %v2248 = vtanh.pop %v2244
    %v2249 = vtanh.pop %v2245
    %v2250 = vtanh.pop %v2246
    %v2251 = vsub.f32 1.0, %v2157
    %v2252 = vsub.f32 1.0, %v2172
    %v2253 = vsub.f32 1.0, %v2187
    %v2254 = vsub.f32 1.0, %v2202
    %2259 = vrot.lane.b32.xlu0 %v2247, 112
    %v2260 = vpop.permute.xlu0 %2259
    %2261 = vrot.lane.b32.xlu0 %v2248, 112
    %v2262 = vpop.permute.xlu0 %2261
    %2263 = vrot.lane.b32.xlu0 %v2249, 112
    %v2264 = vpop.permute.xlu0 %2263
    %2265 = vrot.lane.b32.xlu0 %v2250, 112
    %v2266 = vpop.permute.xlu0 %2265
    %v2271 = vmul.f32 %v2251, %v2260
    %v2272 = vmul.f32 %v2252, %v2262
    %v2273 = vmul.f32 %v2253, %v2264
    %v2274 = vmul.f32 %v2254, %v2266
    %v2275 = vmul.f32 %v2157, %v1639
    %v2276 = vmul.f32 %v2172, %v1640
    %v2277 = vmul.f32 %v2187, %v1641
    %v2278 = vmul.f32 %v2202, %v1642
    %v2279 = vadd.f32 %v2271, %v2275
    %v2280 = vadd.f32 %v2272, %v2276
    %v2281 = vadd.f32 %v2273, %v2277
    %v2282 = vadd.f32 %v2274, %v2278
    %2284 = vrot.lane.b32.xlu0 %v2279, 112
    %v2285 = vpop.permute.xlu0 %2284
    %v2286 = vsel %vm59, %v2285, 0
    %2288 = vmatpush.msra.mxu0 0.0
    %2289 = vmatpush.msra.mxu0 0.0
    %2290 = vmatpush.msra.mxu0 0.0
    %2291 = vmatpush.msra.mxu0 0.0
    %2292 = vmatpush.msra.mxu0 0.0
    %2293 = vmatpush.msra.mxu0 0.0
    %2294 = vmatpush.msra.mxu0 0.0
    %2295 = vmatpush.msra.mxu0 0.0
    %2296 = vmatpush.msra.mxu0 0.0
    %2297 = vmatpush.msra.mxu0 0.0
    %2298 = vmatpush.msra.mxu0 0.0
    %2299 = vmatpush.msra.mxu0 0.0
    %2300 = vmatpush.msra.mxu0 0.0
    %2301 = vmatpush.msra.mxu0 0.0
    %2302 = vmatpush.msra.mxu0 %v36
    %2303 = vmatpush.msra.mxu0 %v35
    %2304 = vmatmul.f32.gmra.mxu0 %v2286
    %v2305 = vpop.f32.mrf.mxu0
    %v2306 = vadd.f32 %v348, %v2305
    %2307 = vdwg.mxu0
    %2309 = vrot.lane.b32.xlu0 %v2280, 112
    %v2310 = vpop.permute.xlu0 %2309
    %v2311 = vsel %vm59, %v2310, 0
    %2313 = vmatpush.msra.mxu0 0.0
    %2314 = vmatpush.msra.mxu0 0.0
    %2315 = vmatpush.msra.mxu0 0.0
    %2316 = vmatpush.msra.mxu0 0.0
    %2317 = vmatpush.msra.mxu0 0.0
    %2318 = vmatpush.msra.mxu0 0.0
    %2319 = vmatpush.msra.mxu0 0.0
    %2320 = vmatpush.msra.mxu0 0.0
    %2321 = vmatpush.msra.mxu0 0.0
    %2322 = vmatpush.msra.mxu0 0.0
    %2323 = vmatpush.msra.mxu0 0.0
    %2324 = vmatpush.msra.mxu0 0.0
    %2325 = vmatpush.msra.mxu0 0.0
    %2326 = vmatpush.msra.mxu0 0.0
    %2327 = vmatpush.msra.mxu0 %v38
    %2328 = vmatpush.msra.mxu0 %v37
    %2329 = vmatmul.f32.gmra.mxu0 %v2311
    %v2330 = vpop.f32.mrf.mxu0
    %v2331 = vadd.f32 %v349, %v2330
    %2332 = vdwg.mxu0
    %2334 = vrot.lane.b32.xlu0 %v2281, 112
    %v2335 = vpop.permute.xlu0 %2334
    %v2336 = vsel %vm59, %v2335, 0
    %2338 = vmatpush.msra.mxu0 0.0
    %2339 = vmatpush.msra.mxu0 0.0
    %2340 = vmatpush.msra.mxu0 0.0
    %2341 = vmatpush.msra.mxu0 0.0
    %2342 = vmatpush.msra.mxu0 0.0
    %2343 = vmatpush.msra.mxu0 0.0
    %2344 = vmatpush.msra.mxu0 0.0
    %2345 = vmatpush.msra.mxu0 0.0
    %2346 = vmatpush.msra.mxu0 0.0
    %2347 = vmatpush.msra.mxu0 0.0
    %2348 = vmatpush.msra.mxu0 0.0
    %2349 = vmatpush.msra.mxu0 0.0
    %2350 = vmatpush.msra.mxu0 0.0
    %2351 = vmatpush.msra.mxu0 0.0
    %2352 = vmatpush.msra.mxu0 %v40
    %2353 = vmatpush.msra.mxu0 %v39
    %2354 = vmatmul.f32.gmra.mxu0 %v2336
    %v2355 = vpop.f32.mrf.mxu0
    %v2356 = vadd.f32 %v350, %v2355
    %2357 = vdwg.mxu0
    %2359 = vrot.lane.b32.xlu0 %v2282, 112
    %v2360 = vpop.permute.xlu0 %2359
    %v2361 = vsel %vm59, %v2360, 0
    %2363 = vmatpush.msra.mxu0 0.0
    %2364 = vmatpush.msra.mxu0 0.0
    %2365 = vmatpush.msra.mxu0 0.0
    %2366 = vmatpush.msra.mxu0 0.0
    %2367 = vmatpush.msra.mxu0 0.0
    %2368 = vmatpush.msra.mxu0 0.0
    %2369 = vmatpush.msra.mxu0 0.0
    %2370 = vmatpush.msra.mxu0 0.0
    %2371 = vmatpush.msra.mxu0 0.0
    %2372 = vmatpush.msra.mxu0 0.0
    %2373 = vmatpush.msra.mxu0 0.0
    %2374 = vmatpush.msra.mxu0 0.0
    %2375 = vmatpush.msra.mxu0 0.0
    %2376 = vmatpush.msra.mxu0 0.0
    %2377 = vmatpush.msra.mxu0 %v42
    %2378 = vmatpush.msra.mxu0 %v41
    %2379 = vmatmul.f32.gmra.mxu0 %v2361
    %v2380 = vpop.f32.mrf.mxu0
    %v2381 = vadd.f32 %v351, %v2380
    %2382 = vdwg.mxu0
    %v2383 = vrot.slane %v2306, 4
    %v2384 = vsel %vm457, 0.0, %v2383
    %v2386 = vunpack.c.l.s4 1983009808
    %v2387 = vunpack.c.0.s8 %v2386
    %v2388 = vperm.slane %v2306, %v2387
    %v2390 = vunpack.c.l.s4 1983009808
    %v2391 = vunpack.c.0.s8 %v2390
    %v2392 = vperm.slane %v2384, %v2391
    %v2393 = vrot.slane %v2388, 4
    %v2394 = vsel %vm457, 0.0, %v2393
    %v2396 = vunpack.c.l.s4 1934713408
    %v2397 = vunpack.c.0.s8 %v2396
    %v2398 = vperm.slane %v2388, %v2397
    %v2400 = vunpack.c.l.s4 1934713408
    %v2401 = vunpack.c.0.s8 %v2400
    %v2402 = vperm.slane %v2394, %v2401
    %v2403 = vrot.slane %v2392, 4
    %v2404 = vsel %vm457, 0.0, %v2403
    %v2406 = vunpack.c.l.s4 1934713408
    %v2407 = vunpack.c.0.s8 %v2406
    %v2408 = vperm.slane %v2392, %v2407
    %v2410 = vunpack.c.l.s4 1934713408
    %v2411 = vunpack.c.0.s8 %v2410
    %v2412 = vperm.slane %v2404, %v2411
    %v2413 = vrot.slane %v2398, 4
    %v2414 = vsel %vm457, 0.0, %v2413
    %v2415 = vrot.slane %v2402, 4
    %v2416 = vsel %vm457, 0.0, %v2415
    %v2417 = vrot.slane %v2408, 4
    %v2418 = vsel %vm457, 0.0, %v2417
    %v2419 = vrot.slane %v2412, 4
    %v2420 = vsel %vm457, 0.0, %v2419
    %v2421 = vrot.slane %v2331, 4
    %v2422 = vsel %vm457, 0.0, %v2421
    %v2424 = vunpack.c.l.s4 1983009808
    %v2425 = vunpack.c.0.s8 %v2424
    %v2426 = vperm.slane %v2331, %v2425
    %v2428 = vunpack.c.l.s4 1983009808
    %v2429 = vunpack.c.0.s8 %v2428
    %v2430 = vperm.slane %v2422, %v2429
    %v2431 = vrot.slane %v2426, 4
    %v2432 = vsel %vm457, 0.0, %v2431
    %v2434 = vunpack.c.l.s4 1934713408
    %v2435 = vunpack.c.0.s8 %v2434
    %v2436 = vperm.slane %v2426, %v2435
    %v2438 = vunpack.c.l.s4 1934713408
    %v2439 = vunpack.c.0.s8 %v2438
    %v2440 = vperm.slane %v2432, %v2439
    %v2441 = vrot.slane %v2430, 4
    %v2442 = vsel %vm457, 0.0, %v2441
    %v2444 = vunpack.c.l.s4 1934713408
    %v2445 = vunpack.c.0.s8 %v2444
    %v2446 = vperm.slane %v2430, %v2445
    %v2448 = vunpack.c.l.s4 1934713408
    %v2449 = vunpack.c.0.s8 %v2448
    %v2450 = vperm.slane %v2442, %v2449
    %v2451 = vrot.slane %v2436, 4
    %v2452 = vsel %vm457, 0.0, %v2451
    %v2453 = vrot.slane %v2440, 4
    %v2454 = vsel %vm457, 0.0, %v2453
    %v2455 = vrot.slane %v2446, 4
    %v2456 = vsel %vm457, 0.0, %v2455
    %v2457 = vrot.slane %v2450, 4
    %v2458 = vsel %vm457, 0.0, %v2457
    %v2459 = vrot.slane %v2356, 4
    %v2460 = vsel %vm457, 0.0, %v2459
    %v2462 = vunpack.c.l.s4 1983009808
    %v2463 = vunpack.c.0.s8 %v2462
    %v2464 = vperm.slane %v2356, %v2463
    %v2466 = vunpack.c.l.s4 1983009808
    %v2467 = vunpack.c.0.s8 %v2466
    %v2468 = vperm.slane %v2460, %v2467
    %v2469 = vrot.slane %v2464, 4
    %v2470 = vsel %vm457, 0.0, %v2469
    %v2472 = vunpack.c.l.s4 1934713408
    %v2473 = vunpack.c.0.s8 %v2472
    %v2474 = vperm.slane %v2464, %v2473
    %v2476 = vunpack.c.l.s4 1934713408
    %v2477 = vunpack.c.0.s8 %v2476
    %v2478 = vperm.slane %v2470, %v2477
    %v2479 = vrot.slane %v2468, 4
    %v2480 = vsel %vm457, 0.0, %v2479
    %v2482 = vunpack.c.l.s4 1934713408
    %v2483 = vunpack.c.0.s8 %v2482
    %v2484 = vperm.slane %v2468, %v2483
    %v2486 = vunpack.c.l.s4 1934713408
    %v2487 = vunpack.c.0.s8 %v2486
    %v2488 = vperm.slane %v2480, %v2487
    %v2489 = vrot.slane %v2474, 4
    %v2490 = vsel %vm457, 0.0, %v2489
    %v2491 = vrot.slane %v2478, 4
    %v2492 = vsel %vm457, 0.0, %v2491
    %v2493 = vrot.slane %v2484, 4
    %v2494 = vsel %vm457, 0.0, %v2493
    %v2495 = vrot.slane %v2488, 4
    %v2496 = vsel %vm457, 0.0, %v2495
    %v2497 = vrot.slane %v2381, 4
    %v2498 = vsel %vm457, 0.0, %v2497
    %v2500 = vunpack.c.l.s4 1983009808
    %v2501 = vunpack.c.0.s8 %v2500
    %v2502 = vperm.slane %v2381, %v2501
    %v2504 = vunpack.c.l.s4 1983009808
    %v2505 = vunpack.c.0.s8 %v2504
    %v2506 = vperm.slane %v2498, %v2505
    %v2507 = vrot.slane %v2502, 4
    %v2508 = vsel %vm457, 0.0, %v2507
    %v2510 = vunpack.c.l.s4 1934713408
    %v2511 = vunpack.c.0.s8 %v2510
    %v2512 = vperm.slane %v2502, %v2511
    %v2514 = vunpack.c.l.s4 1934713408
    %v2515 = vunpack.c.0.s8 %v2514
    %v2516 = vperm.slane %v2508, %v2515
    %v2517 = vrot.slane %v2506, 4
    %v2518 = vsel %vm457, 0.0, %v2517
    %v2520 = vunpack.c.l.s4 1934713408
    %v2521 = vunpack.c.0.s8 %v2520
    %v2522 = vperm.slane %v2506, %v2521
    %v2524 = vunpack.c.l.s4 1934713408
    %v2525 = vunpack.c.0.s8 %v2524
    %v2526 = vperm.slane %v2518, %v2525
    %v2527 = vrot.slane %v2512, 4
    %v2528 = vsel %vm457, 0.0, %v2527
    %v2529 = vrot.slane %v2516, 4
    %v2530 = vsel %vm457, 0.0, %v2529
    %v2531 = vrot.slane %v2522, 4
    %v2532 = vsel %vm457, 0.0, %v2531
    %v2533 = vrot.slane %v2526, 4
    %v2534 = vsel %vm457, 0.0, %v2533
    %2539 = vrot.lane.b32.xlu0 %v2414, 16
    %v2540 = vpop.permute.xlu0 %2539
    %2541 = vrot.lane.b32.xlu0 %v2452, 16
    %v2542 = vpop.permute.xlu0 %2541
    %2543 = vrot.lane.b32.xlu0 %v2490, 16
    %v2544 = vpop.permute.xlu0 %2543
    %2545 = vrot.lane.b32.xlu0 %v2528, 16
    %v2546 = vpop.permute.xlu0 %2545
    %2555 = vrot.lane.b32.xlu0 %v2402, 32
    %v2556 = vpop.permute.xlu0 %2555
    %2557 = vrot.lane.b32.xlu0 %v2440, 32
    %v2558 = vpop.permute.xlu0 %2557
    %2559 = vrot.lane.b32.xlu0 %v2478, 32
    %v2560 = vpop.permute.xlu0 %2559
    %2561 = vrot.lane.b32.xlu0 %v2516, 32
    %v2562 = vpop.permute.xlu0 %2561
    %2571 = vrot.lane.b32.xlu0 %v2416, 48
    %v2572 = vpop.permute.xlu0 %2571
    %2573 = vrot.lane.b32.xlu0 %v2454, 48
    %v2574 = vpop.permute.xlu0 %2573
    %2575 = vrot.lane.b32.xlu0 %v2492, 48
    %v2576 = vpop.permute.xlu0 %2575
    %2577 = vrot.lane.b32.xlu0 %v2530, 48
    %v2578 = vpop.permute.xlu0 %2577
    %2587 = vrot.lane.b32.xlu0 %v2408, 64
    %v2588 = vpop.permute.xlu0 %2587
    %2589 = vrot.lane.b32.xlu0 %v2446, 64
    %v2590 = vpop.permute.xlu0 %2589
    %2591 = vrot.lane.b32.xlu0 %v2484, 64
    %v2592 = vpop.permute.xlu0 %2591
    %2593 = vrot.lane.b32.xlu0 %v2522, 64
    %v2594 = vpop.permute.xlu0 %2593
    %2603 = vrot.lane.b32.xlu0 %v2418, 80
    %v2604 = vpop.permute.xlu0 %2603
    %2605 = vrot.lane.b32.xlu0 %v2456, 80
    %v2606 = vpop.permute.xlu0 %2605
    %2607 = vrot.lane.b32.xlu0 %v2494, 80
    %v2608 = vpop.permute.xlu0 %2607
    %2609 = vrot.lane.b32.xlu0 %v2532, 80
    %v2610 = vpop.permute.xlu0 %2609
    %2619 = vrot.lane.b32.xlu0 %v2412, 96
    %v2620 = vpop.permute.xlu0 %2619
    %2621 = vrot.lane.b32.xlu0 %v2450, 96
    %v2622 = vpop.permute.xlu0 %2621
    %2623 = vrot.lane.b32.xlu0 %v2488, 96
    %v2624 = vpop.permute.xlu0 %2623
    %2625 = vrot.lane.b32.xlu0 %v2526, 96
    %v2626 = vpop.permute.xlu0 %2625
    %2635 = vrot.lane.b32.xlu0 %v2420, 112
    %v2636 = vpop.permute.xlu0 %2635
    %2637 = vrot.lane.b32.xlu0 %v2458, 112
    %v2638 = vpop.permute.xlu0 %2637
    %2639 = vrot.lane.b32.xlu0 %v2496, 112
    %v2640 = vpop.permute.xlu0 %2639
    %2641 = vrot.lane.b32.xlu0 %v2534, 112
    %v2642 = vpop.permute.xlu0 %2641
    %v2647 = vsel %vm59, %v2398, %v2540
    %v2648 = vsel %vm59, %v2436, %v2542
    %v2649 = vsel %vm59, %v2474, %v2544
    %v2650 = vsel %vm59, %v2512, %v2546
    %v2651 = vsel %vm725, %v2647, %v2556
    %v2652 = vsel %vm725, %v2648, %v2558
    %v2653 = vsel %vm725, %v2649, %v2560
    %v2654 = vsel %vm725, %v2650, %v2562
    %v2655 = vsel %vm730, %v2651, %v2572
    %v2656 = vsel %vm730, %v2652, %v2574
    %v2657 = vsel %vm730, %v2653, %v2576
    %v2658 = vsel %vm730, %v2654, %v2578
    %v2659 = vsel %vm735, %v2655, %v2588
    %v2660 = vsel %vm735, %v2656, %v2590
    %v2661 = vsel %vm735, %v2657, %v2592
    %v2662 = vsel %vm735, %v2658, %v2594
    %v2663 = vsel %vm740, %v2659, %v2604
    %v2664 = vsel %vm740, %v2660, %v2606
    %v2665 = vsel %vm740, %v2661, %v2608
    %v2666 = vsel %vm740, %v2662, %v2610
    %v2667 = vsel %vm745, %v2663, %v2620
    %v2668 = vsel %vm745, %v2664, %v2622
    %v2669 = vsel %vm745, %v2665, %v2624
    %v2670 = vsel %vm745, %v2666, %v2626
    %v2671 = vsel %vm750, %v2667, %v2636
    %v2672 = vsel %vm750, %v2668, %v2638
    %v2673 = vsel %vm750, %v2669, %v2640
    %v2674 = vsel %vm750, %v2670, %v2642
    %2675 = vst [vmem:[#allocation2 + $0x3] sm:$0x1] %v2671
    %2676 = vst [vmem:[#allocation2 + $0xb] sm:$0x1] %v2672
    %2677 = vst [vmem:[#allocation2 + $0x13] sm:$0x1] %v2673
    %2678 = vst [vmem:[#allocation2 + $0x1b] sm:$0x1] %v2674
    %v2679 = vld [vmem:[%s0 + $0x20] sm:$0xff]
    %v2680 = vld [vmem:[%s0 + $0x60] sm:$0xff]
    %v2681 = vld [vmem:[%s0 + $0xa0] sm:$0xff]
    %v2682 = vld [vmem:[%s0 + $0xe0] sm:$0xff]
    %2683 = vmatpush.msra.mxu0 0.0
    %2684 = vmatpush.msra.mxu0 0.0
    %2685 = vmatpush.msra.mxu0 0.0
    %2686 = vmatpush.msra.mxu0 0.0
    %2687 = vmatpush.msra.mxu0 0.0
    %2688 = vmatpush.msra.mxu0 0.0
    %2689 = vmatpush.msra.mxu0 0.0
    %2690 = vmatpush.msra.mxu0 0.0
    %2691 = vmatpush.msra.mxu0 0.0
    %2692 = vmatpush.msra.mxu0 0.0
    %2693 = vmatpush.msra.mxu0 0.0
    %2694 = vmatpush.msra.mxu0 0.0
    %2695 = vmatpush.msra.mxu0 0.0
    %2696 = vmatpush.msra.mxu0 0.0
    %2697 = vmatpush.msra.mxu0 %v28
    %2698 = vmatpush.msra.mxu0 %v27
    %2699 = vmatmul.f32.gmra.mxu0 %v2286
    %v2700 = vpop.f32.mrf.mxu0
    %v2701 = vadd.f32 0.0, %v2700
    %2702 = vdwg.mxu0
    %2703 = vmatpush.msra.mxu0 0.0
    %2704 = vmatpush.msra.mxu0 0.0
    %2705 = vmatpush.msra.mxu0 0.0
    %2706 = vmatpush.msra.mxu0 0.0
    %2707 = vmatpush.msra.mxu0 0.0
    %2708 = vmatpush.msra.mxu0 0.0
    %2709 = vmatpush.msra.mxu0 0.0
    %2710 = vmatpush.msra.mxu0 0.0
    %2711 = vmatpush.msra.mxu0 0.0
    %2712 = vmatpush.msra.mxu0 0.0
    %2713 = vmatpush.msra.mxu0 0.0
    %2714 = vmatpush.msra.mxu0 0.0
    %2715 = vmatpush.msra.mxu0 0.0
    %2716 = vmatpush.msra.mxu0 0.0
    %2717 = vmatpush.msra.mxu0 %v30
    %2718 = vmatpush.msra.mxu0 %v29
    %2719 = vmatmul.f32.gmra.mxu0 %v2311
    %v2720 = vpop.f32.mrf.mxu0
    %v2721 = vadd.f32 0.0, %v2720
    %2722 = vdwg.mxu0
    %2723 = vmatpush.msra.mxu0 0.0
    %2724 = vmatpush.msra.mxu0 0.0
    %2725 = vmatpush.msra.mxu0 0.0
    %2726 = vmatpush.msra.mxu0 0.0
    %2727 = vmatpush.msra.mxu0 0.0
    %2728 = vmatpush.msra.mxu0 0.0
    %2729 = vmatpush.msra.mxu0 0.0
    %2730 = vmatpush.msra.mxu0 0.0
    %2731 = vmatpush.msra.mxu0 0.0
    %2732 = vmatpush.msra.mxu0 0.0
    %2733 = vmatpush.msra.mxu0 0.0
    %2734 = vmatpush.msra.mxu0 0.0
    %2735 = vmatpush.msra.mxu0 0.0
    %2736 = vmatpush.msra.mxu0 0.0
    %2737 = vmatpush.msra.mxu0 %v32
    %2738 = vmatpush.msra.mxu0 %v31
    %2739 = vmatmul.f32.gmra.mxu0 %v2336
    %v2740 = vpop.f32.mrf.mxu0
    %v2741 = vadd.f32 0.0, %v2740
    %2742 = vdwg.mxu0
    %2743 = vmatpush.msra.mxu0 0.0
    %2744 = vmatpush.msra.mxu0 0.0
    %2745 = vmatpush.msra.mxu0 0.0
    %2746 = vmatpush.msra.mxu0 0.0
    %2747 = vmatpush.msra.mxu0 0.0
    %2748 = vmatpush.msra.mxu0 0.0
    %2749 = vmatpush.msra.mxu0 0.0
    %2750 = vmatpush.msra.mxu0 0.0
    %2751 = vmatpush.msra.mxu0 0.0
    %2752 = vmatpush.msra.mxu0 0.0
    %2753 = vmatpush.msra.mxu0 0.0
    %2754 = vmatpush.msra.mxu0 0.0
    %2755 = vmatpush.msra.mxu0 0.0
    %2756 = vmatpush.msra.mxu0 0.0
    %2757 = vmatpush.msra.mxu0 %v34
    %2758 = vmatpush.msra.mxu0 %v33
    %2759 = vmatmul.f32.gmra.mxu0 %v2361
    %v2760 = vpop.f32.mrf.mxu0
    %v2761 = vadd.f32 0.0, %v2760
    %2762 = vdwg.mxu0
    %v2763 = vadd.f32 %v2679, %v2701
    %v2764 = vadd.f32 %v2680, %v2721
    %v2765 = vadd.f32 %v2681, %v2741
    %v2766 = vadd.f32 %v2682, %v2761
    %v2767 = vxor.u32 %v2763, 2147483648
    %v2768 = vxor.u32 %v2764, 2147483648
    %v2769 = vxor.u32 %v2765, 2147483648
    %v2770 = vxor.u32 %v2766, 2147483648
    %v2771 = vmul.f32 %v2767, 1.442695
    %v2772 = vpow.pop %v2771
    %v2773 = vmul.f32 %v2768, 1.442695
    %v2774 = vpow.pop %v2773
    %v2775 = vmul.f32 %v2769, 1.442695
    %v2776 = vpow.pop %v2775
    %v2777 = vmul.f32 %v2770, 1.442695
    %v2778 = vpow.pop %v2777
    %v2779 = vadd.f32 %v2772, 1.0
    %v2780 = vadd.f32 %v2774, 1.0
    %v2781 = vadd.f32 %v2776, 1.0
    %v2782 = vadd.f32 %v2778, 1.0
    %v2783 = vrcp.pop %v2779
    %v2784 = vmul.f32 %v2779, %v2783
    %v2785 = vsub.f32 1.0, %v2784
    %v2786 = vmul.f32 %v2783, %v2785
    %v2787 = vadd.f32 %v2783, %v2786
    %vm2788 = vweird.f32 %v2779
    %vm2789 = vweird.f32 %v2783
    %vm2790 = vmor %vm2788, %vm2789
    %v2791 = vsel %vm2790, %v2783, %v2787
    %v2792 = vand.u32 2147483647, %v2779
    %vm2793 = vcmp.eq.f32.partialorder %v2792, 8.507059e+37
    %v2794 = vand.u32 %v2779, 2147483648
    %v2795 = vor.u32 1.1754944e-38, %v2794
    %v2796 = vsel %vm2793, %v2795, %v2791
    %v2797 = vmul.f32 1.0, %v2796
    %v2798 = vrcp.pop %v2780
    %v2799 = vmul.f32 %v2780, %v2798
    %v2800 = vsub.f32 1.0, %v2799
    %v2801 = vmul.f32 %v2798, %v2800
    %v2802 = vadd.f32 %v2798, %v2801
    %vm2803 = vweird.f32 %v2780
    %vm2804 = vweird.f32 %v2798
    %vm2805 = vmor %vm2803, %vm2804
    %v2806 = vsel %vm2805, %v2798, %v2802
    %v2807 = vand.u32 2147483647, %v2780
    %vm2808 = vcmp.eq.f32.partialorder %v2807, 8.507059e+37
    %v2809 = vand.u32 %v2780, 2147483648
    %v2810 = vor.u32 1.1754944e-38, %v2809
    %v2811 = vsel %vm2808, %v2810, %v2806
    %v2812 = vmul.f32 1.0, %v2811
    %v2813 = vrcp.pop %v2781
    %v2814 = vmul.f32 %v2781, %v2813
    %v2815 = vsub.f32 1.0, %v2814
    %v2816 = vmul.f32 %v2813, %v2815
    %v2817 = vadd.f32 %v2813, %v2816
    %vm2818 = vweird.f32 %v2781
    %vm2819 = vweird.f32 %v2813
    %vm2820 = vmor %vm2818, %vm2819
    %v2821 = vsel %vm2820, %v2813, %v2817
    %v2822 = vand.u32 2147483647, %v2781
    %vm2823 = vcmp.eq.f32.partialorder %v2822, 8.507059e+37
    %v2824 = vand.u32 %v2781, 2147483648
    %v2825 = vor.u32 1.1754944e-38, %v2824
    %v2826 = vsel %vm2823, %v2825, %v2821
    %v2827 = vmul.f32 1.0, %v2826
    %v2828 = vrcp.pop %v2782
    %v2829 = vmul.f32 %v2782, %v2828
    %v2830 = vsub.f32 1.0, %v2829
    %v2831 = vmul.f32 %v2828, %v2830
    %v2832 = vadd.f32 %v2828, %v2831
    %vm2833 = vweird.f32 %v2782
    %vm2834 = vweird.f32 %v2828
    %vm2835 = vmor %vm2833, %vm2834
    %v2836 = vsel %vm2835, %v2828, %v2832
    %v2837 = vand.u32 2147483647, %v2782
    %vm2838 = vcmp.eq.f32.partialorder %v2837, 8.507059e+37
    %v2839 = vand.u32 %v2782, 2147483648
    %v2840 = vor.u32 1.1754944e-38, %v2839
    %v2841 = vsel %vm2838, %v2840, %v2836
    %v2842 = vmul.f32 1.0, %v2841
    %v2843 = vadd.f32 %v2701, %v241
    %v2844 = vadd.f32 %v2721, %v243
    %v2845 = vadd.f32 %v2741, %v245
    %v2846 = vadd.f32 %v2761, %v247
    %2851 = vrot.lane.b32.xlu0 %v2843, 96
    %v2852 = vpop.permute.xlu0 %2851
    %2853 = vrot.lane.b32.xlu0 %v2844, 96
    %v2854 = vpop.permute.xlu0 %2853
    %2855 = vrot.lane.b32.xlu0 %v2845, 96
    %v2856 = vpop.permute.xlu0 %2855
    %2857 = vrot.lane.b32.xlu0 %v2846, 96
    %v2858 = vpop.permute.xlu0 %2857
    %v2863 = vmul.f32 %v2797, %v2852
    %v2864 = vmul.f32 %v2812, %v2854
    %v2865 = vmul.f32 %v2827, %v2856
    %v2866 = vmul.f32 %v2842, %v2858
    %2871 = vrot.lane.b32.xlu0 %v2863, 32
    %v2872 = vpop.permute.xlu0 %2871
    %2873 = vrot.lane.b32.xlu0 %v2864, 32
    %v2874 = vpop.permute.xlu0 %2873
    %2875 = vrot.lane.b32.xlu0 %v2865, 32
    %v2876 = vpop.permute.xlu0 %2875
    %2877 = vrot.lane.b32.xlu0 %v2866, 32
    %v2878 = vpop.permute.xlu0 %2877
    %v2883 = vadd.f32 %v2679, %v2872
    %v2884 = vadd.f32 %v2680, %v2874
    %v2885 = vadd.f32 %v2681, %v2876
    %v2886 = vadd.f32 %v2682, %v2878
    %v2887 = vtanh.pop %v2883
    %v2888 = vtanh.pop %v2884
    %v2889 = vtanh.pop %v2885
    %v2890 = vtanh.pop %v2886
    %v2891 = vsub.f32 1.0, %v2797
    %v2892 = vsub.f32 1.0, %v2812
    %v2893 = vsub.f32 1.0, %v2827
    %v2894 = vsub.f32 1.0, %v2842
    %2899 = vrot.lane.b32.xlu0 %v2887, 112
    %v2900 = vpop.permute.xlu0 %2899
    %2901 = vrot.lane.b32.xlu0 %v2888, 112
    %v2902 = vpop.permute.xlu0 %2901
    %2903 = vrot.lane.b32.xlu0 %v2889, 112
    %v2904 = vpop.permute.xlu0 %2903
    %2905 = vrot.lane.b32.xlu0 %v2890, 112
    %v2906 = vpop.permute.xlu0 %2905
    %v2911 = vmul.f32 %v2891, %v2900
    %v2912 = vmul.f32 %v2892, %v2902
    %v2913 = vmul.f32 %v2893, %v2904
    %v2914 = vmul.f32 %v2894, %v2906
    %v2915 = vmul.f32 %v2797, %v2279
    %v2916 = vmul.f32 %v2812, %v2280
    %v2917 = vmul.f32 %v2827, %v2281
    %v2918 = vmul.f32 %v2842, %v2282
    %v2919 = vadd.f32 %v2911, %v2915
    %v2920 = vadd.f32 %v2912, %v2916
    %v2921 = vadd.f32 %v2913, %v2917
    %v2922 = vadd.f32 %v2914, %v2918
    %2924 = vrot.lane.b32.xlu0 %v2919, 112
    %v2925 = vpop.permute.xlu0 %2924
    %v2926 = vsel %vm59, %v2925, 0
    %2928 = vmatpush.msra.mxu0 0.0
    %2929 = vmatpush.msra.mxu0 0.0
    %2930 = vmatpush.msra.mxu0 0.0
    %2931 = vmatpush.msra.mxu0 0.0
    %2932 = vmatpush.msra.mxu0 0.0
    %2933 = vmatpush.msra.mxu0 0.0
    %2934 = vmatpush.msra.mxu0 0.0
    %2935 = vmatpush.msra.mxu0 0.0
    %2936 = vmatpush.msra.mxu0 0.0
    %2937 = vmatpush.msra.mxu0 0.0
    %2938 = vmatpush.msra.mxu0 0.0
    %2939 = vmatpush.msra.mxu0 0.0
    %2940 = vmatpush.msra.mxu0 0.0
    %2941 = vmatpush.msra.mxu0 0.0
    %2942 = vmatpush.msra.mxu0 %v36
    %2943 = vmatpush.msra.mxu0 %v35
    %2944 = vmatmul.f32.gmra.mxu0 %v2926
    %v2945 = vpop.f32.mrf.mxu0
    %v2946 = vadd.f32 %v348, %v2945
    %2947 = vdwg.mxu0
    %2949 = vrot.lane.b32.xlu0 %v2920, 112
    %v2950 = vpop.permute.xlu0 %2949
    %v2951 = vsel %vm59, %v2950, 0
    %2953 = vmatpush.msra.mxu0 0.0
    %2954 = vmatpush.msra.mxu0 0.0
    %2955 = vmatpush.msra.mxu0 0.0
    %2956 = vmatpush.msra.mxu0 0.0
    %2957 = vmatpush.msra.mxu0 0.0
    %2958 = vmatpush.msra.mxu0 0.0
    %2959 = vmatpush.msra.mxu0 0.0
    %2960 = vmatpush.msra.mxu0 0.0
    %2961 = vmatpush.msra.mxu0 0.0
    %2962 = vmatpush.msra.mxu0 0.0
    %2963 = vmatpush.msra.mxu0 0.0
    %2964 = vmatpush.msra.mxu0 0.0
    %2965 = vmatpush.msra.mxu0 0.0
    %2966 = vmatpush.msra.mxu0 0.0
    %2967 = vmatpush.msra.mxu0 %v38
    %2968 = vmatpush.msra.mxu0 %v37
    %2969 = vmatmul.f32.gmra.mxu0 %v2951
    %v2970 = vpop.f32.mrf.mxu0
    %v2971 = vadd.f32 %v349, %v2970
    %2972 = vdwg.mxu0
    %2974 = vrot.lane.b32.xlu0 %v2921, 112
    %v2975 = vpop.permute.xlu0 %2974
    %v2976 = vsel %vm59, %v2975, 0
    %2978 = vmatpush.msra.mxu0 0.0
    %2979 = vmatpush.msra.mxu0 0.0
    %2980 = vmatpush.msra.mxu0 0.0
    %2981 = vmatpush.msra.mxu0 0.0
    %2982 = vmatpush.msra.mxu0 0.0
    %2983 = vmatpush.msra.mxu0 0.0
    %2984 = vmatpush.msra.mxu0 0.0
    %2985 = vmatpush.msra.mxu0 0.0
    %2986 = vmatpush.msra.mxu0 0.0
    %2987 = vmatpush.msra.mxu0 0.0
    %2988 = vmatpush.msra.mxu0 0.0
    %2989 = vmatpush.msra.mxu0 0.0
    %2990 = vmatpush.msra.mxu0 0.0
    %2991 = vmatpush.msra.mxu0 0.0
    %2992 = vmatpush.msra.mxu0 %v40
    %2993 = vmatpush.msra.mxu0 %v39
    %2994 = vmatmul.f32.gmra.mxu0 %v2976
    %v2995 = vpop.f32.mrf.mxu0
    %v2996 = vadd.f32 %v350, %v2995
    %2997 = vdwg.mxu0
    %2999 = vrot.lane.b32.xlu0 %v2922, 112
    %v3000 = vpop.permute.xlu0 %2999
    %v3001 = vsel %vm59, %v3000, 0
    %3003 = vmatpush.msra.mxu0 0.0
    %3004 = vmatpush.msra.mxu0 0.0
    %3005 = vmatpush.msra.mxu0 0.0
    %3006 = vmatpush.msra.mxu0 0.0
    %3007 = vmatpush.msra.mxu0 0.0
    %3008 = vmatpush.msra.mxu0 0.0
    %3009 = vmatpush.msra.mxu0 0.0
    %3010 = vmatpush.msra.mxu0 0.0
    %3011 = vmatpush.msra.mxu0 0.0
    %3012 = vmatpush.msra.mxu0 0.0
    %3013 = vmatpush.msra.mxu0 0.0
    %3014 = vmatpush.msra.mxu0 0.0
    %3015 = vmatpush.msra.mxu0 0.0
    %3016 = vmatpush.msra.mxu0 0.0
    %3017 = vmatpush.msra.mxu0 %v42
    %3018 = vmatpush.msra.mxu0 %v41
    %3019 = vmatmul.f32.gmra.mxu0 %v3001
    %v3020 = vpop.f32.mrf.mxu0
    %v3021 = vadd.f32 %v351, %v3020
    %3022 = vdwg.mxu0
    %v3023 = vrot.slane %v2946, 4
    %v3024 = vsel %vm457, 0.0, %v3023
    %v3026 = vunpack.c.l.s4 1983009808
    %v3027 = vunpack.c.0.s8 %v3026
    %v3028 = vperm.slane %v2946, %v3027
    %v3030 = vunpack.c.l.s4 1983009808
    %v3031 = vunpack.c.0.s8 %v3030
    %v3032 = vperm.slane %v3024, %v3031
    %v3033 = vrot.slane %v3028, 4
    %v3034 = vsel %vm457, 0.0, %v3033
    %v3036 = vunpack.c.l.s4 1934713408
    %v3037 = vunpack.c.0.s8 %v3036
    %v3038 = vperm.slane %v3028, %v3037
    %v3040 = vunpack.c.l.s4 1934713408
    %v3041 = vunpack.c.0.s8 %v3040
    %v3042 = vperm.slane %v3034, %v3041
    %v3043 = vrot.slane %v3032, 4
    %v3044 = vsel %vm457, 0.0, %v3043
    %v3046 = vunpack.c.l.s4 1934713408
    %v3047 = vunpack.c.0.s8 %v3046
    %v3048 = vperm.slane %v3032, %v3047
    %v3050 = vunpack.c.l.s4 1934713408
    %v3051 = vunpack.c.0.s8 %v3050
    %v3052 = vperm.slane %v3044, %v3051
    %v3053 = vrot.slane %v3038, 4
    %v3054 = vsel %vm457, 0.0, %v3053
    %v3055 = vrot.slane %v3042, 4
    %v3056 = vsel %vm457, 0.0, %v3055
    %v3057 = vrot.slane %v3048, 4
    %v3058 = vsel %vm457, 0.0, %v3057
    %v3059 = vrot.slane %v3052, 4
    %v3060 = vsel %vm457, 0.0, %v3059
    %v3061 = vrot.slane %v2971, 4
    %v3062 = vsel %vm457, 0.0, %v3061
    %v3064 = vunpack.c.l.s4 1983009808
    %v3065 = vunpack.c.0.s8 %v3064
    %v3066 = vperm.slane %v2971, %v3065
    %v3068 = vunpack.c.l.s4 1983009808
    %v3069 = vunpack.c.0.s8 %v3068
    %v3070 = vperm.slane %v3062, %v3069
    %v3071 = vrot.slane %v3066, 4
    %v3072 = vsel %vm457, 0.0, %v3071
    %v3074 = vunpack.c.l.s4 1934713408
    %v3075 = vunpack.c.0.s8 %v3074
    %v3076 = vperm.slane %v3066, %v3075
    %v3078 = vunpack.c.l.s4 1934713408
    %v3079 = vunpack.c.0.s8 %v3078
    %v3080 = vperm.slane %v3072, %v3079
    %v3081 = vrot.slane %v3070, 4
    %v3082 = vsel %vm457, 0.0, %v3081
    %v3084 = vunpack.c.l.s4 1934713408
    %v3085 = vunpack.c.0.s8 %v3084
    %v3086 = vperm.slane %v3070, %v3085
    %v3088 = vunpack.c.l.s4 1934713408
    %v3089 = vunpack.c.0.s8 %v3088
    %v3090 = vperm.slane %v3082, %v3089
    %v3091 = vrot.slane %v3076, 4
    %v3092 = vsel %vm457, 0.0, %v3091
    %v3093 = vrot.slane %v3080, 4
    %v3094 = vsel %vm457, 0.0, %v3093
    %v3095 = vrot.slane %v3086, 4
    %v3096 = vsel %vm457, 0.0, %v3095
    %v3097 = vrot.slane %v3090, 4
    %v3098 = vsel %vm457, 0.0, %v3097
    %v3099 = vrot.slane %v2996, 4
    %v3100 = vsel %vm457, 0.0, %v3099
    %v3102 = vunpack.c.l.s4 1983009808
    %v3103 = vunpack.c.0.s8 %v3102
    %v3104 = vperm.slane %v2996, %v3103
    %v3106 = vunpack.c.l.s4 1983009808
    %v3107 = vunpack.c.0.s8 %v3106
    %v3108 = vperm.slane %v3100, %v3107
    %v3109 = vrot.slane %v3104, 4
    %v3110 = vsel %vm457, 0.0, %v3109
    %v3112 = vunpack.c.l.s4 1934713408
    %v3113 = vunpack.c.0.s8 %v3112
    %v3114 = vperm.slane %v3104, %v3113
    %v3116 = vunpack.c.l.s4 1934713408
    %v3117 = vunpack.c.0.s8 %v3116
    %v3118 = vperm.slane %v3110, %v3117
    %v3119 = vrot.slane %v3108, 4
    %v3120 = vsel %vm457, 0.0, %v3119
    %v3122 = vunpack.c.l.s4 1934713408
    %v3123 = vunpack.c.0.s8 %v3122
    %v3124 = vperm.slane %v3108, %v3123
    %v3126 = vunpack.c.l.s4 1934713408
    %v3127 = vunpack.c.0.s8 %v3126
    %v3128 = vperm.slane %v3120, %v3127
    %v3129 = vrot.slane %v3114, 4
    %v3130 = vsel %vm457, 0.0, %v3129
    %v3131 = vrot.slane %v3118, 4
    %v3132 = vsel %vm457, 0.0, %v3131
    %v3133 = vrot.slane %v3124, 4
    %v3134 = vsel %vm457, 0.0, %v3133
    %v3135 = vrot.slane %v3128, 4
    %v3136 = vsel %vm457, 0.0, %v3135
    %v3137 = vrot.slane %v3021, 4
    %v3138 = vsel %vm457, 0.0, %v3137
    %v3140 = vunpack.c.l.s4 1983009808
    %v3141 = vunpack.c.0.s8 %v3140
    %v3142 = vperm.slane %v3021, %v3141
    %v3144 = vunpack.c.l.s4 1983009808
    %v3145 = vunpack.c.0.s8 %v3144
    %v3146 = vperm.slane %v3138, %v3145
    %v3147 = vrot.slane %v3142, 4
    %v3148 = vsel %vm457, 0.0, %v3147
    %v3150 = vunpack.c.l.s4 1934713408
    %v3151 = vunpack.c.0.s8 %v3150
    %v3152 = vperm.slane %v3142, %v3151
    %v3154 = vunpack.c.l.s4 1934713408
    %v3155 = vunpack.c.0.s8 %v3154
    %v3156 = vperm.slane %v3148, %v3155
    %v3157 = vrot.slane %v3146, 4
    %v3158 = vsel %vm457, 0.0, %v3157
    %v3160 = vunpack.c.l.s4 1934713408
    %v3161 = vunpack.c.0.s8 %v3160
    %v3162 = vperm.slane %v3146, %v3161
    %v3164 = vunpack.c.l.s4 1934713408
    %v3165 = vunpack.c.0.s8 %v3164
    %v3166 = vperm.slane %v3158, %v3165
    %v3167 = vrot.slane %v3152, 4
    %v3168 = vsel %vm457, 0.0, %v3167
    %v3169 = vrot.slane %v3156, 4
    %v3170 = vsel %vm457, 0.0, %v3169
    %v3171 = vrot.slane %v3162, 4
    %v3172 = vsel %vm457, 0.0, %v3171
    %v3173 = vrot.slane %v3166, 4
    %v3174 = vsel %vm457, 0.0, %v3173
    %3179 = vrot.lane.b32.xlu0 %v3054, 16
    %v3180 = vpop.permute.xlu0 %3179
    %3181 = vrot.lane.b32.xlu0 %v3092, 16
    %v3182 = vpop.permute.xlu0 %3181
    %3183 = vrot.lane.b32.xlu0 %v3130, 16
    %v3184 = vpop.permute.xlu0 %3183
    %3185 = vrot.lane.b32.xlu0 %v3168, 16
    %v3186 = vpop.permute.xlu0 %3185
    %3195 = vrot.lane.b32.xlu0 %v3042, 32
    %v3196 = vpop.permute.xlu0 %3195
    %3197 = vrot.lane.b32.xlu0 %v3080, 32
    %v3198 = vpop.permute.xlu0 %3197
    %3199 = vrot.lane.b32.xlu0 %v3118, 32
    %v3200 = vpop.permute.xlu0 %3199
    %3201 = vrot.lane.b32.xlu0 %v3156, 32
    %v3202 = vpop.permute.xlu0 %3201
    %3211 = vrot.lane.b32.xlu0 %v3056, 48
    %v3212 = vpop.permute.xlu0 %3211
    %3213 = vrot.lane.b32.xlu0 %v3094, 48
    %v3214 = vpop.permute.xlu0 %3213
    %3215 = vrot.lane.b32.xlu0 %v3132, 48
    %v3216 = vpop.permute.xlu0 %3215
    %3217 = vrot.lane.b32.xlu0 %v3170, 48
    %v3218 = vpop.permute.xlu0 %3217
    %3227 = vrot.lane.b32.xlu0 %v3048, 64
    %v3228 = vpop.permute.xlu0 %3227
    %3229 = vrot.lane.b32.xlu0 %v3086, 64
    %v3230 = vpop.permute.xlu0 %3229
    %3231 = vrot.lane.b32.xlu0 %v3124, 64
    %v3232 = vpop.permute.xlu0 %3231
    %3233 = vrot.lane.b32.xlu0 %v3162, 64
    %v3234 = vpop.permute.xlu0 %3233
    %3243 = vrot.lane.b32.xlu0 %v3058, 80
    %v3244 = vpop.permute.xlu0 %3243
    %3245 = vrot.lane.b32.xlu0 %v3096, 80
    %v3246 = vpop.permute.xlu0 %3245
    %3247 = vrot.lane.b32.xlu0 %v3134, 80
    %v3248 = vpop.permute.xlu0 %3247
    %3249 = vrot.lane.b32.xlu0 %v3172, 80
    %v3250 = vpop.permute.xlu0 %3249
    %3259 = vrot.lane.b32.xlu0 %v3052, 96
    %v3260 = vpop.permute.xlu0 %3259
    %3261 = vrot.lane.b32.xlu0 %v3090, 96
    %v3262 = vpop.permute.xlu0 %3261
    %3263 = vrot.lane.b32.xlu0 %v3128, 96
    %v3264 = vpop.permute.xlu0 %3263
    %3265 = vrot.lane.b32.xlu0 %v3166, 96
    %v3266 = vpop.permute.xlu0 %3265
    %3275 = vrot.lane.b32.xlu0 %v3060, 112
    %v3276 = vpop.permute.xlu0 %3275
    %3277 = vrot.lane.b32.xlu0 %v3098, 112
    %v3278 = vpop.permute.xlu0 %3277
    %3279 = vrot.lane.b32.xlu0 %v3136, 112
    %v3280 = vpop.permute.xlu0 %3279
    %3281 = vrot.lane.b32.xlu0 %v3174, 112
    %v3282 = vpop.permute.xlu0 %3281
    %v3287 = vsel %vm59, %v3038, %v3180
    %v3288 = vsel %vm59, %v3076, %v3182
    %v3289 = vsel %vm59, %v3114, %v3184
    %v3290 = vsel %vm59, %v3152, %v3186
    %v3291 = vsel %vm725, %v3287, %v3196
    %v3292 = vsel %vm725, %v3288, %v3198
    %v3293 = vsel %vm725, %v3289, %v3200
    %v3294 = vsel %vm725, %v3290, %v3202
    %v3295 = vsel %vm730, %v3291, %v3212
    %v3296 = vsel %vm730, %v3292, %v3214
    %v3297 = vsel %vm730, %v3293, %v3216
    %v3298 = vsel %vm730, %v3294, %v3218
    %v3299 = vsel %vm735, %v3295, %v3228
    %v3300 = vsel %vm735, %v3296, %v3230
    %v3301 = vsel %vm735, %v3297, %v3232
    %v3302 = vsel %vm735, %v3298, %v3234
    %v3303 = vsel %vm740, %v3299, %v3244
    %v3304 = vsel %vm740, %v3300, %v3246
    %v3305 = vsel %vm740, %v3301, %v3248
    %v3306 = vsel %vm740, %v3302, %v3250
    %v3307 = vsel %vm745, %v3303, %v3260
    %v3308 = vsel %vm745, %v3304, %v3262
    %v3309 = vsel %vm745, %v3305, %v3264
    %v3310 = vsel %vm745, %v3306, %v3266
    %v3311 = vsel %vm750, %v3307, %v3276
    %v3312 = vsel %vm750, %v3308, %v3278
    %v3313 = vsel %vm750, %v3309, %v3280
    %v3314 = vsel %vm750, %v3310, %v3282
    %3315 = vst [vmem:[#allocation2 + $0x4] sm:$0x1] %v3311
    %3316 = vst [vmem:[#allocation2 + $0xc] sm:$0x1] %v3312
    %3317 = vst [vmem:[#allocation2 + $0x14] sm:$0x1] %v3313
    %3318 = vst [vmem:[#allocation2 + $0x1c] sm:$0x1] %v3314
    %v3319 = vld [vmem:[%s0 + $0x28] sm:$0xff]
    %v3320 = vld [vmem:[%s0 + $0x68] sm:$0xff]
    %v3321 = vld [vmem:[%s0 + $0xa8] sm:$0xff]
    %v3322 = vld [vmem:[%s0 + $0xe8] sm:$0xff]
    %3323 = vmatpush.msra.mxu0 0.0
    %3324 = vmatpush.msra.mxu0 0.0
    %3325 = vmatpush.msra.mxu0 0.0
    %3326 = vmatpush.msra.mxu0 0.0
    %3327 = vmatpush.msra.mxu0 0.0
    %3328 = vmatpush.msra.mxu0 0.0
    %3329 = vmatpush.msra.mxu0 0.0
    %3330 = vmatpush.msra.mxu0 0.0
    %3331 = vmatpush.msra.mxu0 0.0
    %3332 = vmatpush.msra.mxu0 0.0
    %3333 = vmatpush.msra.mxu0 0.0
    %3334 = vmatpush.msra.mxu0 0.0
    %3335 = vmatpush.msra.mxu0 0.0
    %3336 = vmatpush.msra.mxu0 0.0
    %3337 = vmatpush.msra.mxu0 %v28
    %3338 = vmatpush.msra.mxu0 %v27
    %3339 = vmatmul.f32.gmra.mxu0 %v2926
    %v3340 = vpop.f32.mrf.mxu0
    %v3341 = vadd.f32 0.0, %v3340
    %3342 = vdwg.mxu0
    %3343 = vmatpush.msra.mxu0 0.0
    %3344 = vmatpush.msra.mxu0 0.0
    %3345 = vmatpush.msra.mxu0 0.0
    %3346 = vmatpush.msra.mxu0 0.0
    %3347 = vmatpush.msra.mxu0 0.0
    %3348 = vmatpush.msra.mxu0 0.0
    %3349 = vmatpush.msra.mxu0 0.0
    %3350 = vmatpush.msra.mxu0 0.0
    %3351 = vmatpush.msra.mxu0 0.0
    %3352 = vmatpush.msra.mxu0 0.0
    %3353 = vmatpush.msra.mxu0 0.0
    %3354 = vmatpush.msra.mxu0 0.0
    %3355 = vmatpush.msra.mxu0 0.0
    %3356 = vmatpush.msra.mxu0 0.0
    %3357 = vmatpush.msra.mxu0 %v30
    %3358 = vmatpush.msra.mxu0 %v29
    %3359 = vmatmul.f32.gmra.mxu0 %v2951
    %v3360 = vpop.f32.mrf.mxu0
    %v3361 = vadd.f32 0.0, %v3360
    %3362 = vdwg.mxu0
    %3363 = vmatpush.msra.mxu0 0.0
    %3364 = vmatpush.msra.mxu0 0.0
    %3365 = vmatpush.msra.mxu0 0.0
    %3366 = vmatpush.msra.mxu0 0.0
    %3367 = vmatpush.msra.mxu0 0.0
    %3368 = vmatpush.msra.mxu0 0.0
    %3369 = vmatpush.msra.mxu0 0.0
    %3370 = vmatpush.msra.mxu0 0.0
    %3371 = vmatpush.msra.mxu0 0.0
    %3372 = vmatpush.msra.mxu0 0.0
    %3373 = vmatpush.msra.mxu0 0.0
    %3374 = vmatpush.msra.mxu0 0.0
    %3375 = vmatpush.msra.mxu0 0.0
    %3376 = vmatpush.msra.mxu0 0.0
    %3377 = vmatpush.msra.mxu0 %v32
    %3378 = vmatpush.msra.mxu0 %v31
    %3379 = vmatmul.f32.gmra.mxu0 %v2976
    %v3380 = vpop.f32.mrf.mxu0
    %v3381 = vadd.f32 0.0, %v3380
    %3382 = vdwg.mxu0
    %3383 = vmatpush.msra.mxu0 0.0
    %3384 = vmatpush.msra.mxu0 0.0
    %3385 = vmatpush.msra.mxu0 0.0
    %3386 = vmatpush.msra.mxu0 0.0
    %3387 = vmatpush.msra.mxu0 0.0
    %3388 = vmatpush.msra.mxu0 0.0
    %3389 = vmatpush.msra.mxu0 0.0
    %3390 = vmatpush.msra.mxu0 0.0
    %3391 = vmatpush.msra.mxu0 0.0
    %3392 = vmatpush.msra.mxu0 0.0
    %3393 = vmatpush.msra.mxu0 0.0
    %3394 = vmatpush.msra.mxu0 0.0
    %3395 = vmatpush.msra.mxu0 0.0
    %3396 = vmatpush.msra.mxu0 0.0
    %3397 = vmatpush.msra.mxu0 %v34
    %3398 = vmatpush.msra.mxu0 %v33
    %3399 = vmatmul.f32.gmra.mxu0 %v3001
    %v3400 = vpop.f32.mrf.mxu0
    %v3401 = vadd.f32 0.0, %v3400
    %3402 = vdwg.mxu0
    %v3403 = vadd.f32 %v3319, %v3341
    %v3404 = vadd.f32 %v3320, %v3361
    %v3405 = vadd.f32 %v3321, %v3381
    %v3406 = vadd.f32 %v3322, %v3401
    %v3407 = vxor.u32 %v3403, 2147483648
    %v3408 = vxor.u32 %v3404, 2147483648
    %v3409 = vxor.u32 %v3405, 2147483648
    %v3410 = vxor.u32 %v3406, 2147483648
    %v3411 = vmul.f32 %v3407, 1.442695
    %v3412 = vpow.pop %v3411
    %v3413 = vmul.f32 %v3408, 1.442695
    %v3414 = vpow.pop %v3413
    %v3415 = vmul.f32 %v3409, 1.442695
    %v3416 = vpow.pop %v3415
    %v3417 = vmul.f32 %v3410, 1.442695
    %v3418 = vpow.pop %v3417
    %v3419 = vadd.f32 %v3412, 1.0
    %v3420 = vadd.f32 %v3414, 1.0
    %v3421 = vadd.f32 %v3416, 1.0
    %v3422 = vadd.f32 %v3418, 1.0
    %v3423 = vrcp.pop %v3419
    %v3424 = vmul.f32 %v3419, %v3423
    %v3425 = vsub.f32 1.0, %v3424
    %v3426 = vmul.f32 %v3423, %v3425
    %v3427 = vadd.f32 %v3423, %v3426
    %vm3428 = vweird.f32 %v3419
    %vm3429 = vweird.f32 %v3423
    %vm3430 = vmor %vm3428, %vm3429
    %v3431 = vsel %vm3430, %v3423, %v3427
    %v3432 = vand.u32 2147483647, %v3419
    %vm3433 = vcmp.eq.f32.partialorder %v3432, 8.507059e+37
    %v3434 = vand.u32 %v3419, 2147483648
    %v3435 = vor.u32 1.1754944e-38, %v3434
    %v3436 = vsel %vm3433, %v3435, %v3431
    %v3437 = vmul.f32 1.0, %v3436
    %v3438 = vrcp.pop %v3420
    %v3439 = vmul.f32 %v3420, %v3438
    %v3440 = vsub.f32 1.0, %v3439
    %v3441 = vmul.f32 %v3438, %v3440
    %v3442 = vadd.f32 %v3438, %v3441
    %vm3443 = vweird.f32 %v3420
    %vm3444 = vweird.f32 %v3438
    %vm3445 = vmor %vm3443, %vm3444
    %v3446 = vsel %vm3445, %v3438, %v3442
    %v3447 = vand.u32 2147483647, %v3420
    %vm3448 = vcmp.eq.f32.partialorder %v3447, 8.507059e+37
    %v3449 = vand.u32 %v3420, 2147483648
    %v3450 = vor.u32 1.1754944e-38, %v3449
    %v3451 = vsel %vm3448, %v3450, %v3446
    %v3452 = vmul.f32 1.0, %v3451
    %v3453 = vrcp.pop %v3421
    %v3454 = vmul.f32 %v3421, %v3453
    %v3455 = vsub.f32 1.0, %v3454
    %v3456 = vmul.f32 %v3453, %v3455
    %v3457 = vadd.f32 %v3453, %v3456
    %vm3458 = vweird.f32 %v3421
    %vm3459 = vweird.f32 %v3453
    %vm3460 = vmor %vm3458, %vm3459
    %v3461 = vsel %vm3460, %v3453, %v3457
    %v3462 = vand.u32 2147483647, %v3421
    %vm3463 = vcmp.eq.f32.partialorder %v3462, 8.507059e+37
    %v3464 = vand.u32 %v3421, 2147483648
    %v3465 = vor.u32 1.1754944e-38, %v3464
    %v3466 = vsel %vm3463, %v3465, %v3461
    %v3467 = vmul.f32 1.0, %v3466
    %v3468 = vrcp.pop %v3422
    %v3469 = vmul.f32 %v3422, %v3468
    %v3470 = vsub.f32 1.0, %v3469
    %v3471 = vmul.f32 %v3468, %v3470
    %v3472 = vadd.f32 %v3468, %v3471
    %vm3473 = vweird.f32 %v3422
    %vm3474 = vweird.f32 %v3468
    %vm3475 = vmor %vm3473, %vm3474
    %v3476 = vsel %vm3475, %v3468, %v3472
    %v3477 = vand.u32 2147483647, %v3422
    %vm3478 = vcmp.eq.f32.partialorder %v3477, 8.507059e+37
    %v3479 = vand.u32 %v3422, 2147483648
    %v3480 = vor.u32 1.1754944e-38, %v3479
    %v3481 = vsel %vm3478, %v3480, %v3476
    %v3482 = vmul.f32 1.0, %v3481
    %v3483 = vadd.f32 %v3341, %v241
    %v3484 = vadd.f32 %v3361, %v243
    %v3485 = vadd.f32 %v3381, %v245
    %v3486 = vadd.f32 %v3401, %v247
    %3491 = vrot.lane.b32.xlu0 %v3483, 96
    %v3492 = vpop.permute.xlu0 %3491
    %3493 = vrot.lane.b32.xlu0 %v3484, 96
    %v3494 = vpop.permute.xlu0 %3493
    %3495 = vrot.lane.b32.xlu0 %v3485, 96
    %v3496 = vpop.permute.xlu0 %3495
    %3497 = vrot.lane.b32.xlu0 %v3486, 96
    %v3498 = vpop.permute.xlu0 %3497
    %v3503 = vmul.f32 %v3437, %v3492
    %v3504 = vmul.f32 %v3452, %v3494
    %v3505 = vmul.f32 %v3467, %v3496
    %v3506 = vmul.f32 %v3482, %v3498
    %3511 = vrot.lane.b32.xlu0 %v3503, 32
    %v3512 = vpop.permute.xlu0 %3511
    %3513 = vrot.lane.b32.xlu0 %v3504, 32
    %v3514 = vpop.permute.xlu0 %3513
    %3515 = vrot.lane.b32.xlu0 %v3505, 32
    %v3516 = vpop.permute.xlu0 %3515
    %3517 = vrot.lane.b32.xlu0 %v3506, 32
    %v3518 = vpop.permute.xlu0 %3517
    %v3523 = vadd.f32 %v3319, %v3512
    %v3524 = vadd.f32 %v3320, %v3514
    %v3525 = vadd.f32 %v3321, %v3516
    %v3526 = vadd.f32 %v3322, %v3518
    %v3527 = vtanh.pop %v3523
    %v3528 = vtanh.pop %v3524
    %v3529 = vtanh.pop %v3525
    %v3530 = vtanh.pop %v3526
    %v3531 = vsub.f32 1.0, %v3437
    %v3532 = vsub.f32 1.0, %v3452
    %v3533 = vsub.f32 1.0, %v3467
    %v3534 = vsub.f32 1.0, %v3482
    %3539 = vrot.lane.b32.xlu0 %v3527, 112
    %v3540 = vpop.permute.xlu0 %3539
    %3541 = vrot.lane.b32.xlu0 %v3528, 112
    %v3542 = vpop.permute.xlu0 %3541
    %3543 = vrot.lane.b32.xlu0 %v3529, 112
    %v3544 = vpop.permute.xlu0 %3543
    %3545 = vrot.lane.b32.xlu0 %v3530, 112
    %v3546 = vpop.permute.xlu0 %3545
    %v3551 = vmul.f32 %v3531, %v3540
    %v3552 = vmul.f32 %v3532, %v3542
    %v3553 = vmul.f32 %v3533, %v3544
    %v3554 = vmul.f32 %v3534, %v3546
    %v3555 = vmul.f32 %v3437, %v2919
    %v3556 = vmul.f32 %v3452, %v2920
    %v3557 = vmul.f32 %v3467, %v2921
    %v3558 = vmul.f32 %v3482, %v2922
    %v3559 = vadd.f32 %v3551, %v3555
    %v3560 = vadd.f32 %v3552, %v3556
    %v3561 = vadd.f32 %v3553, %v3557
    %v3562 = vadd.f32 %v3554, %v3558
    %3564 = vrot.lane.b32.xlu0 %v3559, 112
    %v3565 = vpop.permute.xlu0 %3564
    %v3566 = vsel %vm59, %v3565, 0
    %3568 = vmatpush.msra.mxu0 0.0
    %3569 = vmatpush.msra.mxu0 0.0
    %3570 = vmatpush.msra.mxu0 0.0
    %3571 = vmatpush.msra.mxu0 0.0
    %3572 = vmatpush.msra.mxu0 0.0
    %3573 = vmatpush.msra.mxu0 0.0
    %3574 = vmatpush.msra.mxu0 0.0
    %3575 = vmatpush.msra.mxu0 0.0
    %3576 = vmatpush.msra.mxu0 0.0
    %3577 = vmatpush.msra.mxu0 0.0
    %3578 = vmatpush.msra.mxu0 0.0
    %3579 = vmatpush.msra.mxu0 0.0
    %3580 = vmatpush.msra.mxu0 0.0
    %3581 = vmatpush.msra.mxu0 0.0
    %3582 = vmatpush.msra.mxu0 %v36
    %3583 = vmatpush.msra.mxu0 %v35
    %3584 = vmatmul.f32.gmra.mxu0 %v3566
    %v3585 = vpop.f32.mrf.mxu0
    %v3586 = vadd.f32 %v348, %v3585
    %3587 = vdwg.mxu0
    %3589 = vrot.lane.b32.xlu0 %v3560, 112
    %v3590 = vpop.permute.xlu0 %3589
    %v3591 = vsel %vm59, %v3590, 0
    %3593 = vmatpush.msra.mxu0 0.0
    %3594 = vmatpush.msra.mxu0 0.0
    %3595 = vmatpush.msra.mxu0 0.0
    %3596 = vmatpush.msra.mxu0 0.0
    %3597 = vmatpush.msra.mxu0 0.0
    %3598 = vmatpush.msra.mxu0 0.0
    %3599 = vmatpush.msra.mxu0 0.0
    %3600 = vmatpush.msra.mxu0 0.0
    %3601 = vmatpush.msra.mxu0 0.0
    %3602 = vmatpush.msra.mxu0 0.0
    %3603 = vmatpush.msra.mxu0 0.0
    %3604 = vmatpush.msra.mxu0 0.0
    %3605 = vmatpush.msra.mxu0 0.0
    %3606 = vmatpush.msra.mxu0 0.0
    %3607 = vmatpush.msra.mxu0 %v38
    %3608 = vmatpush.msra.mxu0 %v37
    %3609 = vmatmul.f32.gmra.mxu0 %v3591
    %v3610 = vpop.f32.mrf.mxu0
    %v3611 = vadd.f32 %v349, %v3610
    %3612 = vdwg.mxu0
    %3614 = vrot.lane.b32.xlu0 %v3561, 112
    %v3615 = vpop.permute.xlu0 %3614
    %v3616 = vsel %vm59, %v3615, 0
    %3618 = vmatpush.msra.mxu0 0.0
    %3619 = vmatpush.msra.mxu0 0.0
    %3620 = vmatpush.msra.mxu0 0.0
    %3621 = vmatpush.msra.mxu0 0.0
    %3622 = vmatpush.msra.mxu0 0.0
    %3623 = vmatpush.msra.mxu0 0.0
    %3624 = vmatpush.msra.mxu0 0.0
    %3625 = vmatpush.msra.mxu0 0.0
    %3626 = vmatpush.msra.mxu0 0.0
    %3627 = vmatpush.msra.mxu0 0.0
    %3628 = vmatpush.msra.mxu0 0.0
    %3629 = vmatpush.msra.mxu0 0.0
    %3630 = vmatpush.msra.mxu0 0.0
    %3631 = vmatpush.msra.mxu0 0.0
    %3632 = vmatpush.msra.mxu0 %v40
    %3633 = vmatpush.msra.mxu0 %v39
    %3634 = vmatmul.f32.gmra.mxu0 %v3616
    %v3635 = vpop.f32.mrf.mxu0
    %v3636 = vadd.f32 %v350, %v3635
    %3637 = vdwg.mxu0
    %3639 = vrot.lane.b32.xlu0 %v3562, 112
    %v3640 = vpop.permute.xlu0 %3639
    %v3641 = vsel %vm59, %v3640, 0
    %3643 = vmatpush.msra.mxu0 0.0
    %3644 = vmatpush.msra.mxu0 0.0
    %3645 = vmatpush.msra.mxu0 0.0
    %3646 = vmatpush.msra.mxu0 0.0
    %3647 = vmatpush.msra.mxu0 0.0
    %3648 = vmatpush.msra.mxu0 0.0
    %3649 = vmatpush.msra.mxu0 0.0
    %3650 = vmatpush.msra.mxu0 0.0
    %3651 = vmatpush.msra.mxu0 0.0
    %3652 = vmatpush.msra.mxu0 0.0
    %3653 = vmatpush.msra.mxu0 0.0
    %3654 = vmatpush.msra.mxu0 0.0
    %3655 = vmatpush.msra.mxu0 0.0
    %3656 = vmatpush.msra.mxu0 0.0
    %3657 = vmatpush.msra.mxu0 %v42
    %3658 = vmatpush.msra.mxu0 %v41
    %3659 = vmatmul.f32.gmra.mxu0 %v3641
    %v3660 = vpop.f32.mrf.mxu0
    %v3661 = vadd.f32 %v351, %v3660
    %3662 = vdwg.mxu0
    %v3663 = vrot.slane %v3586, 4
    %v3664 = vsel %vm457, 0.0, %v3663
    %v3666 = vunpack.c.l.s4 1983009808
    %v3667 = vunpack.c.0.s8 %v3666
    %v3668 = vperm.slane %v3586, %v3667
    %v3670 = vunpack.c.l.s4 1983009808
    %v3671 = vunpack.c.0.s8 %v3670
    %v3672 = vperm.slane %v3664, %v3671
    %v3673 = vrot.slane %v3668, 4
    %v3674 = vsel %vm457, 0.0, %v3673
    %v3676 = vunpack.c.l.s4 1934713408
    %v3677 = vunpack.c.0.s8 %v3676
    %v3678 = vperm.slane %v3668, %v3677
    %v3680 = vunpack.c.l.s4 1934713408
    %v3681 = vunpack.c.0.s8 %v3680
    %v3682 = vperm.slane %v3674, %v3681
    %v3683 = vrot.slane %v3672, 4
    %v3684 = vsel %vm457, 0.0, %v3683
    %v3686 = vunpack.c.l.s4 1934713408
    %v3687 = vunpack.c.0.s8 %v3686
    %v3688 = vperm.slane %v3672, %v3687
    %v3690 = vunpack.c.l.s4 1934713408
    %v3691 = vunpack.c.0.s8 %v3690
    %v3692 = vperm.slane %v3684, %v3691
    %v3693 = vrot.slane %v3678, 4
    %v3694 = vsel %vm457, 0.0, %v3693
    %v3695 = vrot.slane %v3682, 4
    %v3696 = vsel %vm457, 0.0, %v3695
    %v3697 = vrot.slane %v3688, 4
    %v3698 = vsel %vm457, 0.0, %v3697
    %v3699 = vrot.slane %v3692, 4
    %v3700 = vsel %vm457, 0.0, %v3699
    %v3701 = vrot.slane %v3611, 4
    %v3702 = vsel %vm457, 0.0, %v3701
    %v3704 = vunpack.c.l.s4 1983009808
    %v3705 = vunpack.c.0.s8 %v3704
    %v3706 = vperm.slane %v3611, %v3705
    %v3708 = vunpack.c.l.s4 1983009808
    %v3709 = vunpack.c.0.s8 %v3708
    %v3710 = vperm.slane %v3702, %v3709
    %v3711 = vrot.slane %v3706, 4
    %v3712 = vsel %vm457, 0.0, %v3711
    %v3714 = vunpack.c.l.s4 1934713408
    %v3715 = vunpack.c.0.s8 %v3714
    %v3716 = vperm.slane %v3706, %v3715
    %v3718 = vunpack.c.l.s4 1934713408
    %v3719 = vunpack.c.0.s8 %v3718
    %v3720 = vperm.slane %v3712, %v3719
    %v3721 = vrot.slane %v3710, 4
    %v3722 = vsel %vm457, 0.0, %v3721
    %v3724 = vunpack.c.l.s4 1934713408
    %v3725 = vunpack.c.0.s8 %v3724
    %v3726 = vperm.slane %v3710, %v3725
    %v3728 = vunpack.c.l.s4 1934713408
    %v3729 = vunpack.c.0.s8 %v3728
    %v3730 = vperm.slane %v3722, %v3729
    %v3731 = vrot.slane %v3716, 4
    %v3732 = vsel %vm457, 0.0, %v3731
    %v3733 = vrot.slane %v3720, 4
    %v3734 = vsel %vm457, 0.0, %v3733
    %v3735 = vrot.slane %v3726, 4
    %v3736 = vsel %vm457, 0.0, %v3735
    %v3737 = vrot.slane %v3730, 4
    %v3738 = vsel %vm457, 0.0, %v3737
    %v3739 = vrot.slane %v3636, 4
    %v3740 = vsel %vm457, 0.0, %v3739
    %v3742 = vunpack.c.l.s4 1983009808
    %v3743 = vunpack.c.0.s8 %v3742
    %v3744 = vperm.slane %v3636, %v3743
    %v3746 = vunpack.c.l.s4 1983009808
    %v3747 = vunpack.c.0.s8 %v3746
    %v3748 = vperm.slane %v3740, %v3747
    %v3749 = vrot.slane %v3744, 4
    %v3750 = vsel %vm457, 0.0, %v3749
    %v3752 = vunpack.c.l.s4 1934713408
    %v3753 = vunpack.c.0.s8 %v3752
    %v3754 = vperm.slane %v3744, %v3753
    %v3756 = vunpack.c.l.s4 1934713408
    %v3757 = vunpack.c.0.s8 %v3756
    %v3758 = vperm.slane %v3750, %v3757
    %v3759 = vrot.slane %v3748, 4
    %v3760 = vsel %vm457, 0.0, %v3759
    %v3762 = vunpack.c.l.s4 1934713408
    %v3763 = vunpack.c.0.s8 %v3762
    %v3764 = vperm.slane %v3748, %v3763
    %v3766 = vunpack.c.l.s4 1934713408
    %v3767 = vunpack.c.0.s8 %v3766
    %v3768 = vperm.slane %v3760, %v3767
    %v3769 = vrot.slane %v3754, 4
    %v3770 = vsel %vm457, 0.0, %v3769
    %v3771 = vrot.slane %v3758, 4
    %v3772 = vsel %vm457, 0.0, %v3771
    %v3773 = vrot.slane %v3764, 4
    %v3774 = vsel %vm457, 0.0, %v3773
    %v3775 = vrot.slane %v3768, 4
    %v3776 = vsel %vm457, 0.0, %v3775
    %v3777 = vrot.slane %v3661, 4
    %v3778 = vsel %vm457, 0.0, %v3777
    %v3780 = vunpack.c.l.s4 1983009808
    %v3781 = vunpack.c.0.s8 %v3780
    %v3782 = vperm.slane %v3661, %v3781
    %v3784 = vunpack.c.l.s4 1983009808
    %v3785 = vunpack.c.0.s8 %v3784
    %v3786 = vperm.slane %v3778, %v3785
    %v3787 = vrot.slane %v3782, 4
    %v3788 = vsel %vm457, 0.0, %v3787
    %v3790 = vunpack.c.l.s4 1934713408
    %v3791 = vunpack.c.0.s8 %v3790
    %v3792 = vperm.slane %v3782, %v3791
    %v3794 = vunpack.c.l.s4 1934713408
    %v3795 = vunpack.c.0.s8 %v3794
    %v3796 = vperm.slane %v3788, %v3795
    %v3797 = vrot.slane %v3786, 4
    %v3798 = vsel %vm457, 0.0, %v3797
    %v3800 = vunpack.c.l.s4 1934713408
    %v3801 = vunpack.c.0.s8 %v3800
    %v3802 = vperm.slane %v3786, %v3801
    %v3804 = vunpack.c.l.s4 1934713408
    %v3805 = vunpack.c.0.s8 %v3804
    %v3806 = vperm.slane %v3798, %v3805
    %v3807 = vrot.slane %v3792, 4
    %v3808 = vsel %vm457, 0.0, %v3807
    %v3809 = vrot.slane %v3796, 4
    %v3810 = vsel %vm457, 0.0, %v3809
    %v3811 = vrot.slane %v3802, 4
    %v3812 = vsel %vm457, 0.0, %v3811
    %v3813 = vrot.slane %v3806, 4
    %v3814 = vsel %vm457, 0.0, %v3813
    %3819 = vrot.lane.b32.xlu0 %v3694, 16
    %v3820 = vpop.permute.xlu0 %3819
    %3821 = vrot.lane.b32.xlu0 %v3732, 16
    %v3822 = vpop.permute.xlu0 %3821
    %3823 = vrot.lane.b32.xlu0 %v3770, 16
    %v3824 = vpop.permute.xlu0 %3823
    %3825 = vrot.lane.b32.xlu0 %v3808, 16
    %v3826 = vpop.permute.xlu0 %3825
    %3835 = vrot.lane.b32.xlu0 %v3682, 32
    %v3836 = vpop.permute.xlu0 %3835
    %3837 = vrot.lane.b32.xlu0 %v3720, 32
    %v3838 = vpop.permute.xlu0 %3837
    %3839 = vrot.lane.b32.xlu0 %v3758, 32
    %v3840 = vpop.permute.xlu0 %3839
    %3841 = vrot.lane.b32.xlu0 %v3796, 32
    %v3842 = vpop.permute.xlu0 %3841
    %3851 = vrot.lane.b32.xlu0 %v3696, 48
    %v3852 = vpop.permute.xlu0 %3851
    %3853 = vrot.lane.b32.xlu0 %v3734, 48
    %v3854 = vpop.permute.xlu0 %3853
    %3855 = vrot.lane.b32.xlu0 %v3772, 48
    %v3856 = vpop.permute.xlu0 %3855
    %3857 = vrot.lane.b32.xlu0 %v3810, 48
    %v3858 = vpop.permute.xlu0 %3857
    %3867 = vrot.lane.b32.xlu0 %v3688, 64
    %v3868 = vpop.permute.xlu0 %3867
    %3869 = vrot.lane.b32.xlu0 %v3726, 64
    %v3870 = vpop.permute.xlu0 %3869
    %3871 = vrot.lane.b32.xlu0 %v3764, 64
    %v3872 = vpop.permute.xlu0 %3871
    %3873 = vrot.lane.b32.xlu0 %v3802, 64
    %v3874 = vpop.permute.xlu0 %3873
    %3883 = vrot.lane.b32.xlu0 %v3698, 80
    %v3884 = vpop.permute.xlu0 %3883
    %3885 = vrot.lane.b32.xlu0 %v3736, 80
    %v3886 = vpop.permute.xlu0 %3885
    %3887 = vrot.lane.b32.xlu0 %v3774, 80
    %v3888 = vpop.permute.xlu0 %3887
    %3889 = vrot.lane.b32.xlu0 %v3812, 80
    %v3890 = vpop.permute.xlu0 %3889
    %3899 = vrot.lane.b32.xlu0 %v3692, 96
    %v3900 = vpop.permute.xlu0 %3899
    %3901 = vrot.lane.b32.xlu0 %v3730, 96
    %v3902 = vpop.permute.xlu0 %3901
    %3903 = vrot.lane.b32.xlu0 %v3768, 96
    %v3904 = vpop.permute.xlu0 %3903
    %3905 = vrot.lane.b32.xlu0 %v3806, 96
    %v3906 = vpop.permute.xlu0 %3905
    %3915 = vrot.lane.b32.xlu0 %v3700, 112
    %v3916 = vpop.permute.xlu0 %3915
    %3917 = vrot.lane.b32.xlu0 %v3738, 112
    %v3918 = vpop.permute.xlu0 %3917
    %3919 = vrot.lane.b32.xlu0 %v3776, 112
    %v3920 = vpop.permute.xlu0 %3919
    %3921 = vrot.lane.b32.xlu0 %v3814, 112
    %v3922 = vpop.permute.xlu0 %3921
    %v3927 = vsel %vm59, %v3678, %v3820
    %v3928 = vsel %vm59, %v3716, %v3822
    %v3929 = vsel %vm59, %v3754, %v3824
    %v3930 = vsel %vm59, %v3792, %v3826
    %v3931 = vsel %vm725, %v3927, %v3836
    %v3932 = vsel %vm725, %v3928, %v3838
    %v3933 = vsel %vm725, %v3929, %v3840
    %v3934 = vsel %vm725, %v3930, %v3842
    %v3935 = vsel %vm730, %v3931, %v3852
    %v3936 = vsel %vm730, %v3932, %v3854
    %v3937 = vsel %vm730, %v3933, %v3856
    %v3938 = vsel %vm730, %v3934, %v3858
    %v3939 = vsel %vm735, %v3935, %v3868
    %v3940 = vsel %vm735, %v3936, %v3870
    %v3941 = vsel %vm735, %v3937, %v3872
    %v3942 = vsel %vm735, %v3938, %v3874
    %v3943 = vsel %vm740, %v3939, %v3884
    %v3944 = vsel %vm740, %v3940, %v3886
    %v3945 = vsel %vm740, %v3941, %v3888
    %v3946 = vsel %vm740, %v3942, %v3890
    %v3947 = vsel %vm745, %v3943, %v3900
    %v3948 = vsel %vm745, %v3944, %v3902
    %v3949 = vsel %vm745, %v3945, %v3904
    %v3950 = vsel %vm745, %v3946, %v3906
    %v3951 = vsel %vm750, %v3947, %v3916
    %v3952 = vsel %vm750, %v3948, %v3918
    %v3953 = vsel %vm750, %v3949, %v3920
    %v3954 = vsel %vm750, %v3950, %v3922
    %3955 = vst [vmem:[#allocation2 + $0x5] sm:$0x1] %v3951
    %3956 = vst [vmem:[#allocation2 + $0xd] sm:$0x1] %v3952
    %3957 = vst [vmem:[#allocation2 + $0x15] sm:$0x1] %v3953
    %3958 = vst [vmem:[#allocation2 + $0x1d] sm:$0x1] %v3954
    %v3959 = vld [vmem:[%s0 + $0x30] sm:$0xff]
    %v3960 = vld [vmem:[%s0 + $0x70] sm:$0xff]
    %v3961 = vld [vmem:[%s0 + $0xb0] sm:$0xff]
    %v3962 = vld [vmem:[%s0 + $0xf0] sm:$0xff]
    %3963 = vmatpush.msra.mxu0 0.0
    %3964 = vmatpush.msra.mxu0 0.0
    %3965 = vmatpush.msra.mxu0 0.0
    %3966 = vmatpush.msra.mxu0 0.0
    %3967 = vmatpush.msra.mxu0 0.0
    %3968 = vmatpush.msra.mxu0 0.0
    %3969 = vmatpush.msra.mxu0 0.0
    %3970 = vmatpush.msra.mxu0 0.0
    %3971 = vmatpush.msra.mxu0 0.0
    %3972 = vmatpush.msra.mxu0 0.0
    %3973 = vmatpush.msra.mxu0 0.0
    %3974 = vmatpush.msra.mxu0 0.0
    %3975 = vmatpush.msra.mxu0 0.0
    %3976 = vmatpush.msra.mxu0 0.0
    %3977 = vmatpush.msra.mxu0 %v28
    %3978 = vmatpush.msra.mxu0 %v27
    %3979 = vmatmul.f32.gmra.mxu0 %v3566
    %v3980 = vpop.f32.mrf.mxu0
    %v3981 = vadd.f32 0.0, %v3980
    %3982 = vdwg.mxu0
    %3983 = vmatpush.msra.mxu0 0.0
    %3984 = vmatpush.msra.mxu0 0.0
    %3985 = vmatpush.msra.mxu0 0.0
    %3986 = vmatpush.msra.mxu0 0.0
    %3987 = vmatpush.msra.mxu0 0.0
    %3988 = vmatpush.msra.mxu0 0.0
    %3989 = vmatpush.msra.mxu0 0.0
    %3990 = vmatpush.msra.mxu0 0.0
    %3991 = vmatpush.msra.mxu0 0.0
    %3992 = vmatpush.msra.mxu0 0.0
    %3993 = vmatpush.msra.mxu0 0.0
    %3994 = vmatpush.msra.mxu0 0.0
    %3995 = vmatpush.msra.mxu0 0.0
    %3996 = vmatpush.msra.mxu0 0.0
    %3997 = vmatpush.msra.mxu0 %v30
    %3998 = vmatpush.msra.mxu0 %v29
    %3999 = vmatmul.f32.gmra.mxu0 %v3591
    %v4000 = vpop.f32.mrf.mxu0
    %v4001 = vadd.f32 0.0, %v4000
    %4002 = vdwg.mxu0
    %4003 = vmatpush.msra.mxu0 0.0
    %4004 = vmatpush.msra.mxu0 0.0
    %4005 = vmatpush.msra.mxu0 0.0
    %4006 = vmatpush.msra.mxu0 0.0
    %4007 = vmatpush.msra.mxu0 0.0
    %4008 = vmatpush.msra.mxu0 0.0
    %4009 = vmatpush.msra.mxu0 0.0
    %4010 = vmatpush.msra.mxu0 0.0
    %4011 = vmatpush.msra.mxu0 0.0
    %4012 = vmatpush.msra.mxu0 0.0
    %4013 = vmatpush.msra.mxu0 0.0
    %4014 = vmatpush.msra.mxu0 0.0
    %4015 = vmatpush.msra.mxu0 0.0
    %4016 = vmatpush.msra.mxu0 0.0
    %4017 = vmatpush.msra.mxu0 %v32
    %4018 = vmatpush.msra.mxu0 %v31
    %4019 = vmatmul.f32.gmra.mxu0 %v3616
    %v4020 = vpop.f32.mrf.mxu0
    %v4021 = vadd.f32 0.0, %v4020
    %4022 = vdwg.mxu0
    %4023 = vmatpush.msra.mxu0 0.0
    %4024 = vmatpush.msra.mxu0 0.0
    %4025 = vmatpush.msra.mxu0 0.0
    %4026 = vmatpush.msra.mxu0 0.0
    %4027 = vmatpush.msra.mxu0 0.0
    %4028 = vmatpush.msra.mxu0 0.0
    %4029 = vmatpush.msra.mxu0 0.0
    %4030 = vmatpush.msra.mxu0 0.0
    %4031 = vmatpush.msra.mxu0 0.0
    %4032 = vmatpush.msra.mxu0 0.0
    %4033 = vmatpush.msra.mxu0 0.0
    %4034 = vmatpush.msra.mxu0 0.0
    %4035 = vmatpush.msra.mxu0 0.0
    %4036 = vmatpush.msra.mxu0 0.0
    %4037 = vmatpush.msra.mxu0 %v34
    %4038 = vmatpush.msra.mxu0 %v33
    %4039 = vmatmul.f32.gmra.mxu0 %v3641
    %v4040 = vpop.f32.mrf.mxu0
    %v4041 = vadd.f32 0.0, %v4040
    %4042 = vdwg.mxu0
    %v4043 = vadd.f32 %v3959, %v3981
    %v4044 = vadd.f32 %v3960, %v4001
    %v4045 = vadd.f32 %v3961, %v4021
    %v4046 = vadd.f32 %v3962, %v4041
    %v4047 = vxor.u32 %v4043, 2147483648
    %v4048 = vxor.u32 %v4044, 2147483648
    %v4049 = vxor.u32 %v4045, 2147483648
    %v4050 = vxor.u32 %v4046, 2147483648
    %v4051 = vmul.f32 %v4047, 1.442695
    %v4052 = vpow.pop %v4051
    %v4053 = vmul.f32 %v4048, 1.442695
    %v4054 = vpow.pop %v4053
    %v4055 = vmul.f32 %v4049, 1.442695
    %v4056 = vpow.pop %v4055
    %v4057 = vmul.f32 %v4050, 1.442695
    %v4058 = vpow.pop %v4057
    %v4059 = vadd.f32 %v4052, 1.0
    %v4060 = vadd.f32 %v4054, 1.0
    %v4061 = vadd.f32 %v4056, 1.0
    %v4062 = vadd.f32 %v4058, 1.0
    %v4063 = vrcp.pop %v4059
    %v4064 = vmul.f32 %v4059, %v4063
    %v4065 = vsub.f32 1.0, %v4064
    %v4066 = vmul.f32 %v4063, %v4065
    %v4067 = vadd.f32 %v4063, %v4066
    %vm4068 = vweird.f32 %v4059
    %vm4069 = vweird.f32 %v4063
    %vm4070 = vmor %vm4068, %vm4069
    %v4071 = vsel %vm4070, %v4063, %v4067
    %v4072 = vand.u32 2147483647, %v4059
    %vm4073 = vcmp.eq.f32.partialorder %v4072, 8.507059e+37
    %v4074 = vand.u32 %v4059, 2147483648
    %v4075 = vor.u32 1.1754944e-38, %v4074
    %v4076 = vsel %vm4073, %v4075, %v4071
    %v4077 = vmul.f32 1.0, %v4076
    %v4078 = vrcp.pop %v4060
    %v4079 = vmul.f32 %v4060, %v4078
    %v4080 = vsub.f32 1.0, %v4079
    %v4081 = vmul.f32 %v4078, %v4080
    %v4082 = vadd.f32 %v4078, %v4081
    %vm4083 = vweird.f32 %v4060
    %vm4084 = vweird.f32 %v4078
    %vm4085 = vmor %vm4083, %vm4084
    %v4086 = vsel %vm4085, %v4078, %v4082
    %v4087 = vand.u32 2147483647, %v4060
    %vm4088 = vcmp.eq.f32.partialorder %v4087, 8.507059e+37
    %v4089 = vand.u32 %v4060, 2147483648
    %v4090 = vor.u32 1.1754944e-38, %v4089
    %v4091 = vsel %vm4088, %v4090, %v4086
    %v4092 = vmul.f32 1.0, %v4091
    %v4093 = vrcp.pop %v4061
    %v4094 = vmul.f32 %v4061, %v4093
    %v4095 = vsub.f32 1.0, %v4094
    %v4096 = vmul.f32 %v4093, %v4095
    %v4097 = vadd.f32 %v4093, %v4096
    %vm4098 = vweird.f32 %v4061
    %vm4099 = vweird.f32 %v4093
    %vm4100 = vmor %vm4098, %vm4099
    %v4101 = vsel %vm4100, %v4093, %v4097
    %v4102 = vand.u32 2147483647, %v4061
    %vm4103 = vcmp.eq.f32.partialorder %v4102, 8.507059e+37
    %v4104 = vand.u32 %v4061, 2147483648
    %v4105 = vor.u32 1.1754944e-38, %v4104
    %v4106 = vsel %vm4103, %v4105, %v4101
    %v4107 = vmul.f32 1.0, %v4106
    %v4108 = vrcp.pop %v4062
    %v4109 = vmul.f32 %v4062, %v4108
    %v4110 = vsub.f32 1.0, %v4109
    %v4111 = vmul.f32 %v4108, %v4110
    %v4112 = vadd.f32 %v4108, %v4111
    %vm4113 = vweird.f32 %v4062
    %vm4114 = vweird.f32 %v4108
    %vm4115 = vmor %vm4113, %vm4114
    %v4116 = vsel %vm4115, %v4108, %v4112
    %v4117 = vand.u32 2147483647, %v4062
    %vm4118 = vcmp.eq.f32.partialorder %v4117, 8.507059e+37
    %v4119 = vand.u32 %v4062, 2147483648
    %v4120 = vor.u32 1.1754944e-38, %v4119
    %v4121 = vsel %vm4118, %v4120, %v4116
    %v4122 = vmul.f32 1.0, %v4121
    %v4123 = vadd.f32 %v3981, %v241
    %v4124 = vadd.f32 %v4001, %v243
    %v4125 = vadd.f32 %v4021, %v245
    %v4126 = vadd.f32 %v4041, %v247
    %4131 = vrot.lane.b32.xlu0 %v4123, 96
    %v4132 = vpop.permute.xlu0 %4131
    %4133 = vrot.lane.b32.xlu0 %v4124, 96
    %v4134 = vpop.permute.xlu0 %4133
    %4135 = vrot.lane.b32.xlu0 %v4125, 96
    %v4136 = vpop.permute.xlu0 %4135
    %4137 = vrot.lane.b32.xlu0 %v4126, 96
    %v4138 = vpop.permute.xlu0 %4137
    %v4143 = vmul.f32 %v4077, %v4132
    %v4144 = vmul.f32 %v4092, %v4134
    %v4145 = vmul.f32 %v4107, %v4136
    %v4146 = vmul.f32 %v4122, %v4138
    %4151 = vrot.lane.b32.xlu0 %v4143, 32
    %v4152 = vpop.permute.xlu0 %4151
    %4153 = vrot.lane.b32.xlu0 %v4144, 32
    %v4154 = vpop.permute.xlu0 %4153
    %4155 = vrot.lane.b32.xlu0 %v4145, 32
    %v4156 = vpop.permute.xlu0 %4155
    %4157 = vrot.lane.b32.xlu0 %v4146, 32
    %v4158 = vpop.permute.xlu0 %4157
    %v4163 = vadd.f32 %v3959, %v4152
    %v4164 = vadd.f32 %v3960, %v4154
    %v4165 = vadd.f32 %v3961, %v4156
    %v4166 = vadd.f32 %v3962, %v4158
    %v4167 = vtanh.pop %v4163
    %v4168 = vtanh.pop %v4164
    %v4169 = vtanh.pop %v4165
    %v4170 = vtanh.pop %v4166
    %v4171 = vsub.f32 1.0, %v4077
    %v4172 = vsub.f32 1.0, %v4092
    %v4173 = vsub.f32 1.0, %v4107
    %v4174 = vsub.f32 1.0, %v4122
    %4179 = vrot.lane.b32.xlu0 %v4167, 112
    %v4180 = vpop.permute.xlu0 %4179
    %4181 = vrot.lane.b32.xlu0 %v4168, 112
    %v4182 = vpop.permute.xlu0 %4181
    %4183 = vrot.lane.b32.xlu0 %v4169, 112
    %v4184 = vpop.permute.xlu0 %4183
    %4185 = vrot.lane.b32.xlu0 %v4170, 112
    %v4186 = vpop.permute.xlu0 %4185
    %v4191 = vmul.f32 %v4171, %v4180
    %v4192 = vmul.f32 %v4172, %v4182
    %v4193 = vmul.f32 %v4173, %v4184
    %v4194 = vmul.f32 %v4174, %v4186
    %v4195 = vmul.f32 %v4077, %v3559
    %v4196 = vmul.f32 %v4092, %v3560
    %v4197 = vmul.f32 %v4107, %v3561
    %v4198 = vmul.f32 %v4122, %v3562
    %v4199 = vadd.f32 %v4191, %v4195
    %v4200 = vadd.f32 %v4192, %v4196
    %v4201 = vadd.f32 %v4193, %v4197
    %v4202 = vadd.f32 %v4194, %v4198
    %4204 = vrot.lane.b32.xlu0 %v4199, 112
    %v4205 = vpop.permute.xlu0 %4204
    %v4206 = vsel %vm59, %v4205, 0
    %4208 = vmatpush.msra.mxu0 0.0
    %4209 = vmatpush.msra.mxu0 0.0
    %4210 = vmatpush.msra.mxu0 0.0
    %4211 = vmatpush.msra.mxu0 0.0
    %4212 = vmatpush.msra.mxu0 0.0
    %4213 = vmatpush.msra.mxu0 0.0
    %4214 = vmatpush.msra.mxu0 0.0
    %4215 = vmatpush.msra.mxu0 0.0
    %4216 = vmatpush.msra.mxu0 0.0
    %4217 = vmatpush.msra.mxu0 0.0
    %4218 = vmatpush.msra.mxu0 0.0
    %4219 = vmatpush.msra.mxu0 0.0
    %4220 = vmatpush.msra.mxu0 0.0
    %4221 = vmatpush.msra.mxu0 0.0
    %4222 = vmatpush.msra.mxu0 %v36
    %4223 = vmatpush.msra.mxu0 %v35
    %4224 = vmatmul.f32.gmra.mxu0 %v4206
    %v4225 = vpop.f32.mrf.mxu0
    %v4226 = vadd.f32 %v348, %v4225
    %4227 = vdwg.mxu0
    %4229 = vrot.lane.b32.xlu0 %v4200, 112
    %v4230 = vpop.permute.xlu0 %4229
    %v4231 = vsel %vm59, %v4230, 0
    %4233 = vmatpush.msra.mxu0 0.0
    %4234 = vmatpush.msra.mxu0 0.0
    %4235 = vmatpush.msra.mxu0 0.0
    %4236 = vmatpush.msra.mxu0 0.0
    %4237 = vmatpush.msra.mxu0 0.0
    %4238 = vmatpush.msra.mxu0 0.0
    %4239 = vmatpush.msra.mxu0 0.0
    %4240 = vmatpush.msra.mxu0 0.0
    %4241 = vmatpush.msra.mxu0 0.0
    %4242 = vmatpush.msra.mxu0 0.0
    %4243 = vmatpush.msra.mxu0 0.0
    %4244 = vmatpush.msra.mxu0 0.0
    %4245 = vmatpush.msra.mxu0 0.0
    %4246 = vmatpush.msra.mxu0 0.0
    %4247 = vmatpush.msra.mxu0 %v38
    %4248 = vmatpush.msra.mxu0 %v37
    %4249 = vmatmul.f32.gmra.mxu0 %v4231
    %v4250 = vpop.f32.mrf.mxu0
    %v4251 = vadd.f32 %v349, %v4250
    %4252 = vdwg.mxu0
    %4254 = vrot.lane.b32.xlu0 %v4201, 112
    %v4255 = vpop.permute.xlu0 %4254
    %v4256 = vsel %vm59, %v4255, 0
    %4258 = vmatpush.msra.mxu0 0.0
    %4259 = vmatpush.msra.mxu0 0.0
    %4260 = vmatpush.msra.mxu0 0.0
    %4261 = vmatpush.msra.mxu0 0.0
    %4262 = vmatpush.msra.mxu0 0.0
    %4263 = vmatpush.msra.mxu0 0.0
    %4264 = vmatpush.msra.mxu0 0.0
    %4265 = vmatpush.msra.mxu0 0.0
    %4266 = vmatpush.msra.mxu0 0.0
    %4267 = vmatpush.msra.mxu0 0.0
    %4268 = vmatpush.msra.mxu0 0.0
    %4269 = vmatpush.msra.mxu0 0.0
    %4270 = vmatpush.msra.mxu0 0.0
    %4271 = vmatpush.msra.mxu0 0.0
    %4272 = vmatpush.msra.mxu0 %v40
    %4273 = vmatpush.msra.mxu0 %v39
    %4274 = vmatmul.f32.gmra.mxu0 %v4256
    %v4275 = vpop.f32.mrf.mxu0
    %v4276 = vadd.f32 %v350, %v4275
    %4277 = vdwg.mxu0
    %4279 = vrot.lane.b32.xlu0 %v4202, 112
    %v4280 = vpop.permute.xlu0 %4279
    %v4281 = vsel %vm59, %v4280, 0
    %4283 = vmatpush.msra.mxu0 0.0
    %4284 = vmatpush.msra.mxu0 0.0
    %4285 = vmatpush.msra.mxu0 0.0
    %4286 = vmatpush.msra.mxu0 0.0
    %4287 = vmatpush.msra.mxu0 0.0
    %4288 = vmatpush.msra.mxu0 0.0
    %4289 = vmatpush.msra.mxu0 0.0
    %4290 = vmatpush.msra.mxu0 0.0
    %4291 = vmatpush.msra.mxu0 0.0
    %4292 = vmatpush.msra.mxu0 0.0
    %4293 = vmatpush.msra.mxu0 0.0
    %4294 = vmatpush.msra.mxu0 0.0
    %4295 = vmatpush.msra.mxu0 0.0
    %4296 = vmatpush.msra.mxu0 0.0
    %4297 = vmatpush.msra.mxu0 %v42
    %4298 = vmatpush.msra.mxu0 %v41
    %4299 = vmatmul.f32.gmra.mxu0 %v4281
    %v4300 = vpop.f32.mrf.mxu0
    %v4301 = vadd.f32 %v351, %v4300
    %4302 = vdwg.mxu0
    %v4303 = vrot.slane %v4226, 4
    %v4304 = vsel %vm457, 0.0, %v4303
    %v4306 = vunpack.c.l.s4 1983009808
    %v4307 = vunpack.c.0.s8 %v4306
    %v4308 = vperm.slane %v4226, %v4307
    %v4310 = vunpack.c.l.s4 1983009808
    %v4311 = vunpack.c.0.s8 %v4310
    %v4312 = vperm.slane %v4304, %v4311
    %v4313 = vrot.slane %v4308, 4
    %v4314 = vsel %vm457, 0.0, %v4313
    %v4316 = vunpack.c.l.s4 1934713408
    %v4317 = vunpack.c.0.s8 %v4316
    %v4318 = vperm.slane %v4308, %v4317
    %v4320 = vunpack.c.l.s4 1934713408
    %v4321 = vunpack.c.0.s8 %v4320
    %v4322 = vperm.slane %v4314, %v4321
    %v4323 = vrot.slane %v4312, 4
    %v4324 = vsel %vm457, 0.0, %v4323
    %v4326 = vunpack.c.l.s4 1934713408
    %v4327 = vunpack.c.0.s8 %v4326
    %v4328 = vperm.slane %v4312, %v4327
    %v4330 = vunpack.c.l.s4 1934713408
    %v4331 = vunpack.c.0.s8 %v4330
    %v4332 = vperm.slane %v4324, %v4331
    %v4333 = vrot.slane %v4318, 4
    %v4334 = vsel %vm457, 0.0, %v4333
    %v4335 = vrot.slane %v4322, 4
    %v4336 = vsel %vm457, 0.0, %v4335
    %v4337 = vrot.slane %v4328, 4
    %v4338 = vsel %vm457, 0.0, %v4337
    %v4339 = vrot.slane %v4332, 4
    %v4340 = vsel %vm457, 0.0, %v4339
    %v4341 = vrot.slane %v4251, 4
    %v4342 = vsel %vm457, 0.0, %v4341
    %v4344 = vunpack.c.l.s4 1983009808
    %v4345 = vunpack.c.0.s8 %v4344
    %v4346 = vperm.slane %v4251, %v4345
    %v4348 = vunpack.c.l.s4 1983009808
    %v4349 = vunpack.c.0.s8 %v4348
    %v4350 = vperm.slane %v4342, %v4349
    %v4351 = vrot.slane %v4346, 4
    %v4352 = vsel %vm457, 0.0, %v4351
    %v4354 = vunpack.c.l.s4 1934713408
    %v4355 = vunpack.c.0.s8 %v4354
    %v4356 = vperm.slane %v4346, %v4355
    %v4358 = vunpack.c.l.s4 1934713408
    %v4359 = vunpack.c.0.s8 %v4358
    %v4360 = vperm.slane %v4352, %v4359
    %v4361 = vrot.slane %v4350, 4
    %v4362 = vsel %vm457, 0.0, %v4361
    %v4364 = vunpack.c.l.s4 1934713408
    %v4365 = vunpack.c.0.s8 %v4364
    %v4366 = vperm.slane %v4350, %v4365
    %v4368 = vunpack.c.l.s4 1934713408
    %v4369 = vunpack.c.0.s8 %v4368
    %v4370 = vperm.slane %v4362, %v4369
    %v4371 = vrot.slane %v4356, 4
    %v4372 = vsel %vm457, 0.0, %v4371
    %v4373 = vrot.slane %v4360, 4
    %v4374 = vsel %vm457, 0.0, %v4373
    %v4375 = vrot.slane %v4366, 4
    %v4376 = vsel %vm457, 0.0, %v4375
    %v4377 = vrot.slane %v4370, 4
    %v4378 = vsel %vm457, 0.0, %v4377
    %v4379 = vrot.slane %v4276, 4
    %v4380 = vsel %vm457, 0.0, %v4379
    %v4382 = vunpack.c.l.s4 1983009808
    %v4383 = vunpack.c.0.s8 %v4382
    %v4384 = vperm.slane %v4276, %v4383
    %v4386 = vunpack.c.l.s4 1983009808
    %v4387 = vunpack.c.0.s8 %v4386
    %v4388 = vperm.slane %v4380, %v4387
    %v4389 = vrot.slane %v4384, 4
    %v4390 = vsel %vm457, 0.0, %v4389
    %v4392 = vunpack.c.l.s4 1934713408
    %v4393 = vunpack.c.0.s8 %v4392
    %v4394 = vperm.slane %v4384, %v4393
    %v4396 = vunpack.c.l.s4 1934713408
    %v4397 = vunpack.c.0.s8 %v4396
    %v4398 = vperm.slane %v4390, %v4397
    %v4399 = vrot.slane %v4388, 4
    %v4400 = vsel %vm457, 0.0, %v4399
    %v4402 = vunpack.c.l.s4 1934713408
    %v4403 = vunpack.c.0.s8 %v4402
    %v4404 = vperm.slane %v4388, %v4403
    %v4406 = vunpack.c.l.s4 1934713408
    %v4407 = vunpack.c.0.s8 %v4406
    %v4408 = vperm.slane %v4400, %v4407
    %v4409 = vrot.slane %v4394, 4
    %v4410 = vsel %vm457, 0.0, %v4409
    %v4411 = vrot.slane %v4398, 4
    %v4412 = vsel %vm457, 0.0, %v4411
    %v4413 = vrot.slane %v4404, 4
    %v4414 = vsel %vm457, 0.0, %v4413
    %v4415 = vrot.slane %v4408, 4
    %v4416 = vsel %vm457, 0.0, %v4415
    %v4417 = vrot.slane %v4301, 4
    %v4418 = vsel %vm457, 0.0, %v4417
    %v4420 = vunpack.c.l.s4 1983009808
    %v4421 = vunpack.c.0.s8 %v4420
    %v4422 = vperm.slane %v4301, %v4421
    %v4424 = vunpack.c.l.s4 1983009808
    %v4425 = vunpack.c.0.s8 %v4424
    %v4426 = vperm.slane %v4418, %v4425
    %v4427 = vrot.slane %v4422, 4
    %v4428 = vsel %vm457, 0.0, %v4427
    %v4430 = vunpack.c.l.s4 1934713408
    %v4431 = vunpack.c.0.s8 %v4430
    %v4432 = vperm.slane %v4422, %v4431
    %v4434 = vunpack.c.l.s4 1934713408
    %v4435 = vunpack.c.0.s8 %v4434
    %v4436 = vperm.slane %v4428, %v4435
    %v4437 = vrot.slane %v4426, 4
    %v4438 = vsel %vm457, 0.0, %v4437
    %v4440 = vunpack.c.l.s4 1934713408
    %v4441 = vunpack.c.0.s8 %v4440
    %v4442 = vperm.slane %v4426, %v4441
    %v4444 = vunpack.c.l.s4 1934713408
    %v4445 = vunpack.c.0.s8 %v4444
    %v4446 = vperm.slane %v4438, %v4445
    %v4447 = vrot.slane %v4432, 4
    %v4448 = vsel %vm457, 0.0, %v4447
    %v4449 = vrot.slane %v4436, 4
    %v4450 = vsel %vm457, 0.0, %v4449
    %v4451 = vrot.slane %v4442, 4
    %v4452 = vsel %vm457, 0.0, %v4451
    %v4453 = vrot.slane %v4446, 4
    %v4454 = vsel %vm457, 0.0, %v4453
    %4459 = vrot.lane.b32.xlu0 %v4334, 16
    %v4460 = vpop.permute.xlu0 %4459
    %4461 = vrot.lane.b32.xlu0 %v4372, 16
    %v4462 = vpop.permute.xlu0 %4461
    %4463 = vrot.lane.b32.xlu0 %v4410, 16
    %v4464 = vpop.permute.xlu0 %4463
    %4465 = vrot.lane.b32.xlu0 %v4448, 16
    %v4466 = vpop.permute.xlu0 %4465
    %4475 = vrot.lane.b32.xlu0 %v4322, 32
    %v4476 = vpop.permute.xlu0 %4475
    %4477 = vrot.lane.b32.xlu0 %v4360, 32
    %v4478 = vpop.permute.xlu0 %4477
    %4479 = vrot.lane.b32.xlu0 %v4398, 32
    %v4480 = vpop.permute.xlu0 %4479
    %4481 = vrot.lane.b32.xlu0 %v4436, 32
    %v4482 = vpop.permute.xlu0 %4481
    %4491 = vrot.lane.b32.xlu0 %v4336, 48
    %v4492 = vpop.permute.xlu0 %4491
    %4493 = vrot.lane.b32.xlu0 %v4374, 48
    %v4494 = vpop.permute.xlu0 %4493
    %4495 = vrot.lane.b32.xlu0 %v4412, 48
    %v4496 = vpop.permute.xlu0 %4495
    %4497 = vrot.lane.b32.xlu0 %v4450, 48
    %v4498 = vpop.permute.xlu0 %4497
    %4507 = vrot.lane.b32.xlu0 %v4328, 64
    %v4508 = vpop.permute.xlu0 %4507
    %4509 = vrot.lane.b32.xlu0 %v4366, 64
    %v4510 = vpop.permute.xlu0 %4509
    %4511 = vrot.lane.b32.xlu0 %v4404, 64
    %v4512 = vpop.permute.xlu0 %4511
    %4513 = vrot.lane.b32.xlu0 %v4442, 64
    %v4514 = vpop.permute.xlu0 %4513
    %4523 = vrot.lane.b32.xlu0 %v4338, 80
    %v4524 = vpop.permute.xlu0 %4523
    %4525 = vrot.lane.b32.xlu0 %v4376, 80
    %v4526 = vpop.permute.xlu0 %4525
    %4527 = vrot.lane.b32.xlu0 %v4414, 80
    %v4528 = vpop.permute.xlu0 %4527
    %4529 = vrot.lane.b32.xlu0 %v4452, 80
    %v4530 = vpop.permute.xlu0 %4529
    %4539 = vrot.lane.b32.xlu0 %v4332, 96
    %v4540 = vpop.permute.xlu0 %4539
    %4541 = vrot.lane.b32.xlu0 %v4370, 96
    %v4542 = vpop.permute.xlu0 %4541
    %4543 = vrot.lane.b32.xlu0 %v4408, 96
    %v4544 = vpop.permute.xlu0 %4543
    %4545 = vrot.lane.b32.xlu0 %v4446, 96
    %v4546 = vpop.permute.xlu0 %4545
    %4555 = vrot.lane.b32.xlu0 %v4340, 112
    %v4556 = vpop.permute.xlu0 %4555
    %4557 = vrot.lane.b32.xlu0 %v4378, 112
    %v4558 = vpop.permute.xlu0 %4557
    %4559 = vrot.lane.b32.xlu0 %v4416, 112
    %v4560 = vpop.permute.xlu0 %4559
    %4561 = vrot.lane.b32.xlu0 %v4454, 112
    %v4562 = vpop.permute.xlu0 %4561
    %v4567 = vsel %vm59, %v4318, %v4460
    %v4568 = vsel %vm59, %v4356, %v4462
    %v4569 = vsel %vm59, %v4394, %v4464
    %v4570 = vsel %vm59, %v4432, %v4466
    %v4571 = vsel %vm725, %v4567, %v4476
    %v4572 = vsel %vm725, %v4568, %v4478
    %v4573 = vsel %vm725, %v4569, %v4480
    %v4574 = vsel %vm725, %v4570, %v4482
    %v4575 = vsel %vm730, %v4571, %v4492
    %v4576 = vsel %vm730, %v4572, %v4494
    %v4577 = vsel %vm730, %v4573, %v4496
    %v4578 = vsel %vm730, %v4574, %v4498
    %v4579 = vsel %vm735, %v4575, %v4508
    %v4580 = vsel %vm735, %v4576, %v4510
    %v4581 = vsel %vm735, %v4577, %v4512
    %v4582 = vsel %vm735, %v4578, %v4514
    %v4583 = vsel %vm740, %v4579, %v4524
    %v4584 = vsel %vm740, %v4580, %v4526
    %v4585 = vsel %vm740, %v4581, %v4528
    %v4586 = vsel %vm740, %v4582, %v4530
    %v4587 = vsel %vm745, %v4583, %v4540
    %v4588 = vsel %vm745, %v4584, %v4542
    %v4589 = vsel %vm745, %v4585, %v4544
    %v4590 = vsel %vm745, %v4586, %v4546
    %v4591 = vsel %vm750, %v4587, %v4556
    %v4592 = vsel %vm750, %v4588, %v4558
    %v4593 = vsel %vm750, %v4589, %v4560
    %v4594 = vsel %vm750, %v4590, %v4562
    %4595 = vst [vmem:[#allocation2 + $0x6] sm:$0x1] %v4591
    %4596 = vst [vmem:[#allocation2 + $0xe] sm:$0x1] %v4592
    %4597 = vst [vmem:[#allocation2 + $0x16] sm:$0x1] %v4593
    %4598 = vst [vmem:[#allocation2 + $0x1e] sm:$0x1] %v4594
    %v4599 = vld [vmem:[%s0 + $0x38] sm:$0xff]
    %v4600 = vld [vmem:[%s0 + $0x78] sm:$0xff]
    %v4601 = vld [vmem:[%s0 + $0xb8] sm:$0xff]
    %v4602 = vld [vmem:[%s0 + $0xf8] sm:$0xff]
    %4603 = vmatpush.msra.mxu0 0.0
    %4604 = vmatpush.msra.mxu0 0.0
    %4605 = vmatpush.msra.mxu0 0.0
    %4606 = vmatpush.msra.mxu0 0.0
    %4607 = vmatpush.msra.mxu0 0.0
    %4608 = vmatpush.msra.mxu0 0.0
    %4609 = vmatpush.msra.mxu0 0.0
    %4610 = vmatpush.msra.mxu0 0.0
    %4611 = vmatpush.msra.mxu0 0.0
    %4612 = vmatpush.msra.mxu0 0.0
    %4613 = vmatpush.msra.mxu0 0.0
    %4614 = vmatpush.msra.mxu0 0.0
    %4615 = vmatpush.msra.mxu0 0.0
    %4616 = vmatpush.msra.mxu0 0.0
    %4617 = vmatpush.msra.mxu0 %v28
    %4618 = vmatpush.msra.mxu0 %v27
    %4619 = vmatmul.f32.gmra.mxu0 %v4206
    %v4620 = vpop.f32.mrf.mxu0
    %v4621 = vadd.f32 0.0, %v4620
    %4622 = vdwg.mxu0
    %4623 = vmatpush.msra.mxu0 0.0
    %4624 = vmatpush.msra.mxu0 0.0
    %4625 = vmatpush.msra.mxu0 0.0
    %4626 = vmatpush.msra.mxu0 0.0
    %4627 = vmatpush.msra.mxu0 0.0
    %4628 = vmatpush.msra.mxu0 0.0
    %4629 = vmatpush.msra.mxu0 0.0
    %4630 = vmatpush.msra.mxu0 0.0
    %4631 = vmatpush.msra.mxu0 0.0
    %4632 = vmatpush.msra.mxu0 0.0
    %4633 = vmatpush.msra.mxu0 0.0
    %4634 = vmatpush.msra.mxu0 0.0
    %4635 = vmatpush.msra.mxu0 0.0
    %4636 = vmatpush.msra.mxu0 0.0
    %4637 = vmatpush.msra.mxu0 %v30
    %4638 = vmatpush.msra.mxu0 %v29
    %4639 = vmatmul.f32.gmra.mxu0 %v4231
    %v4640 = vpop.f32.mrf.mxu0
    %v4641 = vadd.f32 0.0, %v4640
    %4642 = vdwg.mxu0
    %4643 = vmatpush.msra.mxu0 0.0
    %4644 = vmatpush.msra.mxu0 0.0
    %4645 = vmatpush.msra.mxu0 0.0
    %4646 = vmatpush.msra.mxu0 0.0
    %4647 = vmatpush.msra.mxu0 0.0
    %4648 = vmatpush.msra.mxu0 0.0
    %4649 = vmatpush.msra.mxu0 0.0
    %4650 = vmatpush.msra.mxu0 0.0
    %4651 = vmatpush.msra.mxu0 0.0
    %4652 = vmatpush.msra.mxu0 0.0
    %4653 = vmatpush.msra.mxu0 0.0
    %4654 = vmatpush.msra.mxu0 0.0
    %4655 = vmatpush.msra.mxu0 0.0
    %4656 = vmatpush.msra.mxu0 0.0
    %4657 = vmatpush.msra.mxu0 %v32
    %4658 = vmatpush.msra.mxu0 %v31
    %4659 = vmatmul.f32.gmra.mxu0 %v4256
    %v4660 = vpop.f32.mrf.mxu0
    %v4661 = vadd.f32 0.0, %v4660
    %4662 = vdwg.mxu0
    %4663 = vmatpush.msra.mxu0 0.0
    %4664 = vmatpush.msra.mxu0 0.0
    %4665 = vmatpush.msra.mxu0 0.0
    %4666 = vmatpush.msra.mxu0 0.0
    %4667 = vmatpush.msra.mxu0 0.0
    %4668 = vmatpush.msra.mxu0 0.0
    %4669 = vmatpush.msra.mxu0 0.0
    %4670 = vmatpush.msra.mxu0 0.0
    %4671 = vmatpush.msra.mxu0 0.0
    %4672 = vmatpush.msra.mxu0 0.0
    %4673 = vmatpush.msra.mxu0 0.0
    %4674 = vmatpush.msra.mxu0 0.0
    %4675 = vmatpush.msra.mxu0 0.0
    %4676 = vmatpush.msra.mxu0 0.0
    %4677 = vmatpush.msra.mxu0 %v34
    %4678 = vmatpush.msra.mxu0 %v33
    %4679 = vmatmul.f32.gmra.mxu0 %v4281
    %v4680 = vpop.f32.mrf.mxu0
    %v4681 = vadd.f32 0.0, %v4680
    %4682 = vdwg.mxu0
    %v4683 = vadd.f32 %v4599, %v4621
    %v4684 = vadd.f32 %v4600, %v4641
    %v4685 = vadd.f32 %v4601, %v4661
    %v4686 = vadd.f32 %v4602, %v4681
    %v4687 = vxor.u32 %v4683, 2147483648
    %v4688 = vxor.u32 %v4684, 2147483648
    %v4689 = vxor.u32 %v4685, 2147483648
    %v4690 = vxor.u32 %v4686, 2147483648
    %v4691 = vmul.f32 %v4687, 1.442695
    %v4692 = vpow.pop %v4691
    %v4693 = vmul.f32 %v4688, 1.442695
    %v4694 = vpow.pop %v4693
    %v4695 = vmul.f32 %v4689, 1.442695
    %v4696 = vpow.pop %v4695
    %v4697 = vmul.f32 %v4690, 1.442695
    %v4698 = vpow.pop %v4697
    %v4699 = vadd.f32 %v4692, 1.0
    %v4700 = vadd.f32 %v4694, 1.0
    %v4701 = vadd.f32 %v4696, 1.0
    %v4702 = vadd.f32 %v4698, 1.0
    %v4703 = vrcp.pop %v4699
    %v4704 = vmul.f32 %v4699, %v4703
    %v4705 = vsub.f32 1.0, %v4704
    %v4706 = vmul.f32 %v4703, %v4705
    %v4707 = vadd.f32 %v4703, %v4706
    %vm4708 = vweird.f32 %v4699
    %vm4709 = vweird.f32 %v4703
    %vm4710 = vmor %vm4708, %vm4709
    %v4711 = vsel %vm4710, %v4703, %v4707
    %v4712 = vand.u32 2147483647, %v4699
    %vm4713 = vcmp.eq.f32.partialorder %v4712, 8.507059e+37
    %v4714 = vand.u32 %v4699, 2147483648
    %v4715 = vor.u32 1.1754944e-38, %v4714
    %v4716 = vsel %vm4713, %v4715, %v4711
    %v4717 = vmul.f32 1.0, %v4716
    %v4718 = vrcp.pop %v4700
    %v4719 = vmul.f32 %v4700, %v4718
    %v4720 = vsub.f32 1.0, %v4719
    %v4721 = vmul.f32 %v4718, %v4720
    %v4722 = vadd.f32 %v4718, %v4721
    %vm4723 = vweird.f32 %v4700
    %vm4724 = vweird.f32 %v4718
    %vm4725 = vmor %vm4723, %vm4724
    %v4726 = vsel %vm4725, %v4718, %v4722
    %v4727 = vand.u32 2147483647, %v4700
    %vm4728 = vcmp.eq.f32.partialorder %v4727, 8.507059e+37
    %v4729 = vand.u32 %v4700, 2147483648
    %v4730 = vor.u32 1.1754944e-38, %v4729
    %v4731 = vsel %vm4728, %v4730, %v4726
    %v4732 = vmul.f32 1.0, %v4731
    %v4733 = vrcp.pop %v4701
    %v4734 = vmul.f32 %v4701, %v4733
    %v4735 = vsub.f32 1.0, %v4734
    %v4736 = vmul.f32 %v4733, %v4735
    %v4737 = vadd.f32 %v4733, %v4736
    %vm4738 = vweird.f32 %v4701
    %vm4739 = vweird.f32 %v4733
    %vm4740 = vmor %vm4738, %vm4739
    %v4741 = vsel %vm4740, %v4733, %v4737
    %v4742 = vand.u32 2147483647, %v4701
    %vm4743 = vcmp.eq.f32.partialorder %v4742, 8.507059e+37
    %v4744 = vand.u32 %v4701, 2147483648
    %v4745 = vor.u32 1.1754944e-38, %v4744
    %v4746 = vsel %vm4743, %v4745, %v4741
    %v4747 = vmul.f32 1.0, %v4746
    %v4748 = vrcp.pop %v4702
    %v4749 = vmul.f32 %v4702, %v4748
    %v4750 = vsub.f32 1.0, %v4749
    %v4751 = vmul.f32 %v4748, %v4750
    %v4752 = vadd.f32 %v4748, %v4751
    %vm4753 = vweird.f32 %v4702
    %vm4754 = vweird.f32 %v4748
    %vm4755 = vmor %vm4753, %vm4754
    %v4756 = vsel %vm4755, %v4748, %v4752
    %v4757 = vand.u32 2147483647, %v4702
    %vm4758 = vcmp.eq.f32.partialorder %v4757, 8.507059e+37
    %v4759 = vand.u32 %v4702, 2147483648
    %v4760 = vor.u32 1.1754944e-38, %v4759
    %v4761 = vsel %vm4758, %v4760, %v4756
    %v4762 = vmul.f32 1.0, %v4761
    %v4763 = vadd.f32 %v4621, %v241
    %v4764 = vadd.f32 %v4641, %v243
    %v4765 = vadd.f32 %v4661, %v245
    %v4766 = vadd.f32 %v4681, %v247
    %4771 = vrot.lane.b32.xlu0 %v4763, 96
    %v4772 = vpop.permute.xlu0 %4771
    %4773 = vrot.lane.b32.xlu0 %v4764, 96
    %v4774 = vpop.permute.xlu0 %4773
    %4775 = vrot.lane.b32.xlu0 %v4765, 96
    %v4776 = vpop.permute.xlu0 %4775
    %4777 = vrot.lane.b32.xlu0 %v4766, 96
    %v4778 = vpop.permute.xlu0 %4777
    %v4783 = vmul.f32 %v4717, %v4772
    %v4784 = vmul.f32 %v4732, %v4774
    %v4785 = vmul.f32 %v4747, %v4776
    %v4786 = vmul.f32 %v4762, %v4778
    %4791 = vrot.lane.b32.xlu0 %v4783, 32
    %v4792 = vpop.permute.xlu0 %4791
    %4793 = vrot.lane.b32.xlu0 %v4784, 32
    %v4794 = vpop.permute.xlu0 %4793
    %4795 = vrot.lane.b32.xlu0 %v4785, 32
    %v4796 = vpop.permute.xlu0 %4795
    %4797 = vrot.lane.b32.xlu0 %v4786, 32
    %v4798 = vpop.permute.xlu0 %4797
    %v4803 = vadd.f32 %v4599, %v4792
    %v4804 = vadd.f32 %v4600, %v4794
    %v4805 = vadd.f32 %v4601, %v4796
    %v4806 = vadd.f32 %v4602, %v4798
    %v4807 = vtanh.pop %v4803
    %v4808 = vtanh.pop %v4804
    %v4809 = vtanh.pop %v4805
    %v4810 = vtanh.pop %v4806
    %v4811 = vsub.f32 1.0, %v4717
    %v4812 = vsub.f32 1.0, %v4732
    %v4813 = vsub.f32 1.0, %v4747
    %v4814 = vsub.f32 1.0, %v4762
    %4819 = vrot.lane.b32.xlu0 %v4807, 112
    %v4820 = vpop.permute.xlu0 %4819
    %4821 = vrot.lane.b32.xlu0 %v4808, 112
    %v4822 = vpop.permute.xlu0 %4821
    %4823 = vrot.lane.b32.xlu0 %v4809, 112
    %v4824 = vpop.permute.xlu0 %4823
    %4825 = vrot.lane.b32.xlu0 %v4810, 112
    %v4826 = vpop.permute.xlu0 %4825
    %v4831 = vmul.f32 %v4811, %v4820
    %v4832 = vmul.f32 %v4812, %v4822
    %v4833 = vmul.f32 %v4813, %v4824
    %v4834 = vmul.f32 %v4814, %v4826
    %v4835 = vmul.f32 %v4717, %v4199
    %v4836 = vmul.f32 %v4732, %v4200
    %v4837 = vmul.f32 %v4747, %v4201
    %v4838 = vmul.f32 %v4762, %v4202
    %v4839 = vadd.f32 %v4831, %v4835
    %v4840 = vadd.f32 %v4832, %v4836
    %v4841 = vadd.f32 %v4833, %v4837
    %v4842 = vadd.f32 %v4834, %v4838
    %4844 = vrot.lane.b32.xlu0 %v4839, 112
    %v4845 = vpop.permute.xlu0 %4844
    %v4846 = vsel %vm59, %v4845, 0
    %4848 = vmatpush.msra.mxu0 0.0
    %4849 = vmatpush.msra.mxu0 0.0
    %4850 = vmatpush.msra.mxu0 0.0
    %4851 = vmatpush.msra.mxu0 0.0
    %4852 = vmatpush.msra.mxu0 0.0
    %4853 = vmatpush.msra.mxu0 0.0
    %4854 = vmatpush.msra.mxu0 0.0
    %4855 = vmatpush.msra.mxu0 0.0
    %4856 = vmatpush.msra.mxu0 0.0
    %4857 = vmatpush.msra.mxu0 0.0
    %4858 = vmatpush.msra.mxu0 0.0
    %4859 = vmatpush.msra.mxu0 0.0
    %4860 = vmatpush.msra.mxu0 0.0
    %4861 = vmatpush.msra.mxu0 0.0
    %4862 = vmatpush.msra.mxu0 %v36
    %4863 = vmatpush.msra.mxu0 %v35
    %4864 = vmatmul.f32.gmra.mxu0 %v4846
    %v4865 = vpop.f32.mrf.mxu0
    %v4866 = vadd.f32 %v348, %v4865
    %4867 = vdwg.mxu0
    %4869 = vrot.lane.b32.xlu0 %v4840, 112
    %v4870 = vpop.permute.xlu0 %4869
    %v4871 = vsel %vm59, %v4870, 0
    %4873 = vmatpush.msra.mxu0 0.0
    %4874 = vmatpush.msra.mxu0 0.0
    %4875 = vmatpush.msra.mxu0 0.0
    %4876 = vmatpush.msra.mxu0 0.0
    %4877 = vmatpush.msra.mxu0 0.0
    %4878 = vmatpush.msra.mxu0 0.0
    %4879 = vmatpush.msra.mxu0 0.0
    %4880 = vmatpush.msra.mxu0 0.0
    %4881 = vmatpush.msra.mxu0 0.0
    %4882 = vmatpush.msra.mxu0 0.0
    %4883 = vmatpush.msra.mxu0 0.0
    %4884 = vmatpush.msra.mxu0 0.0
    %4885 = vmatpush.msra.mxu0 0.0
    %4886 = vmatpush.msra.mxu0 0.0
    %4887 = vmatpush.msra.mxu0 %v38
    %4888 = vmatpush.msra.mxu0 %v37
    %4889 = vmatmul.f32.gmra.mxu0 %v4871
    %v4890 = vpop.f32.mrf.mxu0
    %v4891 = vadd.f32 %v349, %v4890
    %4892 = vdwg.mxu0
    %4894 = vrot.lane.b32.xlu0 %v4841, 112
    %v4895 = vpop.permute.xlu0 %4894
    %v4896 = vsel %vm59, %v4895, 0
    %4898 = vmatpush.msra.mxu0 0.0
    %4899 = vmatpush.msra.mxu0 0.0
    %4900 = vmatpush.msra.mxu0 0.0
    %4901 = vmatpush.msra.mxu0 0.0
    %4902 = vmatpush.msra.mxu0 0.0
    %4903 = vmatpush.msra.mxu0 0.0
    %4904 = vmatpush.msra.mxu0 0.0
    %4905 = vmatpush.msra.mxu0 0.0
    %4906 = vmatpush.msra.mxu0 0.0
    %4907 = vmatpush.msra.mxu0 0.0
    %4908 = vmatpush.msra.mxu0 0.0
    %4909 = vmatpush.msra.mxu0 0.0
    %4910 = vmatpush.msra.mxu0 0.0
    %4911 = vmatpush.msra.mxu0 0.0
    %4912 = vmatpush.msra.mxu0 %v40
    %4913 = vmatpush.msra.mxu0 %v39
    %4914 = vmatmul.f32.gmra.mxu0 %v4896
    %v4915 = vpop.f32.mrf.mxu0
    %v4916 = vadd.f32 %v350, %v4915
    %4917 = vdwg.mxu0
    %4919 = vrot.lane.b32.xlu0 %v4842, 112
    %v4920 = vpop.permute.xlu0 %4919
    %v4921 = vsel %vm59, %v4920, 0
    %4923 = vmatpush.msra.mxu0 0.0
    %4924 = vmatpush.msra.mxu0 0.0
    %4925 = vmatpush.msra.mxu0 0.0
    %4926 = vmatpush.msra.mxu0 0.0
    %4927 = vmatpush.msra.mxu0 0.0
    %4928 = vmatpush.msra.mxu0 0.0
    %4929 = vmatpush.msra.mxu0 0.0
    %4930 = vmatpush.msra.mxu0 0.0
    %4931 = vmatpush.msra.mxu0 0.0
    %4932 = vmatpush.msra.mxu0 0.0
    %4933 = vmatpush.msra.mxu0 0.0
    %4934 = vmatpush.msra.mxu0 0.0
    %4935 = vmatpush.msra.mxu0 0.0
    %4936 = vmatpush.msra.mxu0 0.0
    %4937 = vmatpush.msra.mxu0 %v42
    %4938 = vmatpush.msra.mxu0 %v41
    %4939 = vmatmul.f32.gmra.mxu0 %v4921
    %v4940 = vpop.f32.mrf.mxu0
    %v4941 = vadd.f32 %v351, %v4940
    %4942 = vdwg.mxu0
    %v4943 = vrot.slane %v4866, 4
    %v4944 = vsel %vm457, 0.0, %v4943
    %v4946 = vunpack.c.l.s4 1983009808
    %v4947 = vunpack.c.0.s8 %v4946
    %v4948 = vperm.slane %v4866, %v4947
    %v4950 = vunpack.c.l.s4 1983009808
    %v4951 = vunpack.c.0.s8 %v4950
    %v4952 = vperm.slane %v4944, %v4951
    %v4953 = vrot.slane %v4948, 4
    %v4954 = vsel %vm457, 0.0, %v4953
    %v4956 = vunpack.c.l.s4 1934713408
    %v4957 = vunpack.c.0.s8 %v4956
    %v4958 = vperm.slane %v4948, %v4957
    %v4960 = vunpack.c.l.s4 1934713408
    %v4961 = vunpack.c.0.s8 %v4960
    %v4962 = vperm.slane %v4954, %v4961
    %v4963 = vrot.slane %v4952, 4
    %v4964 = vsel %vm457, 0.0, %v4963
    %v4966 = vunpack.c.l.s4 1934713408
    %v4967 = vunpack.c.0.s8 %v4966
    %v4968 = vperm.slane %v4952, %v4967
    %v4970 = vunpack.c.l.s4 1934713408
    %v4971 = vunpack.c.0.s8 %v4970
    %v4972 = vperm.slane %v4964, %v4971
    %v4973 = vrot.slane %v4958, 4
    %v4974 = vsel %vm457, 0.0, %v4973
    %v4975 = vrot.slane %v4962, 4
    %v4976 = vsel %vm457, 0.0, %v4975
    %v4977 = vrot.slane %v4968, 4
    %v4978 = vsel %vm457, 0.0, %v4977
    %v4979 = vrot.slane %v4972, 4
    %v4980 = vsel %vm457, 0.0, %v4979
    %v4981 = vrot.slane %v4891, 4
    %v4982 = vsel %vm457, 0.0, %v4981
    %v4984 = vunpack.c.l.s4 1983009808
    %v4985 = vunpack.c.0.s8 %v4984
    %v4986 = vperm.slane %v4891, %v4985
    %v4988 = vunpack.c.l.s4 1983009808
    %v4989 = vunpack.c.0.s8 %v4988
    %v4990 = vperm.slane %v4982, %v4989
    %v4991 = vrot.slane %v4986, 4
    %v4992 = vsel %vm457, 0.0, %v4991
    %v4994 = vunpack.c.l.s4 1934713408
    %v4995 = vunpack.c.0.s8 %v4994
    %v4996 = vperm.slane %v4986, %v4995
    %v4998 = vunpack.c.l.s4 1934713408
    %v4999 = vunpack.c.0.s8 %v4998
    %v5000 = vperm.slane %v4992, %v4999
    %v5001 = vrot.slane %v4990, 4
    %v5002 = vsel %vm457, 0.0, %v5001
    %v5004 = vunpack.c.l.s4 1934713408
    %v5005 = vunpack.c.0.s8 %v5004
    %v5006 = vperm.slane %v4990, %v5005
    %v5008 = vunpack.c.l.s4 1934713408
    %v5009 = vunpack.c.0.s8 %v5008
    %v5010 = vperm.slane %v5002, %v5009
    %v5011 = vrot.slane %v4996, 4
    %v5012 = vsel %vm457, 0.0, %v5011
    %v5013 = vrot.slane %v5000, 4
    %v5014 = vsel %vm457, 0.0, %v5013
    %v5015 = vrot.slane %v5006, 4
    %v5016 = vsel %vm457, 0.0, %v5015
    %v5017 = vrot.slane %v5010, 4
    %v5018 = vsel %vm457, 0.0, %v5017
    %v5019 = vrot.slane %v4916, 4
    %v5020 = vsel %vm457, 0.0, %v5019
    %v5022 = vunpack.c.l.s4 1983009808
    %v5023 = vunpack.c.0.s8 %v5022
    %v5024 = vperm.slane %v4916, %v5023
    %v5026 = vunpack.c.l.s4 1983009808
    %v5027 = vunpack.c.0.s8 %v5026
    %v5028 = vperm.slane %v5020, %v5027
    %v5029 = vrot.slane %v5024, 4
    %v5030 = vsel %vm457, 0.0, %v5029
    %v5032 = vunpack.c.l.s4 1934713408
    %v5033 = vunpack.c.0.s8 %v5032
    %v5034 = vperm.slane %v5024, %v5033
    %v5036 = vunpack.c.l.s4 1934713408
    %v5037 = vunpack.c.0.s8 %v5036
    %v5038 = vperm.slane %v5030, %v5037
    %v5039 = vrot.slane %v5028, 4
    %v5040 = vsel %vm457, 0.0, %v5039
    %v5042 = vunpack.c.l.s4 1934713408
    %v5043 = vunpack.c.0.s8 %v5042
    %v5044 = vperm.slane %v5028, %v5043
    %v5046 = vunpack.c.l.s4 1934713408
    %v5047 = vunpack.c.0.s8 %v5046
    %v5048 = vperm.slane %v5040, %v5047
    %v5049 = vrot.slane %v5034, 4
    %v5050 = vsel %vm457, 0.0, %v5049
    %v5051 = vrot.slane %v5038, 4
    %v5052 = vsel %vm457, 0.0, %v5051
    %v5053 = vrot.slane %v5044, 4
    %v5054 = vsel %vm457, 0.0, %v5053
    %v5055 = vrot.slane %v5048, 4
    %v5056 = vsel %vm457, 0.0, %v5055
    %v5057 = vrot.slane %v4941, 4
    %v5058 = vsel %vm457, 0.0, %v5057
    %v5060 = vunpack.c.l.s4 1983009808
    %v5061 = vunpack.c.0.s8 %v5060
    %v5062 = vperm.slane %v4941, %v5061
    %v5064 = vunpack.c.l.s4 1983009808
    %v5065 = vunpack.c.0.s8 %v5064
    %v5066 = vperm.slane %v5058, %v5065
    %v5067 = vrot.slane %v5062, 4
    %v5068 = vsel %vm457, 0.0, %v5067
    %v5070 = vunpack.c.l.s4 1934713408
    %v5071 = vunpack.c.0.s8 %v5070
    %v5072 = vperm.slane %v5062, %v5071
    %v5074 = vunpack.c.l.s4 1934713408
    %v5075 = vunpack.c.0.s8 %v5074
    %v5076 = vperm.slane %v5068, %v5075
    %v5077 = vrot.slane %v5066, 4
    %v5078 = vsel %vm457, 0.0, %v5077
    %v5080 = vunpack.c.l.s4 1934713408
    %v5081 = vunpack.c.0.s8 %v5080
    %v5082 = vperm.slane %v5066, %v5081
    %v5084 = vunpack.c.l.s4 1934713408
    %v5085 = vunpack.c.0.s8 %v5084
    %v5086 = vperm.slane %v5078, %v5085
    %v5087 = vrot.slane %v5072, 4
    %v5088 = vsel %vm457, 0.0, %v5087
    %v5089 = vrot.slane %v5076, 4
    %v5090 = vsel %vm457, 0.0, %v5089
    %v5091 = vrot.slane %v5082, 4
    %v5092 = vsel %vm457, 0.0, %v5091
    %v5093 = vrot.slane %v5086, 4
    %v5094 = vsel %vm457, 0.0, %v5093
    %5099 = vrot.lane.b32.xlu0 %v4974, 16
    %v5100 = vpop.permute.xlu0 %5099
    %5101 = vrot.lane.b32.xlu0 %v5012, 16
    %v5102 = vpop.permute.xlu0 %5101
    %5103 = vrot.lane.b32.xlu0 %v5050, 16
    %v5104 = vpop.permute.xlu0 %5103
    %5105 = vrot.lane.b32.xlu0 %v5088, 16
    %v5106 = vpop.permute.xlu0 %5105
    %5115 = vrot.lane.b32.xlu0 %v4962, 32
    %v5116 = vpop.permute.xlu0 %5115
    %5117 = vrot.lane.b32.xlu0 %v5000, 32
    %v5118 = vpop.permute.xlu0 %5117
    %5119 = vrot.lane.b32.xlu0 %v5038, 32
    %v5120 = vpop.permute.xlu0 %5119
    %5121 = vrot.lane.b32.xlu0 %v5076, 32
    %v5122 = vpop.permute.xlu0 %5121
    %5131 = vrot.lane.b32.xlu0 %v4976, 48
    %v5132 = vpop.permute.xlu0 %5131
    %5133 = vrot.lane.b32.xlu0 %v5014, 48
    %v5134 = vpop.permute.xlu0 %5133
    %5135 = vrot.lane.b32.xlu0 %v5052, 48
    %v5136 = vpop.permute.xlu0 %5135
    %5137 = vrot.lane.b32.xlu0 %v5090, 48
    %v5138 = vpop.permute.xlu0 %5137
    %5147 = vrot.lane.b32.xlu0 %v4968, 64
    %v5148 = vpop.permute.xlu0 %5147
    %5149 = vrot.lane.b32.xlu0 %v5006, 64
    %v5150 = vpop.permute.xlu0 %5149
    %5151 = vrot.lane.b32.xlu0 %v5044, 64
    %v5152 = vpop.permute.xlu0 %5151
    %5153 = vrot.lane.b32.xlu0 %v5082, 64
    %v5154 = vpop.permute.xlu0 %5153
    %5163 = vrot.lane.b32.xlu0 %v4978, 80
    %v5164 = vpop.permute.xlu0 %5163
    %5165 = vrot.lane.b32.xlu0 %v5016, 80
    %v5166 = vpop.permute.xlu0 %5165
    %5167 = vrot.lane.b32.xlu0 %v5054, 80
    %v5168 = vpop.permute.xlu0 %5167
    %5169 = vrot.lane.b32.xlu0 %v5092, 80
    %v5170 = vpop.permute.xlu0 %5169
    %5179 = vrot.lane.b32.xlu0 %v4972, 96
    %v5180 = vpop.permute.xlu0 %5179
    %5181 = vrot.lane.b32.xlu0 %v5010, 96
    %v5182 = vpop.permute.xlu0 %5181
    %5183 = vrot.lane.b32.xlu0 %v5048, 96
    %v5184 = vpop.permute.xlu0 %5183
    %5185 = vrot.lane.b32.xlu0 %v5086, 96
    %v5186 = vpop.permute.xlu0 %5185
    %5195 = vrot.lane.b32.xlu0 %v4980, 112
    %v5196 = vpop.permute.xlu0 %5195
    %5197 = vrot.lane.b32.xlu0 %v5018, 112
    %v5198 = vpop.permute.xlu0 %5197
    %5199 = vrot.lane.b32.xlu0 %v5056, 112
    %v5200 = vpop.permute.xlu0 %5199
    %5201 = vrot.lane.b32.xlu0 %v5094, 112
    %v5202 = vpop.permute.xlu0 %5201
    %v5207 = vsel %vm59, %v4958, %v5100
    %v5208 = vsel %vm59, %v4996, %v5102
    %v5209 = vsel %vm59, %v5034, %v5104
    %v5210 = vsel %vm59, %v5072, %v5106
    %v5211 = vsel %vm725, %v5207, %v5116
    %v5212 = vsel %vm725, %v5208, %v5118
    %v5213 = vsel %vm725, %v5209, %v5120
    %v5214 = vsel %vm725, %v5210, %v5122
    %v5215 = vsel %vm730, %v5211, %v5132
    %v5216 = vsel %vm730, %v5212, %v5134
    %v5217 = vsel %vm730, %v5213, %v5136
    %v5218 = vsel %vm730, %v5214, %v5138
    %v5219 = vsel %vm735, %v5215, %v5148
    %v5220 = vsel %vm735, %v5216, %v5150
    %v5221 = vsel %vm735, %v5217, %v5152
    %v5222 = vsel %vm735, %v5218, %v5154
    %v5223 = vsel %vm740, %v5219, %v5164
    %v5224 = vsel %vm740, %v5220, %v5166
    %v5225 = vsel %vm740, %v5221, %v5168
    %v5226 = vsel %vm740, %v5222, %v5170
    %v5227 = vsel %vm745, %v5223, %v5180
    %v5228 = vsel %vm745, %v5224, %v5182
    %v5229 = vsel %vm745, %v5225, %v5184
    %v5230 = vsel %vm745, %v5226, %v5186
    %v5231 = vsel %vm750, %v5227, %v5196
    %v5232 = vsel %vm750, %v5228, %v5198
    %v5233 = vsel %vm750, %v5229, %v5200
    %v5234 = vsel %vm750, %v5230, %v5202
    %5235 = vst [vmem:[#allocation2 + $0x7] sm:$0x1] %v5231
    %5236 = vst [vmem:[#allocation2 + $0xf] sm:$0x1] %v5232
    %5237 = vst [vmem:[#allocation2 + $0x17] sm:$0x1] %v5233
    %5238 = vst [vmem:[#allocation2 + $0x1f] sm:$0x1] %v5234
    %5243 = vst.msk [vmem:[#allocation4] sm:$0xff] %vm59, %v4845
    %5244 = vst.msk [vmem:[#allocation4 + $0x8] sm:$0xff] %vm59, %v4870
    %5245 = vst.msk [vmem:[#allocation4 + $0x10] sm:$0xff] %vm59, %v4895
    %5246 = vst.msk [vmem:[#allocation4 + $0x18] sm:$0xff] %vm59, %v4920
    // Predicated region
    $region26: #{tpu_custom_call.1} parent=1 // pred_check
      _
    $region27: #{tpu_custom_call.1} parent=1 // pred_check_branch
      %5248 = sbr.rel (0) target = $region29
    $region28: #{tpu_custom_call.1} parent=1 // pred_region
      %5250 = vsyncadd [#allocation3], 0
      %s5251 = sshll.u32 [#allocation2], 4
      %s5252 = int_to_ptr.vmem [resolvable:$true] %s5251
      %s5253 = sshll.u32 %s6, 4
      %s5254 = int_to_ptr.hbm [resolvable:$true] %s5253
      %5259 = dma.vmem_to_hbm [thread:$0]  %s5252, 512, %s5254, [#allocation3], 128, 128, 8
    $region29: #{tpu_custom_call.1} parent=1 // pred_fallthru
      _
    // Predicated region
    $region30: #{tpu_custom_call.1} parent=1 // pred_check
      _
    $region31: #{tpu_custom_call.1} parent=1 // pred_check_branch
      %5261 = sbr.rel (0) target = $region33
    $region32: #{tpu_custom_call.1} parent=1 // pred_region
      %5263 = vsyncadd [#allocation5], 0
      %s5264 = sshll.u32 [#allocation4], 4
      %s5265 = int_to_ptr.vmem [resolvable:$true] %s5264
      %s5266 = sshll.u32 %s7, 4
      %s5267 = int_to_ptr.hbm [resolvable:$true] %s5266
      %5272 = dma.vmem_to_hbm [thread:$0]  %s5265, 512, %s5267, [#allocation5], 128, 128, 8
    $region33: #{tpu_custom_call.1} parent=1 // pred_fallthru
      _
    // Predicated region
    $region34: #{tpu_custom_call.1} parent=1 // pred_check
      _
    $region35: #{tpu_custom_call.1} parent=1 // pred_check_branch
      %5274 = sbr.rel (0) target = $region37
    $region36: #{tpu_custom_call.1} parent=1 // pred_region
      %5276 = dma.done [#allocation3], 512
    $region37: #{tpu_custom_call.1} parent=1 // pred_fallthru
      _
    // Predicated region
    $region38: #{tpu_custom_call.1} parent=1 // pred_check
      _
    $region39: #{tpu_custom_call.1} parent=1 // pred_check_branch
      %5278 = sbr.rel (0) target = $region41
    $region40: #{tpu_custom_call.1} parent=1 // pred_region
      %5280 = dma.done [#allocation5], 512
    $region41: #{tpu_custom_call.1} parent=1 // pred_fallthru
      _
    %5281 = vsyncpa [#allocation3], 1
    %5282 = vsyncpa [#allocation5], 1

</llo_original>
